<compile_context>
chip_gen: v5e
topology: v5e:2x2
jax: 0.10.0
libtpu: 0.0.40
codegen_flags: <defaults>
</compile_context>

<pallas_src>
import functools

import jax
import jax.numpy as jnp
from jax import lax
from jax.experimental import pallas as pl
from jax.experimental.pallas import tpu as pltpu


def _largest_divisor_leq(n, cap):
    """Largest divisor of n that is <= cap (>= 1)."""
    for d in range(max(1, min(n, cap)), 0, -1):
        if n % d == 0:
            return d
    return 1


# --------------------------------------------------------------------------
# Kernel 1: 3x3 "same" conv (as im2col matmul) + bias + ReLU + 2x2/2 max-pool.
# One (image, output-row-strip) per grid step.
# --------------------------------------------------------------------------
def conv3x3_relu_pool_kernel(p_ref, w_ref, b_ref, o_ref, *, m_out):
    """p_ref: (4*m_out, 9*Cin) bf16 im2col patches, pool-position-major rows
       w_ref: (9*Cin, Cout)    bf16 im2col-reshaped HWIO weights
       b_ref: (1, Cout)        f32 bias
       o_ref: (m_out, Cout)    bf16 pooled output rows in (ho_local, wo) order
    """
    # Single MXU matmul per strip (M = 4*m_out rows), f32 accumulation in registers.
    acc = jnp.dot(p_ref[...], w_ref[...], preferred_element_type=jnp.float32)
    # Bias + ReLU fused, in f32 (VPU).
    y = jnp.maximum(acc + b_ref[...], 0.0)
    # 2x2 stride-2 max-pool: the 4 pool positions are 4 contiguous, vreg-aligned
    # row blocks (wrapper emitted rows as (pool_pos, ho_local, wo)); no scratch,
    # no strided reads, no reshapes -- just element-wise maxes on values.
    p00 = y[0 * m_out:1 * m_out]
    p01 = y[1 * m_out:2 * m_out]
    p10 = y[2 * m_out:3 * m_out]
    p11 = y[3 * m_out:4 * m_out]
    o_ref[...] = jnp.maximum(jnp.maximum(p00, p01),
                             jnp.maximum(p10, p11)).astype(o_ref.dtype)


def conv_relu_pool(x_nhwc, w_hwio, b, *, target_rows=1024):
    N, H, W, Cin = x_nhwc.shape
    assert H % 2 == 0 and W % 2 == 0, "conv/pool stage assumes even H and W"
    # TODO(synk): PyTorch MaxPool2d floors odd spatial sizes; odd H/W unsupported here.
    Cout = w_hwio.shape[-1]
    Ho, Wo = H // 2, W // 2
    # Output-row strip height: bounds per-step VMEM / register pressure at the
    # module's native 128x128 input and keeps the MXU M dim around `target_rows`.
    Hso = _largest_divisor_leq(Ho, max(1, target_rows // (4 * Wo)))
    S = Ho // Hso
    m_out = Hso * Wo

    # ---- XLA glue (layout plumbing only): zero-pad + im2col, rows ordered so the
    # kernel's pool reduces over contiguous row blocks. Channel-minor tap order
    # matches w_hwio.reshape(9*Cin, Cout).
    xp = jnp.pad(x_nhwc, ((0, 0), (1, 1), (1, 1), (0, 0))).astype(jnp.bfloat16)
    taps = [xp[:, kh:kh + H, kw:kw + W, :] for kh in range(3) for kw in range(3)]
    p = jnp.concatenate(taps, axis=-1)                    # (N, H, W, 9*Cin)
    p = p.reshape(N, S, Hso, 2, Wo, 2, 9 * Cin)           # h=(s,ho_l,dh) w=(wo,dw)
    p = p.transpose(0, 1, 3, 5, 2, 4, 6)                  # (N,S,dh,dw,Hso,Wo,9Cin)
    p = p.reshape(N, S, 4 * m_out, 9 * Cin)               # rows: pp-major,(ho_l,wo)

    w2d = w_hwio.reshape(9 * Cin, Cout).astype(jnp.bfloat16)
    b2d = b.reshape(1, Cout).astype(jnp.float32)

    kernel = functools.partial(conv3x3_relu_pool_kernel, m_out=m_out)
    out = pl.pallas_call(
        kernel,
        out_shape=jax.ShapeDtypeStruct((N, S, m_out, Cout), jnp.bfloat16),
        grid=(N, S),
        in_specs=[
            pl.BlockSpec((None, None, 4 * m_out, 9 * Cin),
                         lambda n, s: (n, s, 0, 0)),
            pl.BlockSpec((9 * Cin, Cout), lambda n, s: (0, 0)),
            pl.BlockSpec((1, Cout), lambda n, s: (0, 0)),
        ],
        out_specs=pl.BlockSpec((None, None, m_out, Cout),
                               lambda n, s: (n, s, 0, 0)),
        compiler_params=pltpu.CompilerParams(
            dimension_semantics=("parallel", "parallel")),  # images & strips independent
    )(p, w2d, b2d)
    # Free HBM reshape back to NHWC (ho = s*Hso + ho_local).
    return out.reshape(N, S, Hso, Wo, Cout).reshape(N, Ho, Wo, Cout)


# --------------------------------------------------------------------------
# Kernel 2: fc(flatten -> 128) + ReLU + fc(128 -> 2).
# Grid = (batch blocks [parallel], K blocks [arbitrary / reduction]).
# --------------------------------------------------------------------------
def mlp_kernel(x_ref, w1_ref, b1_ref, w2_ref, b2_ref, o_ref, acc_ref):
    k = pl.program_id(1)

    @pl.when(k == 0)
    def _():
        acc_ref[...] = jnp.zeros_like(acc_ref)

    # bf16 x bf16 -> f32 accumulation for the big fc1 matmul; weight streams
    # through VMEM one (bk, 128) block at a time and overlaps with the MXU.
    acc_ref[...] += jnp.dot(x_ref[...], w1_ref[...],
                            preferred_element_type=jnp.float32)

    @pl.when(k == pl.num_programs(1) - 1)
    def _():
        h = jnp.maximum(acc_ref[...] + b1_ref[...], 0.0)          # bias + ReLU, f32
        # fc2 epilogue: bf16 operands, f32 accumulation (no f32 MXU pass left).
        o_ref[...] = (jnp.dot(h.astype(jnp.bfloat16), w2_ref[...],
                              preferred_element_type=jnp.float32)
                      + b2_ref[...])


def mlp(x, w1, b1, w2, b2, *, max_block_k=8192, max_block_n=128):
    N, K = x.shape
    Dh, Do = w1.shape[1], w2.shape[1]
    # Big K blocks so grid-step overhead doesn't dominate (2-4 steps at the native
    # flatten_dim=32768). No silent bk=K fallback beyond the VMEM-safe cap.
    bk = _largest_divisor_leq(K, max_block_k)
    bn = _largest_divisor_leq(N, max_block_n)
    grid = (N // bn, K // bk)
    return pl.pallas_call(
        mlp_kernel,
        out_shape=jax.ShapeDtypeStruct((N, Do), jnp.float32),
        grid=grid,
        in_specs=[
            pl.BlockSpec((bn, bk), lambda n, k: (n, k)),
            pl.BlockSpec((bk, Dh), lambda n, k: (k, 0)),
            pl.BlockSpec((1, Dh), lambda n, k: (0, 0)),
            pl.BlockSpec((Dh, Do), lambda n, k: (0, 0)),
            pl.BlockSpec((1, Do), lambda n, k: (0, 0)),
        ],
        out_specs=pl.BlockSpec((bn, Do), lambda n, k: (n, 0)),
        scratch_shapes=[pltpu.VMEM((bn, Dh), jnp.float32)],
        compiler_params=pltpu.CompilerParams(
            dimension_semantics=("parallel", "arbitrary")),  # batch parallel, K reduction
    )(x.astype(jnp.bfloat16), w1.astype(jnp.bfloat16),
      b1.astype(jnp.float32), w2.astype(jnp.bfloat16), b2.astype(jnp.float32))


# --------------------------------------------------------------------------
# Full forward (glue: NCHW->NHWC transpose, pad+im2col patch extraction, flatten)
# --------------------------------------------------------------------------
@jax.jit
def cat_dog_cnn_forward(x_nchw, params):
    x = jnp.transpose(x_nchw, (0, 2, 3, 1))                    # NCHW -> NHWC
    x = conv_relu_pool(x, params["w_conv1"], params["b_conv1"])
    x = conv_relu_pool(x, params["w_conv2"], params["b_conv2"])
    n = x.shape[0]
    # Flatten in NHWC order; fc1 rows were permuted once at init so this matches
    # torch's NCHW x.view(N, -1) @ fc1 exactly (no runtime activation transpose).
    x = x.reshape(n, -1)
    return mlp(x, params["w_fc1_nhwc"], params["b_fc1"],
               params["w_fc2"], params["b_fc2"])


def init_params(key, H, W):
    # Deterministic synthetic parameters (shapes match the nn.Module layers).
    # flatten_dim follows the module's formula 32*(H//4)*(W//4).
    Hf, Wf, C2 = H // 4, W // 4, 32
    flatten_dim = C2 * Hf * Wf
    ks = jax.random.split(key, 8)

    def norm(k, shape, fan_in):
        return jax.random.normal(k, shape, jnp.float32) / jnp.sqrt(float(fan_in))

    # fc1 weight in torch layout: rows indexed by NCHW-flatten order (c, h, w).
    w_fc1 = norm(ks[4], (flatten_dim, 128), flatten_dim)
    # One-time row permutation to NHWC-flatten order (h, w, c) for the kernel path.
    w_fc1_nhwc = jnp.transpose(
        w_fc1.reshape(C2, Hf, Wf, 128), (1, 2, 0, 3)).reshape(flatten_dim, 128)

    params = dict(
        w_conv1=norm(ks[0], (3, 3, 3, 16), 3 * 9),      # HWIO
        b_conv1=norm(ks[1], (1, 16), 1.0),
        w_conv2=norm(ks[2], (3, 3, 16, 32), 16 * 9),    # HWIO
        b_conv2=norm(ks[3], (1, 32), 1.0),
        w_fc1=w_fc1,                                    # torch (NCHW-flatten) layout
        w_fc1_nhwc=w_fc1_nhwc,                          # kernel (NHWC-flatten) layout
        b_fc1=norm(ks[5], (1, 128), 1.0),
        w_fc2=norm(ks[6], (128, 2), 128),
        b_fc2=norm(ks[7], (1, 2), 1.0),
    )
    return params, flatten_dim


def reference_forward(x_nchw, params):
    # Pure-JAX f32 reference mirroring the PyTorch module exactly (NCHW flatten + w_fc1).
    x = jnp.transpose(x_nchw, (0, 2, 3, 1))

    def block(x, w, b):
        y = lax.conv_general_dilated(
            x, w, window_strides=(1, 1), padding="SAME",
            dimension_numbers=("NHWC", "HWIO", "NHWC"))
        y = jnp.maximum(y + b.reshape(1, 1, 1, -1), 0.0)
        return lax.reduce_window(y, -jnp.inf, lax.max,
                                 (1, 2, 2, 1), (1, 2, 2, 1), "VALID")

    x = block(x, params["w_conv1"], params["b_conv1"])
    x = block(x, params["w_conv2"], params["b_conv2"])
    n = x.shape[0]
    x = jnp.transpose(x, (0, 3, 1, 2)).reshape(n, -1)   # torch x.view(N, -1) order
    h = jnp.maximum(x @ params["w_fc1"] + params["b_fc1"], 0.0)
    return h @ params["w_fc2"] + params["b_fc2"]


if __name__ == "__main__":
    key = jax.random.PRNGKey(0)
    kx, kp = jax.random.split(key)
    # Small shapes consistent with the module (it probes 3x128x128; 3x32x32 here).
    N, C, H, W = 2, 3, 32, 32
    x = jax.random.normal(kx, (N, C, H, W), jnp.float32)
    params, flatten_dim = init_params(kp, H, W)
    assert flatten_dim == 32 * (H // 4) * (W // 4)

    out = jax.block_until_ready(cat_dog_cnn_forward(x, params))
    assert out.shape == (N, 2) and out.dtype == jnp.float32

    ref = reference_forward(x, params)
    # Tolerance sized for bf16 matmul operands / bf16 interstage activations vs.
    # the pure-f32 reference (all accumulations are f32).
    if not jnp.allclose(out, ref, rtol=5e-2, atol=5e-2):
        raise AssertionError("Pallas output does not match JAX reference")
    print("KERNEL_OK")
</pallas_src>

<mosaic_0001>
module attributes {stable_mosaic.version = 11 : i64} {
  func.func @conv3x3_relu_pool_kernel(%arg0: i32, %arg1: i32, %arg2: memref<1x1x1024x27xbf16, #tpu.memory_space<vmem>>, %arg3: memref<27x16xbf16, #tpu.memory_space<vmem>>, %arg4: memref<1x16xf32, #tpu.memory_space<vmem>>, %arg5: memref<1x1x256x16xbf16, #tpu.memory_space<vmem>>) attributes {dimension_semantics = [#tpu.dimension_semantics<parallel>, #tpu.dimension_semantics<parallel>], iteration_bounds = array<i64: 2, 1>, scalar_prefetch = 0 : i64, scratch_operands = 0 : i64, tpu.core_type = #tpu.core_type<tc>, window_params = [{transform_indices = @transform_0, window_bounds = array<i64: 1, 1, 1024, 27>}, {pipeline_mode = #tpu.pipeline_mode<synchronous>, transform_indices = @transform_1, window_bounds = array<i64: 27, 16>}, {pipeline_mode = #tpu.pipeline_mode<synchronous>, transform_indices = @transform_2, window_bounds = array<i64: 1, 16>}, {transform_indices = @transform_3, window_bounds = array<i64: 1, 1, 256, 16>}]} {
    %c0 = arith.constant 0 : index
    %c0_0 = arith.constant 0 : index
    %c0_1 = arith.constant 0 : index
    %c0_2 = arith.constant 0 : index
    %0 = vector.load %arg2[%c0, %c0_0, %c0_1, %c0_2] : memref<1x1x1024x27xbf16, #tpu.memory_space<vmem>>, vector<1x1x1024x27xbf16>
    %1 = vector.shape_cast %0 : vector<1x1x1024x27xbf16> to vector<1024x27xbf16>
    %c0_3 = arith.constant 0 : index
    %c0_4 = arith.constant 0 : index
    %2 = vector.load %arg3[%c0_3, %c0_4] : memref<27x16xbf16, #tpu.memory_space<vmem>>, vector<27x16xbf16>
    %cst = arith.constant dense<0.000000e+00> : vector<1024x16xf32>
    %3 = tpu.matmul %1, %2, %cst {dimension_numbers = #tpu.dot_dimension_numbers<[1], [0], [0], [1], [0, 0, 1, 1], [], []>} : vector<1024x27xbf16>, vector<27x16xbf16>, vector<1024x16xf32> -> vector<1024x16xf32>
    %c0_5 = arith.constant 0 : index
    %c0_6 = arith.constant 0 : index
    %4 = vector.load %arg4[%c0_5, %c0_6] : memref<1x16xf32, #tpu.memory_space<vmem>>, vector<1x16xf32>
    %5 = vector.broadcast %4 : vector<1x16xf32> to vector<1024x16xf32>
    %6 = arith.addf %3, %5 : vector<1024x16xf32>
    %cst_7 = arith.constant 0.000000e+00 : f32
    %7 = vector.broadcast %cst_7 : f32 to vector<1024x16xf32>
    %8 = arith.maximumf %6, %7 : vector<1024x16xf32>
    %9 = vector.extract_strided_slice %8 {offsets = [0, 0], sizes = [256, 16], strides = [1, 1]} : vector<1024x16xf32> to vector<256x16xf32>
    %10 = vector.extract_strided_slice %8 {offsets = [256, 0], sizes = [256, 16], strides = [1, 1]} : vector<1024x16xf32> to vector<256x16xf32>
    %11 = vector.extract_strided_slice %8 {offsets = [512, 0], sizes = [256, 16], strides = [1, 1]} : vector<1024x16xf32> to vector<256x16xf32>
    %12 = vector.extract_strided_slice %8 {offsets = [768, 0], sizes = [256, 16], strides = [1, 1]} : vector<1024x16xf32> to vector<256x16xf32>
    %13 = arith.maximumf %9, %10 : vector<256x16xf32>
    %14 = arith.maximumf %11, %12 : vector<256x16xf32>
    %15 = arith.maximumf %13, %14 : vector<256x16xf32>
    %16 = arith.truncf %15 : vector<256x16xf32> to vector<256x16xbf16>
    %c0_8 = arith.constant 0 : index
    %c0_9 = arith.constant 0 : index
    %c0_10 = arith.constant 0 : index
    %c0_11 = arith.constant 0 : index
    %17 = vector.load %arg5[%c0_8, %c0_9, %c0_10, %c0_11] : memref<1x1x256x16xbf16, #tpu.memory_space<vmem>>, vector<1x1x256x16xbf16>
    %18 = vector.shape_cast %17 : vector<1x1x256x16xbf16> to vector<256x16xbf16>
    %19 = vector.shape_cast %16 : vector<256x16xbf16> to vector<1x1x256x16xbf16>
    tpu.vector_store %arg5[%c0_8, %c0_9, %c0_10, %c0_11], %19 {strides = array<i32>} : memref<1x1x256x16xbf16, #tpu.memory_space<vmem>>, vector<1x1x256x16xbf16>,
    return
  }
  func.func @transform_0(%arg0: i32, %arg1: i32) -> (i32, i32, i32, i32) {
    %c0_i32 = arith.constant 0 : i32
    %c0_i32_0 = arith.constant 0 : i32
    %c0_i32_1 = arith.constant 0 : i32
    return %arg0, %arg1, %c0_i32, %c0_i32_0 : i32, i32, i32, i32
  }
  func.func @transform_1(%arg0: i32, %arg1: i32) -> (i32, i32) {
    %c0_i32 = arith.constant 0 : i32
    %c0_i32_0 = arith.constant 0 : i32
    %c0_i32_1 = arith.constant 0 : i32
    return %c0_i32, %c0_i32_0 : i32, i32
  }
  func.func @transform_2(%arg0: i32, %arg1: i32) -> (i32, i32) {
    %c0_i32 = arith.constant 0 : i32
    %c0_i32_0 = arith.constant 0 : i32
    %c0_i32_1 = arith.constant 0 : i32
    return %c0_i32, %c0_i32_0 : i32, i32
  }
  func.func @transform_3(%arg0: i32, %arg1: i32) -> (i32, i32, i32, i32) {
    %c0_i32 = arith.constant 0 : i32
    %c0_i32_0 = arith.constant 0 : i32
    %c0_i32_1 = arith.constant 0 : i32
    return %arg0, %arg1, %c0_i32, %c0_i32_0 : i32, i32, i32, i32
  }
}

module attributes {stable_mosaic.version = 11 : i64} {
  func.func @conv3x3_relu_pool_kernel(%arg0: i32, %arg1: i32, %arg2: memref<1x1x256x144xbf16, #tpu.memory_space<vmem>>, %arg3: memref<144x32xbf16, #tpu.memory_space<vmem>>, %arg4: memref<1x32xf32, #tpu.memory_space<vmem>>, %arg5: memref<1x1x64x32xbf16, #tpu.memory_space<vmem>>) attributes {dimension_semantics = [#tpu.dimension_semantics<parallel>, #tpu.dimension_semantics<parallel>], iteration_bounds = array<i64: 2, 1>, scalar_prefetch = 0 : i64, scratch_operands = 0 : i64, tpu.core_type = #tpu.core_type<tc>, window_params = [{transform_indices = @transform_0, window_bounds = array<i64: 1, 1, 256, 144>}, {pipeline_mode = #tpu.pipeline_mode<synchronous>, transform_indices = @transform_1, window_bounds = array<i64: 144, 32>}, {pipeline_mode = #tpu.pipeline_mode<synchronous>, transform_indices = @transform_2, window_bounds = array<i64: 1, 32>}, {transform_indices = @transform_3, window_bounds = array<i64: 1, 1, 64, 32>}]} {
    %c0 = arith.constant 0 : index
    %c0_0 = arith.constant 0 : index
    %c0_1 = arith.constant 0 : index
    %c0_2 = arith.constant 0 : index
    %0 = vector.load %arg2[%c0, %c0_0, %c0_1, %c0_2] : memref<1x1x256x144xbf16, #tpu.memory_space<vmem>>, vector<1x1x256x144xbf16>
    %1 = vector.shape_cast %0 : vector<1x1x256x144xbf16> to vector<256x144xbf16>
    %c0_3 = arith.constant 0 : index
    %c0_4 = arith.constant 0 : index
    %2 = vector.load %arg3[%c0_3, %c0_4] : memref<144x32xbf16, #tpu.memory_space<vmem>>, vector<144x32xbf16>
    %cst = arith.constant dense<0.000000e+00> : vector<256x32xf32>
    %3 = tpu.matmul %1, %2, %cst {dimension_numbers = #tpu.dot_dimension_numbers<[1], [0], [0], [1], [0, 0, 1, 1], [], []>} : vector<256x144xbf16>, vector<144x32xbf16>, vector<256x32xf32> -> vector<256x32xf32>
    %c0_5 = arith.constant 0 : index
    %c0_6 = arith.constant 0 : index
    %4 = vector.load %arg4[%c0_5, %c0_6] : memref<1x32xf32, #tpu.memory_space<vmem>>, vector<1x32xf32>
    %5 = vector.broadcast %4 : vector<1x32xf32> to vector<256x32xf32>
    %6 = arith.addf %3, %5 : vector<256x32xf32>
    %cst_7 = arith.constant 0.000000e+00 : f32
    %7 = vector.broadcast %cst_7 : f32 to vector<256x32xf32>
    %8 = arith.maximumf %6, %7 : vector<256x32xf32>
    %9 = vector.extract_strided_slice %8 {offsets = [0, 0], sizes = [64, 32], strides = [1, 1]} : vector<256x32xf32> to vector<64x32xf32>
    %10 = vector.extract_strided_slice %8 {offsets = [64, 0], sizes = [64, 32], strides = [1, 1]} : vector<256x32xf32> to vector<64x32xf32>
    %11 = vector.extract_strided_slice %8 {offsets = [128, 0], sizes = [64, 32], strides = [1, 1]} : vector<256x32xf32> to vector<64x32xf32>
    %12 = vector.extract_strided_slice %8 {offsets = [192, 0], sizes = [64, 32], strides = [1, 1]} : vector<256x32xf32> to vector<64x32xf32>
    %13 = arith.maximumf %9, %10 : vector<64x32xf32>
    %14 = arith.maximumf %11, %12 : vector<64x32xf32>
    %15 = arith.maximumf %13, %14 : vector<64x32xf32>
    %16 = arith.truncf %15 : vector<64x32xf32> to vector<64x32xbf16>
    %c0_8 = arith.constant 0 : index
    %c0_9 = arith.constant 0 : index
    %c0_10 = arith.constant 0 : index
    %c0_11 = arith.constant 0 : index
    %17 = vector.load %arg5[%c0_8, %c0_9, %c0_10, %c0_11] : memref<1x1x64x32xbf16, #tpu.memory_space<vmem>>, vector<1x1x64x32xbf16>
    %18 = vector.shape_cast %17 : vector<1x1x64x32xbf16> to vector<64x32xbf16>
    %19 = vector.shape_cast %16 : vector<64x32xbf16> to vector<1x1x64x32xbf16>
    tpu.vector_store %arg5[%c0_8, %c0_9, %c0_10, %c0_11], %19 {strides = array<i32>} : memref<1x1x64x32xbf16, #tpu.memory_space<vmem>>, vector<1x1x64x32xbf16>,
    return
  }
  func.func @transform_0(%arg0: i32, %arg1: i32) -> (i32, i32, i32, i32) {
    %c0_i32 = arith.constant 0 : i32
    %c0_i32_0 = arith.constant 0 : i32
    %c0_i32_1 = arith.constant 0 : i32
    return %arg0, %arg1, %c0_i32, %c0_i32_0 : i32, i32, i32, i32
  }
  func.func @transform_1(%arg0: i32, %arg1: i32) -> (i32, i32) {
    %c0_i32 = arith.constant 0 : i32
    %c0_i32_0 = arith.constant 0 : i32
    %c0_i32_1 = arith.constant 0 : i32
    return %c0_i32, %c0_i32_0 : i32, i32
  }
  func.func @transform_2(%arg0: i32, %arg1: i32) -> (i32, i32) {
    %c0_i32 = arith.constant 0 : i32
    %c0_i32_0 = arith.constant 0 : i32
    %c0_i32_1 = arith.constant 0 : i32
    return %c0_i32, %c0_i32_0 : i32, i32
  }
  func.func @transform_3(%arg0: i32, %arg1: i32) -> (i32, i32, i32, i32) {
    %c0_i32 = arith.constant 0 : i32
    %c0_i32_0 = arith.constant 0 : i32
    %c0_i32_1 = arith.constant 0 : i32
    return %arg0, %arg1, %c0_i32, %c0_i32_0 : i32, i32, i32, i32
  }
}

module attributes {stable_mosaic.version = 11 : i64} {
  func.func @mlp_kernel(%arg0: i32, %arg1: i32, %arg2: memref<2x2048xbf16, #tpu.memory_space<vmem>>, %arg3: memref<2048x128xbf16, #tpu.memory_space<vmem>>, %arg4: memref<1x128xf32, #tpu.memory_space<vmem>>, %arg5: memref<128x2xbf16, #tpu.memory_space<vmem>>, %arg6: memref<1x2xf32, #tpu.memory_space<vmem>>, %arg7: memref<2x2xf32, #tpu.memory_space<vmem>>, %arg8: memref<2x128xf32, #tpu.memory_space<vmem>>) attributes {dimension_semantics = [#tpu.dimension_semantics<parallel>, #tpu.dimension_semantics<arbitrary>], iteration_bounds = array<i64: 1, 1>, scalar_prefetch = 0 : i64, scratch_operands = 1 : i64, tpu.core_type = #tpu.core_type<tc>, window_params = [{transform_indices = @transform_0, window_bounds = array<i64: 2, 2048>}, {transform_indices = @transform_1, window_bounds = array<i64: 2048, 128>}, {pipeline_mode = #tpu.pipeline_mode<synchronous>, transform_indices = @transform_2, window_bounds = array<i64: 1, 128>}, {pipeline_mode = #tpu.pipeline_mode<synchronous>, transform_indices = @transform_3, window_bounds = array<i64: 128, 2>}, {pipeline_mode = #tpu.pipeline_mode<synchronous>, transform_indices = @transform_4, window_bounds = array<i64: 1, 2>}, {transform_indices = @transform_5, window_bounds = array<i64: 2, 2>}]} {
    %c0_i32 = arith.constant 0 : i32
    %0 = arith.cmpi eq, %arg1, %c0_i32 : i32
    %1 = arith.extui %0 : i1 to i32
    %c0_i32_0 = arith.constant 0 : i32
    %2 = arith.cmpi ne, %1, %c0_i32_0 : i32
    scf.if %2 {
      %cst_10 = arith.constant 0.000000e+00 : f32
      %12 = vector.broadcast %cst_10 : f32 to vector<2x128xf32>
      %c0_11 = arith.constant 0 : index
      %c0_12 = arith.constant 0 : index
      %13 = vector.load %arg8[%c0_11, %c0_12] : memref<2x128xf32, #tpu.memory_space<vmem>>, vector<2x128xf32>
      tpu.vector_store %arg8[%c0_11, %c0_12], %12 {strides = array<i32>} : memref<2x128xf32, #tpu.memory_space<vmem>>, vector<2x128xf32>,
    } else {
    }
    %c0 = arith.constant 0 : index
    %c0_1 = arith.constant 0 : index
    %3 = vector.load %arg8[%c0, %c0_1] : memref<2x128xf32, #tpu.memory_space<vmem>>, vector<2x128xf32>
    %c0_2 = arith.constant 0 : index
    %c0_3 = arith.constant 0 : index
    %4 = vector.load %arg2[%c0_2, %c0_3] : memref<2x2048xbf16, #tpu.memory_space<vmem>>, vector<2x2048xbf16>
    %c0_4 = arith.constant 0 : index
    %c0_5 = arith.constant 0 : index
    %5 = vector.load %arg3[%c0_4, %c0_5] : memref<2048x128xbf16, #tpu.memory_space<vmem>>, vector<2048x128xbf16>
    %cst = arith.constant dense<0.000000e+00> : vector<2x128xf32>
    %6 = tpu.matmul %4, %5, %cst {dimension_numbers = #tpu.dot_dimension_numbers<[1], [0], [0], [1], [0, 0, 1, 1], [], []>} : vector<2x2048xbf16>, vector<2048x128xbf16>, vector<2x128xf32> -> vector<2x128xf32>
    %7 = arith.addf %3, %6 : vector<2x128xf32>
    %c0_6 = arith.constant 0 : index
    %c0_7 = arith.constant 0 : index
    %8 = vector.load %arg8[%c0_6, %c0_7] : memref<2x128xf32, #tpu.memory_space<vmem>>, vector<2x128xf32>
    tpu.vector_store %arg8[%c0_6, %c0_7], %7 {strides = array<i32>} : memref<2x128xf32, #tpu.memory_space<vmem>>, vector<2x128xf32>,
    %c0_i32_8 = arith.constant 0 : i32
    %9 = arith.cmpi eq, %arg1, %c0_i32_8 : i32
    %10 = arith.extui %9 : i1 to i32
    %c0_i32_9 = arith.constant 0 : i32
    %11 = arith.cmpi ne, %10, %c0_i32_9 : i32
    scf.if %11 {
      %c0_10 = arith.constant 0 : index
      %c0_11 = arith.constant 0 : index
      %12 = vector.load %arg8[%c0_10, %c0_11] : memref<2x128xf32, #tpu.memory_space<vmem>>, vector<2x128xf32>
      %c0_12 = arith.constant 0 : index
      %c0_13 = arith.constant 0 : index
      %13 = vector.load %arg4[%c0_12, %c0_13] : memref<1x128xf32, #tpu.memory_space<vmem>>, vector<1x128xf32>
      %14 = vector.broadcast %13 : vector<1x128xf32> to vector<2x128xf32>
      %15 = arith.addf %12, %14 : vector<2x128xf32>
      %cst_14 = arith.constant 0.000000e+00 : f32
      %16 = vector.broadcast %cst_14 : f32 to vector<2x128xf32>
      %17 = arith.maximumf %15, %16 : vector<2x128xf32>
      %18 = arith.truncf %17 : vector<2x128xf32> to vector<2x128xbf16>
      %c0_15 = arith.constant 0 : index
      %c0_16 = arith.constant 0 : index
      %19 = vector.load %arg5[%c0_15, %c0_16] : memref<128x2xbf16, #tpu.memory_space<vmem>>, vector<128x2xbf16>
      %cst_17 = arith.constant dense<0.000000e+00> : vector<2x2xf32>
      %20 = tpu.matmul %18, %19, %cst_17 {dimension_numbers = #tpu.dot_dimension_numbers<[1], [0], [0], [1], [0, 0, 1, 1], [], []>} : vector<2x128xbf16>, vector<128x2xbf16>, vector<2x2xf32> -> vector<2x2xf32>
      %c0_18 = arith.constant 0 : index
      %c0_19 = arith.constant 0 : index
      %21 = vector.load %arg6[%c0_18, %c0_19] : memref<1x2xf32, #tpu.memory_space<vmem>>, vector<1x2xf32>
      %22 = vector.broadcast %21 : vector<1x2xf32> to vector<2x2xf32>
      %23 = arith.addf %20, %22 : vector<2x2xf32>
      %c0_20 = arith.constant 0 : index
      %c0_21 = arith.constant 0 : index
      %24 = vector.load %arg7[%c0_20, %c0_21] : memref<2x2xf32, #tpu.memory_space<vmem>>, vector<2x2xf32>
      tpu.vector_store %arg7[%c0_20, %c0_21], %23 {strides = array<i32>} : memref<2x2xf32, #tpu.memory_space<vmem>>, vector<2x2xf32>,
    } else {
    }
    return
  }
  func.func @transform_0(%arg0: i32, %arg1: i32) -> (i32, i32) {
    %c0_i32 = arith.constant 0 : i32
    return %arg0, %arg1 : i32, i32
  }
  func.func @transform_1(%arg0: i32, %arg1: i32) -> (i32, i32) {
    %c0_i32 = arith.constant 0 : i32
    %c0_i32_0 = arith.constant 0 : i32
    return %arg1, %c0_i32 : i32, i32
  }
  func.func @transform_2(%arg0: i32, %arg1: i32) -> (i32, i32) {
    %c0_i32 = arith.constant 0 : i32
    %c0_i32_0 = arith.constant 0 : i32
    %c0_i32_1 = arith.constant 0 : i32
    return %c0_i32, %c0_i32_0 : i32, i32
  }
  func.func @transform_3(%arg0: i32, %arg1: i32) -> (i32, i32) {
    %c0_i32 = arith.constant 0 : i32
    %c0_i32_0 = arith.constant 0 : i32
    %c0_i32_1 = arith.constant 0 : i32
    return %c0_i32, %c0_i32_0 : i32, i32
  }
  func.func @transform_4(%arg0: i32, %arg1: i32) -> (i32, i32) {
    %c0_i32 = arith.constant 0 : i32
    %c0_i32_0 = arith.constant 0 : i32
    %c0_i32_1 = arith.constant 0 : i32
    return %c0_i32, %c0_i32_0 : i32, i32
  }
  func.func @transform_5(%arg0: i32, %arg1: i32) -> (i32, i32) {
    %c0_i32 = arith.constant 0 : i32
    %c0_i32_0 = arith.constant 0 : i32
    return %arg0, %c0_i32 : i32, i32
  }
}

</mosaic_0001>

<llo_original>
// kernel: cat_dog_cnn_forward.3
$region0: #{cat_dog_cnn_forward.3}
  #allocation0 [shape = 'u32[]', space=smem, size = 0x4, offset = 0x4, fixed_abs, tag = 'smem constant byte address 0x4 - core index']
  #allocation1 [shape = 'u32[72,128]{1,0:T(1,128)}', space=vmem, size = 0x9000, scoped, tag = 'internal scratch']
  %s0 = inlined_call_operand.vmem [shape: bf16[2,1,1024,27], index: 0, kind: input, shape index: {}]
  %s1 = inlined_call_operand.vmem [shape: bf16[27,16], index: 1, kind: input, shape index: {}]
  %s2 = inlined_call_operand.vmem [shape: f32[1,16], index: 2, kind: input, shape index: {}]
  %s3 = inlined_call_operand.vmem [shape: bf16[2,1,256,16], index: 3, kind: output, shape index: {}]
  %s4 = sld [smem:[#allocation0]]
  $region45: #{cat_dog_cnn_forward.3} parent=0
    _
  %s6 = ssub.s32 1, %s4
  %s7 = scalar_select 0, %s6, %s4
  loop: start=0, step=1, limit=4
  $region2: #{cat_dog_cnn_forward.3} parent=0 // loop_pre_header
    _
  $region3: #{cat_dog_cnn_forward.3} parent=0 // loop_header
    %s9 = sphi 0, %s13
    %p10 = scmp.ge.s32.totalorder %s9, 4
    %s16 = sphi 0, %s28
    %s17 = sphi 0, %s24
    %s18 = sphi 0, %s16
    %s19 = sphi 0, %s17
    %s20 = sphi 0, %s18
    %s21 = sphi 0, %s19
    %s33 = sphi 0, %s35
    %s36 = sphi 0, %s33
    %s37 = sphi 0, %s36
    %s53 = sphi 0, %s37
    %s57 = sphi 0, %s57
    %s59 = sphi 0, %s57
    %s60 = sphi 0, %s59
    %s74 = sphi 0, %s60
    %s78 = sphi 0, %s78
    %s80 = sphi 0, %s78
    %s81 = sphi 0, %s80
    %s95 = sphi 0, %s81
    %s103 = sphi 0, %s105
    %s106 = sphi 0, %s103
    %s107 = sphi 0, %s106
    %s123 = sphi 0, %s107
  $region4: #{cat_dog_cnn_forward.3} parent=0 // loop_header_branch
    %12 = sbr.rel (%p10) target = $region8
  $region5: #{cat_dog_cnn_forward.3} parent=0 // loop_body
    %s14 = ssub.s32 %s9, 1
    %s15 = ssub.s32 %s9, 2
    %s22 = sadd.s32 1, %s17
    %p23 = scmp.ge.s32.totalorder %s22, 1
    %s24 = scalar_select %p23, 0, %s22
    %s25 = sadd.s32 1, %s16
    %s26 = scalar_select %p23, %s25, %s16
    %p27 = scmp.ge.s32.totalorder %s26, 2
    %s28 = scalar_select %p27, 0, %s26
    %s29 = ssub.s32 %s16, %s28
    %s30 = ssub.s32 %s17, %s24
    %s31 = sor.u32 %s29, %s30
    %p32 = scmp.eq.s32.totalorder %s31, 0
    %s34 = sadd.s32 %s33, 1
    %s35 = scalar_select %p32, %s33, %s34
    %p38 = pneg %p32
    %p39 = scmp.eq.s32.totalorder %s9, 1
    %p40 = por %p38, %p39
    %p41 = scmp.ne.s32.totalorder %s33, %s36
    %p42 = scmp.eq.s32.totalorder %s9, 0
    %p43 = por %p41, %p42
    %p44 = scmp.ne.s32.totalorder %s33, %s36
    %p45 = scmp.eq.s32.totalorder %s14, 1
    %p46 = por %p44, %p45
    %p47 = scmp.ne.s32.totalorder %s36, %s37
    %p48 = scmp.eq.s32.totalorder %s14, 0
    %p49 = por %p47, %p48
    %p50 = scmp.ne.s32.totalorder %s36, %s37
    %p51 = scmp.eq.s32.totalorder %s15, 1
    %p52 = por %p50, %p51
    %p54 = scmp.ne.s32.totalorder %s37, %s53
    %p55 = scmp.eq.s32.totalorder %s15, 0
    %p56 = por %p54, %p55
    %s58 = sadd.s32 %s57, 1
    %p61 = scmp.eq.s32.totalorder %s9, 1
    %p62 = scmp.ne.s32.totalorder %s57, %s59
    %p63 = scmp.eq.s32.totalorder %s9, 0
    %p64 = por %p62, %p63
    %p65 = scmp.ne.s32.totalorder %s57, %s59
    %p66 = scmp.eq.s32.totalorder %s14, 1
    %p67 = por %p65, %p66
    %p68 = scmp.ne.s32.totalorder %s59, %s60
    %p69 = scmp.eq.s32.totalorder %s14, 0
    %p70 = por %p68, %p69
    %p71 = scmp.ne.s32.totalorder %s59, %s60
    %p72 = scmp.eq.s32.totalorder %s15, 1
    %p73 = por %p71, %p72
    %p75 = scmp.ne.s32.totalorder %s60, %s74
    %p76 = scmp.eq.s32.totalorder %s15, 0
    %p77 = por %p75, %p76
    %s79 = sadd.s32 %s78, 1
    %p82 = scmp.eq.s32.totalorder %s9, 1
    %p83 = scmp.ne.s32.totalorder %s78, %s80
    %p84 = scmp.eq.s32.totalorder %s9, 0
    %p85 = por %p83, %p84
    %p86 = scmp.ne.s32.totalorder %s78, %s80
    %p87 = scmp.eq.s32.totalorder %s14, 1
    %p88 = por %p86, %p87
    %p89 = scmp.ne.s32.totalorder %s80, %s81
    %p90 = scmp.eq.s32.totalorder %s14, 0
    %p91 = por %p89, %p90
    %p92 = scmp.ne.s32.totalorder %s80, %s81
    %p93 = scmp.eq.s32.totalorder %s15, 1
    %p94 = por %p92, %p93
    %p96 = scmp.ne.s32.totalorder %s81, %s95
    %p97 = scmp.eq.s32.totalorder %s15, 0
    %p98 = por %p96, %p97
    %s99 = ssub.s32 %s16, %s28
    %s100 = ssub.s32 %s17, %s24
    %s101 = sor.u32 %s99, %s100
    %p102 = scmp.eq.s32.totalorder %s101, 0
    %s104 = sadd.s32 %s103, 1
    %s105 = scalar_select %p102, %s103, %s104
    %p108 = pneg %p102
    %p109 = scmp.eq.s32.totalorder %s9, 1
    %p110 = por %p108, %p109
    %p111 = scmp.ne.s32.totalorder %s103, %s106
    %p112 = scmp.eq.s32.totalorder %s9, 0
    %p113 = por %p111, %p112
    %p114 = scmp.ne.s32.totalorder %s103, %s106
    %p115 = scmp.eq.s32.totalorder %s14, 1
    %p116 = por %p114, %p115
    %p117 = scmp.ne.s32.totalorder %s106, %s107
    %p118 = scmp.eq.s32.totalorder %s14, 0
    %p119 = por %p117, %p118
    %p120 = scmp.ne.s32.totalorder %s106, %s107
    %p121 = scmp.eq.s32.totalorder %s15, 1
    %p122 = por %p120, %p121
    %p124 = scmp.ne.s32.totalorder %s107, %s123
    %p125 = scmp.eq.s32.totalorder %s15, 0
    %p126 = por %p124, %p125
    %p127 = scmp.le.s32.totalorder 1, %s9
    %p128 = scmp.lt.s32.totalorder %s9, 3
    %p129 = pnand %p127, %p128
    %p130 = pneg %p129
    // Predicated region
    $region9: #{cat_dog_cnn_forward.3} parent=5 // pred_check
      _
    $region10: #{cat_dog_cnn_forward.3} parent=5 // pred_check_branch
      %132 = sbr.rel (%p129) target = $region12
    $region11: #{cat_dog_cnn_forward.3} parent=5 // pred_region
      %s133 = ssub.s32 %s9, 1
      // Predicated region
      $region13: #{cat_dog_cnn_forward.3} parent=11 // pred_check
        %p134 = pneg %p70
      $region14: #{cat_dog_cnn_forward.3} parent=11 // pred_check_branch
        %136 = sbr.rel (%p134) target = $region16
      $region15: #{cat_dog_cnn_forward.3} parent=11 // pred_region
        _
      $region16: #{cat_dog_cnn_forward.3} parent=11 // pred_fallthru
        _
      // Predicated region
      $region17: #{cat_dog_cnn_forward.3} parent=11 // pred_check
        %p137 = pneg %p91
      $region18: #{cat_dog_cnn_forward.3} parent=11 // pred_check_branch
        %139 = sbr.rel (%p137) target = $region20
      $region19: #{cat_dog_cnn_forward.3} parent=11 // pred_region
        _
      $region20: #{cat_dog_cnn_forward.3} parent=11 // pred_fallthru
        _
    $region12: #{cat_dog_cnn_forward.3} parent=5 // pred_fallthru
      _
    %p140 = scmp.lt.s32.totalorder %s9, 2
    // Predicated region
    $region21: #{cat_dog_cnn_forward.3} parent=5 // pred_check
      %p141 = pneg %p140
    $region22: #{cat_dog_cnn_forward.3} parent=5 // pred_check_branch
      %143 = sbr.rel (%p141) target = $region24
    $region23: #{cat_dog_cnn_forward.3} parent=5 // pred_region
      // Predicated region
      $region25: #{cat_dog_cnn_forward.3} parent=23 // pred_check
        %p144 = pneg %p43
      $region26: #{cat_dog_cnn_forward.3} parent=23 // pred_check_branch
        %146 = sbr.rel (%p144) target = $region28
      $region27: #{cat_dog_cnn_forward.3} parent=23 // pred_region
        %p147 = scmp.lt.s32.totalorder %s16, 1
        %s148 = scalar_select %p147, %s16, 1
        %p149 = scmp.lt.s32.totalorder %s17, 0
        %s150 = scalar_select %p149, %s17, 0
        %s151 = smul.addr %s150, 128
        %s152 = smul.addr %s148, 128
        %s153 = sadd.s32 %s151, %s152
        %s154 = smul.addr %s153, 4
        %s155 = scalar_lea.vmem %s0, %s154
      $region28: #{cat_dog_cnn_forward.3} parent=23 // pred_fallthru
        _
    $region24: #{cat_dog_cnn_forward.3} parent=5 // pred_fallthru
      _
    %p156 = scmp.le.s32.totalorder 1, %s9
    %p157 = scmp.lt.s32.totalorder %s9, 3
    %p158 = pnand %p156, %p157
    %p159 = pneg %p158
    // Predicated region
    $region29: #{cat_dog_cnn_forward.3} parent=5 // pred_check
      _
    $region30: #{cat_dog_cnn_forward.3} parent=5 // pred_check_branch
      %161 = sbr.rel (%p158) target = $region32
    $region31: #{cat_dog_cnn_forward.3} parent=5 // pred_region
      %s162 = ssub.s32 %s9, 1
      %p163 = scmp.lt.s32.totalorder %s18, 1
      %s164 = scalar_select %p163, %s18, 1
      %p165 = scmp.lt.s32.totalorder %s19, 0
      %s166 = scalar_select %p165, %s19, 0
      %s167 = smul.addr %s166, 128
      %s168 = smul.addr %s164, 128
      %s169 = sadd.s32 %s167, %s168
      %s170 = smul.addr %s169, 4
      %s171 = scalar_lea.vmem %s0, %s170
      %p172 = pneg %p49
      %p173 = pneg %p46
      %p174 = pneg %p70
      %p175 = pneg %p67
      %p176 = pneg %p91
      %p177 = pneg %p88
      %p178 = pneg %p119
      %p179 = pneg %p116
      %p180 = scmp.lt.s32.totalorder %s18, 1
      %s181 = scalar_select %p180, %s18, 1
      %p182 = scmp.lt.s32.totalorder %s19, 0
      %s183 = scalar_select %p182, %s19, 0
      %s184 = smul.addr %s183, 32
      %s185 = smul.addr %s181, 32
      %s186 = sadd.s32 %s184, %s185
      %s187 = smul.addr %s186, 4
      %s188 = scalar_lea.vmem %s3, %s187
      %p189 = scmp.lt.s32.totalorder %s18, 1
      %s190 = scalar_select %p189, %s18, 1
      %p191 = scmp.lt.s32.totalorder %s19, 0
      %s192 = scalar_select %p191, %s19, 0
      %s193 = smul.addr %s192, 128
      %s194 = smul.addr %s190, 128
      %s195 = sadd.s32 %s193, %s194
      %s196 = smul.addr %s195, 4
      %s197 = scalar_lea.vmem %s0, %s196
      %p198 = scmp.lt.s32.totalorder %s18, 1
      %s199 = scalar_select %p198, %s18, 1
      %p200 = scmp.lt.s32.totalorder %s19, 0
      %s201 = scalar_select %p200, %s19, 0
      %s202 = smul.addr %s201, 32
      %s203 = smul.addr %s199, 32
      %s204 = sadd.s32 %s202, %s203
      %s205 = smul.addr %s204, 4
      %s206 = scalar_lea.vmem %s3, %s205
      %v208 = vld [vmem:[%s197] sm:$0xf]
      %v209 = vld [vmem:[%s197 + $0x4] sm:$0xf]
      %v210 = vld [vmem:[%s197 + $0x8] sm:$0xf]
      %v211 = vld [vmem:[%s197 + $0xc] sm:$0xf]
      %v212 = vld [vmem:[%s197 + $0x10] sm:$0xf]
      %v213 = vld [vmem:[%s197 + $0x14] sm:$0xf]
      %v214 = vld [vmem:[%s197 + $0x18] sm:$0xf]
      %v215 = vld [vmem:[%s197 + $0x1c] sm:$0xf]
      %v216 = vld [vmem:[%s197 + $0x20] sm:$0xf]
      %v217 = vld [vmem:[%s197 + $0x24] sm:$0xf]
      %v218 = vld [vmem:[%s197 + $0x28] sm:$0xf]
      %v219 = vld [vmem:[%s197 + $0x2c] sm:$0xf]
      %v220 = vld [vmem:[%s197 + $0x30] sm:$0xf]
      %v221 = vld [vmem:[%s197 + $0x34] sm:$0xf]
      %v222 = vld [vmem:[%s197 + $0x38] sm:$0xf]
      %v223 = vld [vmem:[%s197 + $0x3c] sm:$0xf]
      %v224 = vld [vmem:[%s197 + $0x40] sm:$0xf]
      %v225 = vld [vmem:[%s197 + $0x44] sm:$0xf]
      %v226 = vld [vmem:[%s197 + $0x48] sm:$0xf]
      %v227 = vld [vmem:[%s197 + $0x4c] sm:$0xf]
      %v228 = vld [vmem:[%s197 + $0x50] sm:$0xf]
      %v229 = vld [vmem:[%s197 + $0x54] sm:$0xf]
      %v230 = vld [vmem:[%s197 + $0x58] sm:$0xf]
      %v231 = vld [vmem:[%s197 + $0x5c] sm:$0xf]
      %v232 = vld [vmem:[%s197 + $0x60] sm:$0xf]
      %v233 = vld [vmem:[%s197 + $0x64] sm:$0xf]
      %v234 = vld [vmem:[%s197 + $0x68] sm:$0xf]
      %v235 = vld [vmem:[%s197 + $0x6c] sm:$0xf]
      %v236 = vld [vmem:[%s197 + $0x70] sm:$0xf]
      %v237 = vld [vmem:[%s197 + $0x74] sm:$0xf]
      %v238 = vld [vmem:[%s197 + $0x78] sm:$0xf]
      %v239 = vld [vmem:[%s197 + $0x7c] sm:$0xf]
      %v240 = vld [vmem:[%s197 + $0x80] sm:$0xf]
      %v241 = vld [vmem:[%s197 + $0x84] sm:$0xf]
      %v242 = vld [vmem:[%s197 + $0x88] sm:$0xf]
      %v243 = vld [vmem:[%s197 + $0x8c] sm:$0xf]
      %v244 = vld [vmem:[%s197 + $0x90] sm:$0xf]
      %v245 = vld [vmem:[%s197 + $0x94] sm:$0xf]
      %v246 = vld [vmem:[%s197 + $0x98] sm:$0xf]
      %v247 = vld [vmem:[%s197 + $0x9c] sm:$0xf]
      %v248 = vld [vmem:[%s197 + $0xa0] sm:$0xf]
      %v249 = vld [vmem:[%s197 + $0xa4] sm:$0xf]
      %v250 = vld [vmem:[%s197 + $0xa8] sm:$0xf]
      %v251 = vld [vmem:[%s197 + $0xac] sm:$0xf]
      %v252 = vld [vmem:[%s197 + $0xb0] sm:$0xf]
      %v253 = vld [vmem:[%s197 + $0xb4] sm:$0xf]
      %v254 = vld [vmem:[%s197 + $0xb8] sm:$0xf]
      %v255 = vld [vmem:[%s197 + $0xbc] sm:$0xf]
      %v256 = vld [vmem:[%s197 + $0xc0] sm:$0xf]
      %v257 = vld [vmem:[%s197 + $0xc4] sm:$0xf]
      %v258 = vld [vmem:[%s197 + $0xc8] sm:$0xf]
      %v259 = vld [vmem:[%s197 + $0xcc] sm:$0xf]
      %v260 = vld [vmem:[%s197 + $0xd0] sm:$0xf]
      %v261 = vld [vmem:[%s197 + $0xd4] sm:$0xf]
      %v262 = vld [vmem:[%s197 + $0xd8] sm:$0xf]
      %v263 = vld [vmem:[%s197 + $0xdc] sm:$0xf]
      %v264 = vld [vmem:[%s197 + $0xe0] sm:$0xf]
      %v265 = vld [vmem:[%s197 + $0xe4] sm:$0xf]
      %v266 = vld [vmem:[%s197 + $0xe8] sm:$0xf]
      %v267 = vld [vmem:[%s197 + $0xec] sm:$0xf]
      %v268 = vld [vmem:[%s197 + $0xf0] sm:$0xf]
      %v269 = vld [vmem:[%s197 + $0xf4] sm:$0xf]
      %v270 = vld [vmem:[%s197 + $0xf8] sm:$0xf]
      %v271 = vld [vmem:[%s197 + $0xfc] sm:$0xf]
      %v272 = vld [vmem:[%s197 + $0x100] sm:$0xf]
      %v273 = vld [vmem:[%s197 + $0x104] sm:$0xf]
      %v274 = vld [vmem:[%s197 + $0x108] sm:$0xf]
      %v275 = vld [vmem:[%s197 + $0x10c] sm:$0xf]
      %v276 = vld [vmem:[%s197 + $0x110] sm:$0xf]
      %v277 = vld [vmem:[%s197 + $0x114] sm:$0xf]
      %v278 = vld [vmem:[%s197 + $0x118] sm:$0xf]
      %v279 = vld [vmem:[%s197 + $0x11c] sm:$0xf]
      %v280 = vld [vmem:[%s197 + $0x120] sm:$0xf]
      %v281 = vld [vmem:[%s197 + $0x124] sm:$0xf]
      %v282 = vld [vmem:[%s197 + $0x128] sm:$0xf]
      %v283 = vld [vmem:[%s197 + $0x12c] sm:$0xf]
      %v284 = vld [vmem:[%s197 + $0x130] sm:$0xf]
      %v285 = vld [vmem:[%s197 + $0x134] sm:$0xf]
      %v286 = vld [vmem:[%s197 + $0x138] sm:$0xf]
      %v287 = vld [vmem:[%s197 + $0x13c] sm:$0xf]
      %v288 = vld [vmem:[%s197 + $0x140] sm:$0xf]
      %v289 = vld [vmem:[%s197 + $0x144] sm:$0xf]
      %v290 = vld [vmem:[%s197 + $0x148] sm:$0xf]
      %v291 = vld [vmem:[%s197 + $0x14c] sm:$0xf]
      %v292 = vld [vmem:[%s197 + $0x150] sm:$0xf]
      %v293 = vld [vmem:[%s197 + $0x154] sm:$0xf]
      %v294 = vld [vmem:[%s197 + $0x158] sm:$0xf]
      %v295 = vld [vmem:[%s197 + $0x15c] sm:$0xf]
      %v296 = vld [vmem:[%s197 + $0x160] sm:$0xf]
      %v297 = vld [vmem:[%s197 + $0x164] sm:$0xf]
      %v298 = vld [vmem:[%s197 + $0x168] sm:$0xf]
      %v299 = vld [vmem:[%s197 + $0x16c] sm:$0xf]
      %v300 = vld [vmem:[%s197 + $0x170] sm:$0xf]
      %v301 = vld [vmem:[%s197 + $0x174] sm:$0xf]
      %v302 = vld [vmem:[%s197 + $0x178] sm:$0xf]
      %v303 = vld [vmem:[%s197 + $0x17c] sm:$0xf]
      %v304 = vld [vmem:[%s197 + $0x180] sm:$0xf]
      %v305 = vld [vmem:[%s197 + $0x184] sm:$0xf]
      %v306 = vld [vmem:[%s197 + $0x188] sm:$0xf]
      %v307 = vld [vmem:[%s197 + $0x18c] sm:$0xf]
      %v308 = vld [vmem:[%s197 + $0x190] sm:$0xf]
      %v309 = vld [vmem:[%s197 + $0x194] sm:$0xf]
      %v310 = vld [vmem:[%s197 + $0x198] sm:$0xf]
      %v311 = vld [vmem:[%s197 + $0x19c] sm:$0xf]
      %v312 = vld [vmem:[%s197 + $0x1a0] sm:$0xf]
      %v313 = vld [vmem:[%s197 + $0x1a4] sm:$0xf]
      %v314 = vld [vmem:[%s197 + $0x1a8] sm:$0xf]
      %v315 = vld [vmem:[%s197 + $0x1ac] sm:$0xf]
      %v316 = vld [vmem:[%s197 + $0x1b0] sm:$0xf]
      %v317 = vld [vmem:[%s197 + $0x1b4] sm:$0xf]
      %v318 = vld [vmem:[%s197 + $0x1b8] sm:$0xf]
      %v319 = vld [vmem:[%s197 + $0x1bc] sm:$0xf]
      %v320 = vld [vmem:[%s197 + $0x1c0] sm:$0xf]
      %v321 = vld [vmem:[%s197 + $0x1c4] sm:$0xf]
      %v322 = vld [vmem:[%s197 + $0x1c8] sm:$0xf]
      %v323 = vld [vmem:[%s197 + $0x1cc] sm:$0xf]
      %v324 = vld [vmem:[%s197 + $0x1d0] sm:$0xf]
      %v325 = vld [vmem:[%s197 + $0x1d4] sm:$0xf]
      %v326 = vld [vmem:[%s197 + $0x1d8] sm:$0xf]
      %v327 = vld [vmem:[%s197 + $0x1dc] sm:$0xf]
      %v328 = vld [vmem:[%s197 + $0x1e0] sm:$0xf]
      %v329 = vld [vmem:[%s197 + $0x1e4] sm:$0xf]
      %v330 = vld [vmem:[%s197 + $0x1e8] sm:$0xf]
      %v331 = vld [vmem:[%s197 + $0x1ec] sm:$0xf]
      %v332 = vld [vmem:[%s197 + $0x1f0] sm:$0xf]
      %v333 = vld [vmem:[%s197 + $0x1f4] sm:$0xf]
      %v334 = vld [vmem:[%s197 + $0x1f8] sm:$0xf]
      %v335 = vld [vmem:[%s197 + $0x1fc] sm:$0xf]
      %v336 = vld [vmem:[%s1] sm:$0xf]
      %v337 = vld [vmem:[%s1 + $0x4] sm:$0xf]
      %v338 = vld [vmem:[%s1 + $0x8] sm:$0xf]
      %v339 = vld [vmem:[%s1 + $0xc] sm:$0x3]
      %v340 = vld [vmem:[%s2] sm:$0x1]
      %v342 = vperm.slane %v340, 0
      %v472 = vunpack.c.l.b16 %v208
      %v473 = vunpack.c.l.b16 %v209
      %v474 = vunpack.c.l.b16 %v210
      %v475 = vunpack.c.l.b16 %v211
      %v476 = vunpack.c.l.b16 %v212
      %v477 = vunpack.c.l.b16 %v213
      %v478 = vunpack.c.l.b16 %v214
      %v479 = vunpack.c.l.b16 %v215
      %v480 = vunpack.c.l.b16 %v216
      %v481 = vunpack.c.l.b16 %v217
      %v482 = vunpack.c.l.b16 %v218
      %v483 = vunpack.c.l.b16 %v219
      %v484 = vunpack.c.l.b16 %v220
      %v485 = vunpack.c.l.b16 %v221
      %v486 = vunpack.c.l.b16 %v222
      %v487 = vunpack.c.l.b16 %v223
      %v488 = vunpack.c.l.b16 %v224
      %v489 = vunpack.c.l.b16 %v225
      %v490 = vunpack.c.l.b16 %v226
      %v491 = vunpack.c.l.b16 %v227
      %v492 = vunpack.c.l.b16 %v228
      %v493 = vunpack.c.l.b16 %v229
      %v494 = vunpack.c.l.b16 %v230
      %v495 = vunpack.c.l.b16 %v231
      %v496 = vunpack.c.l.b16 %v232
      %v497 = vunpack.c.l.b16 %v233
      %v498 = vunpack.c.l.b16 %v234
      %v499 = vunpack.c.l.b16 %v235
      %v500 = vunpack.c.l.b16 %v236
      %v501 = vunpack.c.l.b16 %v237
      %v502 = vunpack.c.l.b16 %v238
      %v503 = vunpack.c.l.b16 %v239
      %v504 = vunpack.c.l.b16 %v240
      %v505 = vunpack.c.l.b16 %v241
      %v506 = vunpack.c.l.b16 %v242
      %v507 = vunpack.c.l.b16 %v243
      %v508 = vunpack.c.l.b16 %v244
      %v509 = vunpack.c.l.b16 %v245
      %v510 = vunpack.c.l.b16 %v246
      %v511 = vunpack.c.l.b16 %v247
      %v512 = vunpack.c.l.b16 %v248
      %v513 = vunpack.c.l.b16 %v249
      %v514 = vunpack.c.l.b16 %v250
      %v515 = vunpack.c.l.b16 %v251
      %v516 = vunpack.c.l.b16 %v252
      %v517 = vunpack.c.l.b16 %v253
      %v518 = vunpack.c.l.b16 %v254
      %v519 = vunpack.c.l.b16 %v255
      %v520 = vunpack.c.l.b16 %v256
      %v521 = vunpack.c.l.b16 %v257
      %v522 = vunpack.c.l.b16 %v258
      %v523 = vunpack.c.l.b16 %v259
      %v524 = vunpack.c.l.b16 %v260
      %v525 = vunpack.c.l.b16 %v261
      %v526 = vunpack.c.l.b16 %v262
      %v527 = vunpack.c.l.b16 %v263
      %v528 = vunpack.c.l.b16 %v264
      %v529 = vunpack.c.l.b16 %v265
      %v530 = vunpack.c.l.b16 %v266
      %v531 = vunpack.c.l.b16 %v267
      %v532 = vunpack.c.l.b16 %v268
      %v533 = vunpack.c.l.b16 %v269
      %v534 = vunpack.c.l.b16 %v270
      %v535 = vunpack.c.l.b16 %v271
      %v536 = vunpack.c.l.b16 %v272
      %v537 = vunpack.c.l.b16 %v273
      %v538 = vunpack.c.l.b16 %v274
      %v539 = vunpack.c.l.b16 %v275
      %v540 = vunpack.c.l.b16 %v276
      %v541 = vunpack.c.l.b16 %v277
      %v542 = vunpack.c.l.b16 %v278
      %v543 = vunpack.c.l.b16 %v279
      %v544 = vunpack.c.l.b16 %v280
      %v545 = vunpack.c.l.b16 %v281
      %v546 = vunpack.c.l.b16 %v282
      %v547 = vunpack.c.l.b16 %v283
      %v548 = vunpack.c.l.b16 %v284
      %v549 = vunpack.c.l.b16 %v285
      %v550 = vunpack.c.l.b16 %v286
      %v551 = vunpack.c.l.b16 %v287
      %v552 = vunpack.c.l.b16 %v288
      %v553 = vunpack.c.l.b16 %v289
      %v554 = vunpack.c.l.b16 %v290
      %v555 = vunpack.c.l.b16 %v291
      %v556 = vunpack.c.l.b16 %v292
      %v557 = vunpack.c.l.b16 %v293
      %v558 = vunpack.c.l.b16 %v294
      %v559 = vunpack.c.l.b16 %v295
      %v560 = vunpack.c.l.b16 %v296
      %v561 = vunpack.c.l.b16 %v297
      %v562 = vunpack.c.l.b16 %v298
      %v563 = vunpack.c.l.b16 %v299
      %v564 = vunpack.c.l.b16 %v300
      %v565 = vunpack.c.l.b16 %v301
      %v566 = vunpack.c.l.b16 %v302
      %v567 = vunpack.c.l.b16 %v303
      %v568 = vunpack.c.l.b16 %v304
      %v569 = vunpack.c.l.b16 %v305
      %v570 = vunpack.c.l.b16 %v306
      %v571 = vunpack.c.l.b16 %v307
      %v572 = vunpack.c.l.b16 %v308
      %v573 = vunpack.c.l.b16 %v309
      %v574 = vunpack.c.l.b16 %v310
      %v575 = vunpack.c.l.b16 %v311
      %v576 = vunpack.c.l.b16 %v312
      %v577 = vunpack.c.l.b16 %v313
      %v578 = vunpack.c.l.b16 %v314
      %v579 = vunpack.c.l.b16 %v315
      %v580 = vunpack.c.l.b16 %v316
      %v581 = vunpack.c.l.b16 %v317
      %v582 = vunpack.c.l.b16 %v318
      %v583 = vunpack.c.l.b16 %v319
      %v584 = vunpack.c.l.b16 %v320
      %v585 = vunpack.c.l.b16 %v321
      %v586 = vunpack.c.l.b16 %v322
      %v587 = vunpack.c.l.b16 %v323
      %v588 = vunpack.c.l.b16 %v324
      %v589 = vunpack.c.l.b16 %v325
      %v590 = vunpack.c.l.b16 %v326
      %v591 = vunpack.c.l.b16 %v327
      %v592 = vunpack.c.l.b16 %v328
      %v593 = vunpack.c.l.b16 %v329
      %v594 = vunpack.c.l.b16 %v330
      %v595 = vunpack.c.l.b16 %v331
      %v596 = vunpack.c.l.b16 %v332
      %v597 = vunpack.c.l.b16 %v333
      %v598 = vunpack.c.l.b16 %v334
      %v599 = vunpack.c.l.b16 %v335
      %v600 = vpack.c.b16 %v473, %v472
      %v601 = vpack.c.b16 %v475, %v474
      %v602 = vpack.c.b16 %v477, %v476
      %v603 = vpack.c.b16 %v479, %v478
      %v604 = vpack.c.b16 %v481, %v480
      %v605 = vpack.c.b16 %v483, %v482
      %v606 = vpack.c.b16 %v485, %v484
      %v607 = vpack.c.b16 %v487, %v486
      %v608 = vpack.c.b16 %v489, %v488
      %v609 = vpack.c.b16 %v491, %v490
      %v610 = vpack.c.b16 %v493, %v492
      %v611 = vpack.c.b16 %v495, %v494
      %v612 = vpack.c.b16 %v497, %v496
      %v613 = vpack.c.b16 %v499, %v498
      %v614 = vpack.c.b16 %v501, %v500
      %v615 = vpack.c.b16 %v503, %v502
      %v616 = vpack.c.b16 %v505, %v504
      %v617 = vpack.c.b16 %v507, %v506
      %v618 = vpack.c.b16 %v509, %v508
      %v619 = vpack.c.b16 %v511, %v510
      %v620 = vpack.c.b16 %v513, %v512
      %v621 = vpack.c.b16 %v515, %v514
      %v622 = vpack.c.b16 %v517, %v516
      %v623 = vpack.c.b16 %v519, %v518
      %v624 = vpack.c.b16 %v521, %v520
      %v625 = vpack.c.b16 %v523, %v522
      %v626 = vpack.c.b16 %v525, %v524
      %v627 = vpack.c.b16 %v527, %v526
      %v628 = vpack.c.b16 %v529, %v528
      %v629 = vpack.c.b16 %v531, %v530
      %v630 = vpack.c.b16 %v533, %v532
      %v631 = vpack.c.b16 %v535, %v534
      %v632 = vpack.c.b16 %v537, %v536
      %v633 = vpack.c.b16 %v539, %v538
      %v634 = vpack.c.b16 %v541, %v540
      %v635 = vpack.c.b16 %v543, %v542
      %v636 = vpack.c.b16 %v545, %v544
      %v637 = vpack.c.b16 %v547, %v546
      %v638 = vpack.c.b16 %v549, %v548
      %v639 = vpack.c.b16 %v551, %v550
      %v640 = vpack.c.b16 %v553, %v552
      %v641 = vpack.c.b16 %v555, %v554
      %v642 = vpack.c.b16 %v557, %v556
      %v643 = vpack.c.b16 %v559, %v558
      %v644 = vpack.c.b16 %v561, %v560
      %v645 = vpack.c.b16 %v563, %v562
      %v646 = vpack.c.b16 %v565, %v564
      %v647 = vpack.c.b16 %v567, %v566
      %v648 = vpack.c.b16 %v569, %v568
      %v649 = vpack.c.b16 %v571, %v570
      %v650 = vpack.c.b16 %v573, %v572
      %v651 = vpack.c.b16 %v575, %v574
      %v652 = vpack.c.b16 %v577, %v576
      %v653 = vpack.c.b16 %v579, %v578
      %v654 = vpack.c.b16 %v581, %v580
      %v655 = vpack.c.b16 %v583, %v582
      %v656 = vpack.c.b16 %v585, %v584
      %v657 = vpack.c.b16 %v587, %v586
      %v658 = vpack.c.b16 %v589, %v588
      %v659 = vpack.c.b16 %v591, %v590
      %v660 = vpack.c.b16 %v593, %v592
      %v661 = vpack.c.b16 %v595, %v594
      %v662 = vpack.c.b16 %v597, %v596
      %v663 = vpack.c.b16 %v599, %v598
      %v668 = vunpack.c.l.b16 %v336
      %v669 = vunpack.c.l.b16 %v337
      %v670 = vunpack.c.l.b16 %v338
      %v671 = vunpack.c.l.b16 %v339
      %v672 = vpack.c.b16 %v669, %v668
      %v673 = vpack.c.b16 %v671, %v670
      %vm675 = vcmask 220160
      %v677 = vsel %vm675, %v600, 0
      %v680 = vsel %vm675, %v601, 0
      %v683 = vsel %vm675, %v602, 0
      %v686 = vsel %vm675, %v603, 0
      %v689 = vsel %vm675, %v604, 0
      %v692 = vsel %vm675, %v605, 0
      %v695 = vsel %vm675, %v606, 0
      %v698 = vsel %vm675, %v607, 0
      %v701 = vsel %vm675, %v608, 0
      %v704 = vsel %vm675, %v609, 0
      %v707 = vsel %vm675, %v610, 0
      %v710 = vsel %vm675, %v611, 0
      %v713 = vsel %vm675, %v612, 0
      %v716 = vsel %vm675, %v613, 0
      %v719 = vsel %vm675, %v614, 0
      %v722 = vsel %vm675, %v615, 0
      %v725 = vsel %vm675, %v616, 0
      %v728 = vsel %vm675, %v617, 0
      %v731 = vsel %vm675, %v618, 0
      %v734 = vsel %vm675, %v619, 0
      %v737 = vsel %vm675, %v620, 0
      %v740 = vsel %vm675, %v621, 0
      %v743 = vsel %vm675, %v622, 0
      %v746 = vsel %vm675, %v623, 0
      %v749 = vsel %vm675, %v624, 0
      %v752 = vsel %vm675, %v625, 0
      %v755 = vsel %vm675, %v626, 0
      %v758 = vsel %vm675, %v627, 0
      %v761 = vsel %vm675, %v628, 0
      %v764 = vsel %vm675, %v629, 0
      %v767 = vsel %vm675, %v630, 0
      %v770 = vsel %vm675, %v631, 0
      %v773 = vsel %vm675, %v632, 0
      %v776 = vsel %vm675, %v633, 0
      %v779 = vsel %vm675, %v634, 0
      %v782 = vsel %vm675, %v635, 0
      %v785 = vsel %vm675, %v636, 0
      %v788 = vsel %vm675, %v637, 0
      %v791 = vsel %vm675, %v638, 0
      %v794 = vsel %vm675, %v639, 0
      %v797 = vsel %vm675, %v640, 0
      %v800 = vsel %vm675, %v641, 0
      %v803 = vsel %vm675, %v642, 0
      %v806 = vsel %vm675, %v643, 0
      %v809 = vsel %vm675, %v644, 0
      %v812 = vsel %vm675, %v645, 0
      %v815 = vsel %vm675, %v646, 0
      %v818 = vsel %vm675, %v647, 0
      %v821 = vsel %vm675, %v648, 0
      %v824 = vsel %vm675, %v649, 0
      %v827 = vsel %vm675, %v650, 0
      %v830 = vsel %vm675, %v651, 0
      %v833 = vsel %vm675, %v652, 0
      %v836 = vsel %vm675, %v653, 0
      %v839 = vsel %vm675, %v654, 0
      %v842 = vsel %vm675, %v655, 0
      %v845 = vsel %vm675, %v656, 0
      %v848 = vsel %vm675, %v657, 0
      %v851 = vsel %vm675, %v658, 0
      %v854 = vsel %vm675, %v659, 0
      %v857 = vsel %vm675, %v660, 0
      %v860 = vsel %vm675, %v661, 0
      %v863 = vsel %vm675, %v662, 0
      %v866 = vsel %vm675, %v663, 0
      %vm868 = vcmask 1044480
      %vm869 = vcmask 1045504
      %v870 = vsel %vm868, 4294967295, 65535
      %v871 = vsel %vm869, %v870, 0
      %v873 = vand.u32 %v673, %v871
      %875 = vmatpush.bf16.msra.mxu0 0
      %876 = vmatpush.bf16.msra.mxu0 0
      %877 = vmatpush.bf16.msra.mxu0 0
      %878 = vmatpush.bf16.msra.mxu0 0
      %879 = vmatpush.bf16.msra.mxu0 0
      %880 = vmatpush.bf16.msra.mxu0 0
      %881 = vmatpush.bf16.msra.mxu0 %v873
      %882 = vmatpush.bf16.msra.mxu0 %v672
      %883 = vmatmul.bf16.gmra.mxu0 %v677
      %v884 = vpop.f32.mrf.mxu0
      %v885 = vadd.f32 %v342, %v884
      %v886 = vpop.f32.mrf.mxu0
      %v887 = vadd.f32 %v342, %v886
      %888 = vmatmul.bf16.gmra.mxu0 %v680
      %v889 = vpop.f32.mrf.mxu0
      %v890 = vadd.f32 %v342, %v889
      %v891 = vpop.f32.mrf.mxu0
      %v892 = vadd.f32 %v342, %v891
      %893 = vmatmul.bf16.gmra.mxu0 %v683
      %v894 = vpop.f32.mrf.mxu0
      %v895 = vadd.f32 %v342, %v894
      %v896 = vpop.f32.mrf.mxu0
      %v897 = vadd.f32 %v342, %v896
      %898 = vmatmul.bf16.gmra.mxu0 %v686
      %v899 = vpop.f32.mrf.mxu0
      %v900 = vadd.f32 %v342, %v899
      %v901 = vpop.f32.mrf.mxu0
      %v902 = vadd.f32 %v342, %v901
      %903 = vmatmul.bf16.gmra.mxu0 %v689
      %v904 = vpop.f32.mrf.mxu0
      %v905 = vadd.f32 %v342, %v904
      %v906 = vpop.f32.mrf.mxu0
      %v907 = vadd.f32 %v342, %v906
      %908 = vmatmul.bf16.gmra.mxu0 %v692
      %v909 = vpop.f32.mrf.mxu0
      %v910 = vadd.f32 %v342, %v909
      %v911 = vpop.f32.mrf.mxu0
      %v912 = vadd.f32 %v342, %v911
      %913 = vmatmul.bf16.gmra.mxu0 %v695
      %v914 = vpop.f32.mrf.mxu0
      %v915 = vadd.f32 %v342, %v914
      %v916 = vpop.f32.mrf.mxu0
      %v917 = vadd.f32 %v342, %v916
      %918 = vmatmul.bf16.gmra.mxu0 %v698
      %v919 = vpop.f32.mrf.mxu0
      %v920 = vadd.f32 %v342, %v919
      %v921 = vpop.f32.mrf.mxu0
      %v922 = vadd.f32 %v342, %v921
      %923 = vmatmul.bf16.gmra.mxu0 %v701
      %v924 = vpop.f32.mrf.mxu0
      %v925 = vadd.f32 %v342, %v924
      %v926 = vpop.f32.mrf.mxu0
      %v927 = vadd.f32 %v342, %v926
      %928 = vmatmul.bf16.gmra.mxu0 %v704
      %v929 = vpop.f32.mrf.mxu0
      %v930 = vadd.f32 %v342, %v929
      %v931 = vpop.f32.mrf.mxu0
      %v932 = vadd.f32 %v342, %v931
      %933 = vmatmul.bf16.gmra.mxu0 %v707
      %v934 = vpop.f32.mrf.mxu0
      %v935 = vadd.f32 %v342, %v934
      %v936 = vpop.f32.mrf.mxu0
      %v937 = vadd.f32 %v342, %v936
      %938 = vmatmul.bf16.gmra.mxu0 %v710
      %v939 = vpop.f32.mrf.mxu0
      %v940 = vadd.f32 %v342, %v939
      %v941 = vpop.f32.mrf.mxu0
      %v942 = vadd.f32 %v342, %v941
      %943 = vmatmul.bf16.gmra.mxu0 %v713
      %v944 = vpop.f32.mrf.mxu0
      %v945 = vadd.f32 %v342, %v944
      %v946 = vpop.f32.mrf.mxu0
      %v947 = vadd.f32 %v342, %v946
      %948 = vmatmul.bf16.gmra.mxu0 %v716
      %v949 = vpop.f32.mrf.mxu0
      %v950 = vadd.f32 %v342, %v949
      %v951 = vpop.f32.mrf.mxu0
      %v952 = vadd.f32 %v342, %v951
      %953 = vmatmul.bf16.gmra.mxu0 %v719
      %v954 = vpop.f32.mrf.mxu0
      %v955 = vadd.f32 %v342, %v954
      %v956 = vpop.f32.mrf.mxu0
      %v957 = vadd.f32 %v342, %v956
      %958 = vmatmul.bf16.gmra.mxu0 %v722
      %v959 = vpop.f32.mrf.mxu0
      %v960 = vadd.f32 %v342, %v959
      %v961 = vpop.f32.mrf.mxu0
      %v962 = vadd.f32 %v342, %v961
      %963 = vmatmul.bf16.gmra.mxu0 %v725
      %v964 = vpop.f32.mrf.mxu0
      %v965 = vadd.f32 %v342, %v964
      %v966 = vpop.f32.mrf.mxu0
      %v967 = vadd.f32 %v342, %v966
      %968 = vmatmul.bf16.gmra.mxu0 %v728
      %v969 = vpop.f32.mrf.mxu0
      %v970 = vadd.f32 %v342, %v969
      %v971 = vpop.f32.mrf.mxu0
      %v972 = vadd.f32 %v342, %v971
      %973 = vmatmul.bf16.gmra.mxu0 %v731
      %v974 = vpop.f32.mrf.mxu0
      %v975 = vadd.f32 %v342, %v974
      %v976 = vpop.f32.mrf.mxu0
      %v977 = vadd.f32 %v342, %v976
      %978 = vmatmul.bf16.gmra.mxu0 %v734
      %v979 = vpop.f32.mrf.mxu0
      %v980 = vadd.f32 %v342, %v979
      %v981 = vpop.f32.mrf.mxu0
      %v982 = vadd.f32 %v342, %v981
      %983 = vmatmul.bf16.gmra.mxu0 %v737
      %v984 = vpop.f32.mrf.mxu0
      %v985 = vadd.f32 %v342, %v984
      %v986 = vpop.f32.mrf.mxu0
      %v987 = vadd.f32 %v342, %v986
      %988 = vmatmul.bf16.gmra.mxu0 %v740
      %v989 = vpop.f32.mrf.mxu0
      %v990 = vadd.f32 %v342, %v989
      %v991 = vpop.f32.mrf.mxu0
      %v992 = vadd.f32 %v342, %v991
      %993 = vmatmul.bf16.gmra.mxu0 %v743
      %v994 = vpop.f32.mrf.mxu0
      %v995 = vadd.f32 %v342, %v994
      %v996 = vpop.f32.mrf.mxu0
      %v997 = vadd.f32 %v342, %v996
      %998 = vmatmul.bf16.gmra.mxu0 %v746
      %v999 = vpop.f32.mrf.mxu0
      %v1000 = vadd.f32 %v342, %v999
      %v1001 = vpop.f32.mrf.mxu0
      %v1002 = vadd.f32 %v342, %v1001
      %1003 = vmatmul.bf16.gmra.mxu0 %v749
      %v1004 = vpop.f32.mrf.mxu0
      %v1005 = vadd.f32 %v342, %v1004
      %v1006 = vpop.f32.mrf.mxu0
      %v1007 = vadd.f32 %v342, %v1006
      %1008 = vmatmul.bf16.gmra.mxu0 %v752
      %v1009 = vpop.f32.mrf.mxu0
      %v1010 = vadd.f32 %v342, %v1009
      %v1011 = vpop.f32.mrf.mxu0
      %v1012 = vadd.f32 %v342, %v1011
      %1013 = vmatmul.bf16.gmra.mxu0 %v755
      %v1014 = vpop.f32.mrf.mxu0
      %v1015 = vadd.f32 %v342, %v1014
      %v1016 = vpop.f32.mrf.mxu0
      %v1017 = vadd.f32 %v342, %v1016
      %1018 = vmatmul.bf16.gmra.mxu0 %v758
      %v1019 = vpop.f32.mrf.mxu0
      %v1020 = vadd.f32 %v342, %v1019
      %v1021 = vpop.f32.mrf.mxu0
      %v1022 = vadd.f32 %v342, %v1021
      %1023 = vmatmul.bf16.gmra.mxu0 %v761
      %v1024 = vpop.f32.mrf.mxu0
      %v1025 = vadd.f32 %v342, %v1024
      %v1026 = vpop.f32.mrf.mxu0
      %v1027 = vadd.f32 %v342, %v1026
      %1028 = vmatmul.bf16.gmra.mxu0 %v764
      %v1029 = vpop.f32.mrf.mxu0
      %v1030 = vadd.f32 %v342, %v1029
      %v1031 = vpop.f32.mrf.mxu0
      %v1032 = vadd.f32 %v342, %v1031
      %1033 = vmatmul.bf16.gmra.mxu0 %v767
      %v1034 = vpop.f32.mrf.mxu0
      %v1035 = vadd.f32 %v342, %v1034
      %v1036 = vpop.f32.mrf.mxu0
      %v1037 = vadd.f32 %v342, %v1036
      %1038 = vmatmul.bf16.gmra.mxu0 %v770
      %v1039 = vpop.f32.mrf.mxu0
      %v1040 = vadd.f32 %v342, %v1039
      %v1041 = vpop.f32.mrf.mxu0
      %v1042 = vadd.f32 %v342, %v1041
      %1043 = vmatmul.bf16.gmra.mxu0 %v773
      %v1044 = vpop.f32.mrf.mxu0
      %v1045 = vadd.f32 %v342, %v1044
      %v1046 = vpop.f32.mrf.mxu0
      %v1047 = vadd.f32 %v342, %v1046
      %1048 = vmatmul.bf16.gmra.mxu0 %v776
      %v1049 = vpop.f32.mrf.mxu0
      %v1050 = vadd.f32 %v342, %v1049
      %v1051 = vpop.f32.mrf.mxu0
      %v1052 = vadd.f32 %v342, %v1051
      %1053 = vmatmul.bf16.gmra.mxu0 %v779
      %v1054 = vpop.f32.mrf.mxu0
      %v1055 = vadd.f32 %v342, %v1054
      %v1056 = vpop.f32.mrf.mxu0
      %v1057 = vadd.f32 %v342, %v1056
      %1058 = vmatmul.bf16.gmra.mxu0 %v782
      %v1059 = vpop.f32.mrf.mxu0
      %v1060 = vadd.f32 %v342, %v1059
      %v1061 = vpop.f32.mrf.mxu0
      %v1062 = vadd.f32 %v342, %v1061
      %1063 = vmatmul.bf16.gmra.mxu0 %v785
      %v1064 = vpop.f32.mrf.mxu0
      %v1065 = vadd.f32 %v342, %v1064
      %v1066 = vpop.f32.mrf.mxu0
      %v1067 = vadd.f32 %v342, %v1066
      %1068 = vmatmul.bf16.gmra.mxu0 %v788
      %v1069 = vpop.f32.mrf.mxu0
      %v1070 = vadd.f32 %v342, %v1069
      %v1071 = vpop.f32.mrf.mxu0
      %v1072 = vadd.f32 %v342, %v1071
      %1073 = vmatmul.bf16.gmra.mxu0 %v791
      %v1074 = vpop.f32.mrf.mxu0
      %v1075 = vadd.f32 %v342, %v1074
      %v1076 = vpop.f32.mrf.mxu0
      %v1077 = vadd.f32 %v342, %v1076
      %1078 = vmatmul.bf16.gmra.mxu0 %v794
      %v1079 = vpop.f32.mrf.mxu0
      %v1080 = vadd.f32 %v342, %v1079
      %v1081 = vpop.f32.mrf.mxu0
      %v1082 = vadd.f32 %v342, %v1081
      %1083 = vmatmul.bf16.gmra.mxu0 %v797
      %v1084 = vpop.f32.mrf.mxu0
      %v1085 = vadd.f32 %v342, %v1084
      %v1086 = vpop.f32.mrf.mxu0
      %v1087 = vadd.f32 %v342, %v1086
      %1088 = vmatmul.bf16.gmra.mxu0 %v800
      %v1089 = vpop.f32.mrf.mxu0
      %v1090 = vadd.f32 %v342, %v1089
      %v1091 = vpop.f32.mrf.mxu0
      %v1092 = vadd.f32 %v342, %v1091
      %1093 = vmatmul.bf16.gmra.mxu0 %v803
      %v1094 = vpop.f32.mrf.mxu0
      %v1095 = vadd.f32 %v342, %v1094
      %v1096 = vpop.f32.mrf.mxu0
      %v1097 = vadd.f32 %v342, %v1096
      %1098 = vmatmul.bf16.gmra.mxu0 %v806
      %v1099 = vpop.f32.mrf.mxu0
      %v1100 = vadd.f32 %v342, %v1099
      %v1101 = vpop.f32.mrf.mxu0
      %v1102 = vadd.f32 %v342, %v1101
      %1103 = vmatmul.bf16.gmra.mxu0 %v809
      %v1104 = vpop.f32.mrf.mxu0
      %v1105 = vadd.f32 %v342, %v1104
      %v1106 = vpop.f32.mrf.mxu0
      %v1107 = vadd.f32 %v342, %v1106
      %1108 = vmatmul.bf16.gmra.mxu0 %v812
      %v1109 = vpop.f32.mrf.mxu0
      %v1110 = vadd.f32 %v342, %v1109
      %v1111 = vpop.f32.mrf.mxu0
      %v1112 = vadd.f32 %v342, %v1111
      %1113 = vmatmul.bf16.gmra.mxu0 %v815
      %v1114 = vpop.f32.mrf.mxu0
      %v1115 = vadd.f32 %v342, %v1114
      %v1116 = vpop.f32.mrf.mxu0
      %v1117 = vadd.f32 %v342, %v1116
      %1118 = vmatmul.bf16.gmra.mxu0 %v818
      %v1119 = vpop.f32.mrf.mxu0
      %v1120 = vadd.f32 %v342, %v1119
      %v1121 = vpop.f32.mrf.mxu0
      %v1122 = vadd.f32 %v342, %v1121
      %1123 = vmatmul.bf16.gmra.mxu0 %v821
      %v1124 = vpop.f32.mrf.mxu0
      %v1125 = vadd.f32 %v342, %v1124
      %v1126 = vpop.f32.mrf.mxu0
      %v1127 = vadd.f32 %v342, %v1126
      %1128 = vmatmul.bf16.gmra.mxu0 %v824
      %v1129 = vpop.f32.mrf.mxu0
      %v1130 = vadd.f32 %v342, %v1129
      %v1131 = vpop.f32.mrf.mxu0
      %v1132 = vadd.f32 %v342, %v1131
      %1133 = vmatmul.bf16.gmra.mxu0 %v827
      %v1134 = vpop.f32.mrf.mxu0
      %v1135 = vadd.f32 %v342, %v1134
      %v1136 = vpop.f32.mrf.mxu0
      %v1137 = vadd.f32 %v342, %v1136
      %1138 = vmatmul.bf16.gmra.mxu0 %v830
      %v1139 = vpop.f32.mrf.mxu0
      %v1140 = vadd.f32 %v342, %v1139
      %v1141 = vpop.f32.mrf.mxu0
      %v1142 = vadd.f32 %v342, %v1141
      %1143 = vmatmul.bf16.gmra.mxu0 %v833
      %v1144 = vpop.f32.mrf.mxu0
      %v1145 = vadd.f32 %v342, %v1144
      %v1146 = vpop.f32.mrf.mxu0
      %v1147 = vadd.f32 %v342, %v1146
      %1148 = vmatmul.bf16.gmra.mxu0 %v836
      %v1149 = vpop.f32.mrf.mxu0
      %v1150 = vadd.f32 %v342, %v1149
      %v1151 = vpop.f32.mrf.mxu0
      %v1152 = vadd.f32 %v342, %v1151
      %1153 = vmatmul.bf16.gmra.mxu0 %v839
      %v1154 = vpop.f32.mrf.mxu0
      %v1155 = vadd.f32 %v342, %v1154
      %v1156 = vpop.f32.mrf.mxu0
      %v1157 = vadd.f32 %v342, %v1156
      %1158 = vmatmul.bf16.gmra.mxu0 %v842
      %v1159 = vpop.f32.mrf.mxu0
      %v1160 = vadd.f32 %v342, %v1159
      %v1161 = vpop.f32.mrf.mxu0
      %v1162 = vadd.f32 %v342, %v1161
      %1163 = vmatmul.bf16.gmra.mxu0 %v845
      %v1164 = vpop.f32.mrf.mxu0
      %v1165 = vadd.f32 %v342, %v1164
      %v1166 = vpop.f32.mrf.mxu0
      %v1167 = vadd.f32 %v342, %v1166
      %1168 = vmatmul.bf16.gmra.mxu0 %v848
      %v1169 = vpop.f32.mrf.mxu0
      %v1170 = vadd.f32 %v342, %v1169
      %v1171 = vpop.f32.mrf.mxu0
      %v1172 = vadd.f32 %v342, %v1171
      %1173 = vmatmul.bf16.gmra.mxu0 %v851
      %v1174 = vpop.f32.mrf.mxu0
      %v1175 = vadd.f32 %v342, %v1174
      %v1176 = vpop.f32.mrf.mxu0
      %v1177 = vadd.f32 %v342, %v1176
      %1178 = vmatmul.bf16.gmra.mxu0 %v854
      %v1179 = vpop.f32.mrf.mxu0
      %v1180 = vadd.f32 %v342, %v1179
      %v1181 = vpop.f32.mrf.mxu0
      %v1182 = vadd.f32 %v342, %v1181
      %1183 = vmatmul.bf16.gmra.mxu0 %v857
      %v1184 = vpop.f32.mrf.mxu0
      %v1185 = vadd.f32 %v342, %v1184
      %v1186 = vpop.f32.mrf.mxu0
      %v1187 = vadd.f32 %v342, %v1186
      %1188 = vmatmul.bf16.gmra.mxu0 %v860
      %v1189 = vpop.f32.mrf.mxu0
      %v1190 = vadd.f32 %v342, %v1189
      %v1191 = vpop.f32.mrf.mxu0
      %v1192 = vadd.f32 %v342, %v1191
      %1193 = vmatmul.bf16.gmra.mxu0 %v863
      %v1194 = vpop.f32.mrf.mxu0
      %v1195 = vadd.f32 %v342, %v1194
      %v1196 = vpop.f32.mrf.mxu0
      %v1197 = vadd.f32 %v342, %v1196
      %1198 = vmatmul.bf16.gmra.mxu0 %v866
      %v1199 = vpop.f32.mrf.mxu0
      %v1200 = vadd.f32 %v342, %v1199
      %v1201 = vpop.f32.mrf.mxu0
      %v1202 = vadd.f32 %v342, %v1201
      %1203 = vdwg.mxu0
      %v1204 = vmax.f32 %v885, 0.0
      %v1205 = vmax.f32 %v887, 0.0
      %v1206 = vmax.f32 %v890, 0.0
      %v1207 = vmax.f32 %v892, 0.0
      %v1208 = vmax.f32 %v895, 0.0
      %v1209 = vmax.f32 %v897, 0.0
      %v1210 = vmax.f32 %v900, 0.0
      %v1211 = vmax.f32 %v902, 0.0
      %v1212 = vmax.f32 %v905, 0.0
      %v1213 = vmax.f32 %v907, 0.0
      %v1214 = vmax.f32 %v910, 0.0
      %v1215 = vmax.f32 %v912, 0.0
      %v1216 = vmax.f32 %v915, 0.0
      %v1217 = vmax.f32 %v917, 0.0
      %v1218 = vmax.f32 %v920, 0.0
      %v1219 = vmax.f32 %v922, 0.0
      %v1220 = vmax.f32 %v925, 0.0
      %v1221 = vmax.f32 %v927, 0.0
      %v1222 = vmax.f32 %v930, 0.0
      %v1223 = vmax.f32 %v932, 0.0
      %v1224 = vmax.f32 %v935, 0.0
      %v1225 = vmax.f32 %v937, 0.0
      %v1226 = vmax.f32 %v940, 0.0
      %v1227 = vmax.f32 %v942, 0.0
      %v1228 = vmax.f32 %v945, 0.0
      %v1229 = vmax.f32 %v947, 0.0
      %v1230 = vmax.f32 %v950, 0.0
      %v1231 = vmax.f32 %v952, 0.0
      %v1232 = vmax.f32 %v955, 0.0
      %v1233 = vmax.f32 %v957, 0.0
      %v1234 = vmax.f32 %v960, 0.0
      %v1235 = vmax.f32 %v962, 0.0
      %v1236 = vmax.f32 %v965, 0.0
      %v1237 = vmax.f32 %v967, 0.0
      %v1238 = vmax.f32 %v970, 0.0
      %v1239 = vmax.f32 %v972, 0.0
      %v1240 = vmax.f32 %v975, 0.0
      %v1241 = vmax.f32 %v977, 0.0
      %v1242 = vmax.f32 %v980, 0.0
      %v1243 = vmax.f32 %v982, 0.0
      %v1244 = vmax.f32 %v985, 0.0
      %v1245 = vmax.f32 %v987, 0.0
      %v1246 = vmax.f32 %v990, 0.0
      %v1247 = vmax.f32 %v992, 0.0
      %v1248 = vmax.f32 %v995, 0.0
      %v1249 = vmax.f32 %v997, 0.0
      %v1250 = vmax.f32 %v1000, 0.0
      %v1251 = vmax.f32 %v1002, 0.0
      %v1252 = vmax.f32 %v1005, 0.0
      %v1253 = vmax.f32 %v1007, 0.0
      %v1254 = vmax.f32 %v1010, 0.0
      %v1255 = vmax.f32 %v1012, 0.0
      %v1256 = vmax.f32 %v1015, 0.0
      %v1257 = vmax.f32 %v1017, 0.0
      %v1258 = vmax.f32 %v1020, 0.0
      %v1259 = vmax.f32 %v1022, 0.0
      %v1260 = vmax.f32 %v1025, 0.0
      %v1261 = vmax.f32 %v1027, 0.0
      %v1262 = vmax.f32 %v1030, 0.0
      %v1263 = vmax.f32 %v1032, 0.0
      %v1264 = vmax.f32 %v1035, 0.0
      %v1265 = vmax.f32 %v1037, 0.0
      %v1266 = vmax.f32 %v1040, 0.0
      %v1267 = vmax.f32 %v1042, 0.0
      %v1268 = vmax.f32 %v1045, 0.0
      %v1269 = vmax.f32 %v1047, 0.0
      %v1270 = vmax.f32 %v1050, 0.0
      %v1271 = vmax.f32 %v1052, 0.0
      %v1272 = vmax.f32 %v1055, 0.0
      %v1273 = vmax.f32 %v1057, 0.0
      %v1274 = vmax.f32 %v1060, 0.0
      %v1275 = vmax.f32 %v1062, 0.0
      %v1276 = vmax.f32 %v1065, 0.0
      %v1277 = vmax.f32 %v1067, 0.0
      %v1278 = vmax.f32 %v1070, 0.0
      %v1279 = vmax.f32 %v1072, 0.0
      %v1280 = vmax.f32 %v1075, 0.0
      %v1281 = vmax.f32 %v1077, 0.0
      %v1282 = vmax.f32 %v1080, 0.0
      %v1283 = vmax.f32 %v1082, 0.0
      %v1284 = vmax.f32 %v1085, 0.0
      %v1285 = vmax.f32 %v1087, 0.0
      %v1286 = vmax.f32 %v1090, 0.0
      %v1287 = vmax.f32 %v1092, 0.0
      %v1288 = vmax.f32 %v1095, 0.0
      %v1289 = vmax.f32 %v1097, 0.0
      %v1290 = vmax.f32 %v1100, 0.0
      %v1291 = vmax.f32 %v1102, 0.0
      %v1292 = vmax.f32 %v1105, 0.0
      %v1293 = vmax.f32 %v1107, 0.0
      %v1294 = vmax.f32 %v1110, 0.0
      %v1295 = vmax.f32 %v1112, 0.0
      %v1296 = vmax.f32 %v1115, 0.0
      %v1297 = vmax.f32 %v1117, 0.0
      %v1298 = vmax.f32 %v1120, 0.0
      %v1299 = vmax.f32 %v1122, 0.0
      %v1300 = vmax.f32 %v1125, 0.0
      %v1301 = vmax.f32 %v1127, 0.0
      %v1302 = vmax.f32 %v1130, 0.0
      %v1303 = vmax.f32 %v1132, 0.0
      %v1304 = vmax.f32 %v1135, 0.0
      %v1305 = vmax.f32 %v1137, 0.0
      %v1306 = vmax.f32 %v1140, 0.0
      %v1307 = vmax.f32 %v1142, 0.0
      %v1308 = vmax.f32 %v1145, 0.0
      %v1309 = vmax.f32 %v1147, 0.0
      %v1310 = vmax.f32 %v1150, 0.0
      %v1311 = vmax.f32 %v1152, 0.0
      %v1312 = vmax.f32 %v1155, 0.0
      %v1313 = vmax.f32 %v1157, 0.0
      %v1314 = vmax.f32 %v1160, 0.0
      %v1315 = vmax.f32 %v1162, 0.0
      %v1316 = vmax.f32 %v1165, 0.0
      %v1317 = vmax.f32 %v1167, 0.0
      %v1318 = vmax.f32 %v1170, 0.0
      %v1319 = vmax.f32 %v1172, 0.0
      %v1320 = vmax.f32 %v1175, 0.0
      %v1321 = vmax.f32 %v1177, 0.0
      %v1322 = vmax.f32 %v1180, 0.0
      %v1323 = vmax.f32 %v1182, 0.0
      %v1324 = vmax.f32 %v1185, 0.0
      %v1325 = vmax.f32 %v1187, 0.0
      %v1326 = vmax.f32 %v1190, 0.0
      %v1327 = vmax.f32 %v1192, 0.0
      %v1328 = vmax.f32 %v1195, 0.0
      %v1329 = vmax.f32 %v1197, 0.0
      %v1330 = vmax.f32 %v1200, 0.0
      %v1331 = vmax.f32 %v1202, 0.0
      %v1332 = vmax.f32 %v1204, %v1236
      %v1333 = vmax.f32 %v1205, %v1237
      %v1334 = vmax.f32 %v1206, %v1238
      %v1335 = vmax.f32 %v1207, %v1239
      %v1336 = vmax.f32 %v1208, %v1240
      %v1337 = vmax.f32 %v1209, %v1241
      %v1338 = vmax.f32 %v1210, %v1242
      %v1339 = vmax.f32 %v1211, %v1243
      %v1340 = vmax.f32 %v1212, %v1244
      %v1341 = vmax.f32 %v1213, %v1245
      %v1342 = vmax.f32 %v1214, %v1246
      %v1343 = vmax.f32 %v1215, %v1247
      %v1344 = vmax.f32 %v1216, %v1248
      %v1345 = vmax.f32 %v1217, %v1249
      %v1346 = vmax.f32 %v1218, %v1250
      %v1347 = vmax.f32 %v1219, %v1251
      %v1348 = vmax.f32 %v1220, %v1252
      %v1349 = vmax.f32 %v1221, %v1253
      %v1350 = vmax.f32 %v1222, %v1254
      %v1351 = vmax.f32 %v1223, %v1255
      %v1352 = vmax.f32 %v1224, %v1256
      %v1353 = vmax.f32 %v1225, %v1257
      %v1354 = vmax.f32 %v1226, %v1258
      %v1355 = vmax.f32 %v1227, %v1259
      %v1356 = vmax.f32 %v1228, %v1260
      %v1357 = vmax.f32 %v1229, %v1261
      %v1358 = vmax.f32 %v1230, %v1262
      %v1359 = vmax.f32 %v1231, %v1263
      %v1360 = vmax.f32 %v1232, %v1264
      %v1361 = vmax.f32 %v1233, %v1265
      %v1362 = vmax.f32 %v1234, %v1266
      %v1363 = vmax.f32 %v1235, %v1267
      %v1364 = vmax.f32 %v1268, %v1300
      %v1365 = vmax.f32 %v1269, %v1301
      %v1366 = vmax.f32 %v1270, %v1302
      %v1367 = vmax.f32 %v1271, %v1303
      %v1368 = vmax.f32 %v1272, %v1304
      %v1369 = vmax.f32 %v1273, %v1305
      %v1370 = vmax.f32 %v1274, %v1306
      %v1371 = vmax.f32 %v1275, %v1307
      %v1372 = vmax.f32 %v1276, %v1308
      %v1373 = vmax.f32 %v1277, %v1309
      %v1374 = vmax.f32 %v1278, %v1310
      %v1375 = vmax.f32 %v1279, %v1311
      %v1376 = vmax.f32 %v1280, %v1312
      %v1377 = vmax.f32 %v1281, %v1313
      %v1378 = vmax.f32 %v1282, %v1314
      %v1379 = vmax.f32 %v1283, %v1315
      %v1380 = vmax.f32 %v1284, %v1316
      %v1381 = vmax.f32 %v1285, %v1317
      %v1382 = vmax.f32 %v1286, %v1318
      %v1383 = vmax.f32 %v1287, %v1319
      %v1384 = vmax.f32 %v1288, %v1320
      %v1385 = vmax.f32 %v1289, %v1321
      %v1386 = vmax.f32 %v1290, %v1322
      %v1387 = vmax.f32 %v1291, %v1323
      %v1388 = vmax.f32 %v1292, %v1324
      %v1389 = vmax.f32 %v1293, %v1325
      %v1390 = vmax.f32 %v1294, %v1326
      %v1391 = vmax.f32 %v1295, %v1327
      %v1392 = vmax.f32 %v1296, %v1328
      %v1393 = vmax.f32 %v1297, %v1329
      %v1394 = vmax.f32 %v1298, %v1330
      %v1395 = vmax.f32 %v1299, %v1331
      %v1396 = vmax.f32 %v1332, %v1364
      %v1397 = vmax.f32 %v1333, %v1365
      %v1398 = vmax.f32 %v1334, %v1366
      %v1399 = vmax.f32 %v1335, %v1367
      %v1400 = vmax.f32 %v1336, %v1368
      %v1401 = vmax.f32 %v1337, %v1369
      %v1402 = vmax.f32 %v1338, %v1370
      %v1403 = vmax.f32 %v1339, %v1371
      %v1404 = vmax.f32 %v1340, %v1372
      %v1405 = vmax.f32 %v1341, %v1373
      %v1406 = vmax.f32 %v1342, %v1374
      %v1407 = vmax.f32 %v1343, %v1375
      %v1408 = vmax.f32 %v1344, %v1376
      %v1409 = vmax.f32 %v1345, %v1377
      %v1410 = vmax.f32 %v1346, %v1378
      %v1411 = vmax.f32 %v1347, %v1379
      %v1412 = vmax.f32 %v1348, %v1380
      %v1413 = vmax.f32 %v1349, %v1381
      %v1414 = vmax.f32 %v1350, %v1382
      %v1415 = vmax.f32 %v1351, %v1383
      %v1416 = vmax.f32 %v1352, %v1384
      %v1417 = vmax.f32 %v1353, %v1385
      %v1418 = vmax.f32 %v1354, %v1386
      %v1419 = vmax.f32 %v1355, %v1387
      %v1420 = vmax.f32 %v1356, %v1388
      %v1421 = vmax.f32 %v1357, %v1389
      %v1422 = vmax.f32 %v1358, %v1390
      %v1423 = vmax.f32 %v1359, %v1391
      %v1424 = vmax.f32 %v1360, %v1392
      %v1425 = vmax.f32 %v1361, %v1393
      %v1426 = vmax.f32 %v1362, %v1394
      %v1427 = vmax.f32 %v1363, %v1395
      %v1428 = vpack.c.bf16 %v1396, %v1396
      %v1429 = vpack.c.bf16 %v1397, %v1397
      %v1430 = vpack.c.bf16 %v1398, %v1398
      %v1431 = vpack.c.bf16 %v1399, %v1399
      %v1432 = vpack.c.bf16 %v1400, %v1400
      %v1433 = vpack.c.bf16 %v1401, %v1401
      %v1434 = vpack.c.bf16 %v1402, %v1402
      %v1435 = vpack.c.bf16 %v1403, %v1403
      %v1436 = vpack.c.bf16 %v1404, %v1404
      %v1437 = vpack.c.bf16 %v1405, %v1405
      %v1438 = vpack.c.bf16 %v1406, %v1406
      %v1439 = vpack.c.bf16 %v1407, %v1407
      %v1440 = vpack.c.bf16 %v1408, %v1408
      %v1441 = vpack.c.bf16 %v1409, %v1409
      %v1442 = vpack.c.bf16 %v1410, %v1410
      %v1443 = vpack.c.bf16 %v1411, %v1411
      %v1444 = vpack.c.bf16 %v1412, %v1412
      %v1445 = vpack.c.bf16 %v1413, %v1413
      %v1446 = vpack.c.bf16 %v1414, %v1414
      %v1447 = vpack.c.bf16 %v1415, %v1415
      %v1448 = vpack.c.bf16 %v1416, %v1416
      %v1449 = vpack.c.bf16 %v1417, %v1417
      %v1450 = vpack.c.bf16 %v1418, %v1418
      %v1451 = vpack.c.bf16 %v1419, %v1419
      %v1452 = vpack.c.bf16 %v1420, %v1420
      %v1453 = vpack.c.bf16 %v1421, %v1421
      %v1454 = vpack.c.bf16 %v1422, %v1422
      %v1455 = vpack.c.bf16 %v1423, %v1423
      %v1456 = vpack.c.bf16 %v1424, %v1424
      %v1457 = vpack.c.bf16 %v1425, %v1425
      %v1458 = vpack.c.bf16 %v1426, %v1426
      %v1459 = vpack.c.bf16 %v1427, %v1427
      %vm1460 = vcmask 125952
      %1461 = vst.msk [vmem:[%s206] sm:$0xf] %vm1460, %v1428
      %1462 = vst.msk [vmem:[%s206 + $0x4] sm:$0xf] %vm1460, %v1429
      %1463 = vst.msk [vmem:[%s206 + $0x8] sm:$0xf] %vm1460, %v1430
      %1464 = vst.msk [vmem:[%s206 + $0xc] sm:$0xf] %vm1460, %v1431
      %1465 = vst.msk [vmem:[%s206 + $0x10] sm:$0xf] %vm1460, %v1432
      %1466 = vst.msk [vmem:[%s206 + $0x14] sm:$0xf] %vm1460, %v1433
      %1467 = vst.msk [vmem:[%s206 + $0x18] sm:$0xf] %vm1460, %v1434
      %1468 = vst.msk [vmem:[%s206 + $0x1c] sm:$0xf] %vm1460, %v1435
      %1469 = vst.msk [vmem:[%s206 + $0x20] sm:$0xf] %vm1460, %v1436
      %1470 = vst.msk [vmem:[%s206 + $0x24] sm:$0xf] %vm1460, %v1437
      %1471 = vst.msk [vmem:[%s206 + $0x28] sm:$0xf] %vm1460, %v1438
      %1472 = vst.msk [vmem:[%s206 + $0x2c] sm:$0xf] %vm1460, %v1439
      %1473 = vst.msk [vmem:[%s206 + $0x30] sm:$0xf] %vm1460, %v1440
      %1474 = vst.msk [vmem:[%s206 + $0x34] sm:$0xf] %vm1460, %v1441
      %1475 = vst.msk [vmem:[%s206 + $0x38] sm:$0xf] %vm1460, %v1442
      %1476 = vst.msk [vmem:[%s206 + $0x3c] sm:$0xf] %vm1460, %v1443
      %1477 = vst.msk [vmem:[%s206 + $0x40] sm:$0xf] %vm1460, %v1444
      %1478 = vst.msk [vmem:[%s206 + $0x44] sm:$0xf] %vm1460, %v1445
      %1479 = vst.msk [vmem:[%s206 + $0x48] sm:$0xf] %vm1460, %v1446
      %1480 = vst.msk [vmem:[%s206 + $0x4c] sm:$0xf] %vm1460, %v1447
      %1481 = vst.msk [vmem:[%s206 + $0x50] sm:$0xf] %vm1460, %v1448
      %1482 = vst.msk [vmem:[%s206 + $0x54] sm:$0xf] %vm1460, %v1449
      %1483 = vst.msk [vmem:[%s206 + $0x58] sm:$0xf] %vm1460, %v1450
      %1484 = vst.msk [vmem:[%s206 + $0x5c] sm:$0xf] %vm1460, %v1451
      %1485 = vst.msk [vmem:[%s206 + $0x60] sm:$0xf] %vm1460, %v1452
      %1486 = vst.msk [vmem:[%s206 + $0x64] sm:$0xf] %vm1460, %v1453
      %1487 = vst.msk [vmem:[%s206 + $0x68] sm:$0xf] %vm1460, %v1454
      %1488 = vst.msk [vmem:[%s206 + $0x6c] sm:$0xf] %vm1460, %v1455
      %1489 = vst.msk [vmem:[%s206 + $0x70] sm:$0xf] %vm1460, %v1456
      %1490 = vst.msk [vmem:[%s206 + $0x74] sm:$0xf] %vm1460, %v1457
      %1491 = vst.msk [vmem:[%s206 + $0x78] sm:$0xf] %vm1460, %v1458
      %1492 = vst.msk [vmem:[%s206 + $0x7c] sm:$0xf] %vm1460, %v1459
      %p1493 = scmp.lt.s32.totalorder %s18, 1
      %s1494 = scalar_select %p1493, %s18, 1
      %p1495 = scmp.lt.s32.totalorder %s19, 0
      %s1496 = scalar_select %p1495, %s19, 0
      %s1497 = smul.addr %s1496, 32
      %s1498 = smul.addr %s1494, 32
      %s1499 = sadd.s32 %s1497, %s1498
      %s1500 = smul.addr %s1499, 4
      %s1501 = scalar_lea.vmem %s3, %s1500
      // Predicated region
      $region33: #{cat_dog_cnn_forward.3} parent=31 // pred_check
        %p1502 = pneg %p116
      $region34: #{cat_dog_cnn_forward.3} parent=31 // pred_check_branch
        %1504 = sbr.rel (%p1502) target = $region36
      $region35: #{cat_dog_cnn_forward.3} parent=31 // pred_region
        _
      $region36: #{cat_dog_cnn_forward.3} parent=31 // pred_fallthru
        _
    $region32: #{cat_dog_cnn_forward.3} parent=5 // pred_fallthru
      _
    %p1505 = scmp.le.s32.totalorder 2, %s9
    // Predicated region
    $region37: #{cat_dog_cnn_forward.3} parent=5 // pred_check
      %p1506 = pneg %p1505
    $region38: #{cat_dog_cnn_forward.3} parent=5 // pred_check_branch
      %1508 = sbr.rel (%p1506) target = $region40
    $region39: #{cat_dog_cnn_forward.3} parent=5 // pred_region
      %s1509 = ssub.s32 %s9, 2
      // Predicated region
      $region41: #{cat_dog_cnn_forward.3} parent=39 // pred_check
        %p1510 = pneg %p122
      $region42: #{cat_dog_cnn_forward.3} parent=39 // pred_check_branch
        %1512 = sbr.rel (%p1510) target = $region44
      $region43: #{cat_dog_cnn_forward.3} parent=39 // pred_region
        %p1513 = scmp.lt.s32.totalorder %s20, 1
        %s1514 = scalar_select %p1513, %s20, 1
        %p1515 = scmp.lt.s32.totalorder %s21, 0
        %s1516 = scalar_select %p1515, %s21, 0
        %s1517 = smul.addr %s1516, 32
        %s1518 = smul.addr %s1514, 32
        %s1519 = sadd.s32 %s1517, %s1518
        %s1520 = smul.addr %s1519, 4
        %s1521 = scalar_lea.vmem %s3, %s1520
      $region44: #{cat_dog_cnn_forward.3} parent=39 // pred_fallthru
        _
    $region40: #{cat_dog_cnn_forward.3} parent=5 // pred_fallthru
      _
  $region6: #{cat_dog_cnn_forward.3} parent=0 // loop_footer
    %s13 = sadd.s32 1, %s9
  $region7: #{cat_dog_cnn_forward.3} parent=0 // loop_footer_branch
    %8 = sbr.rel target = $region3
  $region8: #{cat_dog_cnn_forward.3} parent=0 // loop_exit
    _

// kernel: cat_dog_cnn_forward.4
$region0: #{cat_dog_cnn_forward.4}
  #allocation0 [shape = 'u32[]', space=smem, size = 0x4, offset = 0x4, fixed_abs, tag = 'smem constant byte address 0x4 - core index']
  #allocation1 [shape = 'u32[72,128]{1,0:T(1,128)}', space=vmem, size = 0x9000, scoped, tag = 'internal scratch']
  %s0 = inlined_call_operand.vmem [shape: bf16[2,1,256,144], index: 0, kind: input, shape index: {}]
  %s1 = inlined_call_operand.vmem [shape: bf16[144,32], index: 1, kind: input, shape index: {}]
  %s2 = inlined_call_operand.vmem [shape: f32[1,32], index: 2, kind: input, shape index: {}]
  %s3 = inlined_call_operand.vmem [shape: bf16[2,1,64,32], index: 3, kind: output, shape index: {}]
  %s4 = sld [smem:[#allocation0]]
  $region45: #{cat_dog_cnn_forward.4} parent=0
    _
  %s6 = ssub.s32 1, %s4
  %s7 = scalar_select 0, %s6, %s4
  loop: start=0, step=1, limit=4
  $region2: #{cat_dog_cnn_forward.4} parent=0 // loop_pre_header
    _
  $region3: #{cat_dog_cnn_forward.4} parent=0 // loop_header
    %s9 = sphi 0, %s13
    %p10 = scmp.ge.s32.totalorder %s9, 4
    %s16 = sphi 0, %s28
    %s17 = sphi 0, %s24
    %s18 = sphi 0, %s16
    %s19 = sphi 0, %s17
    %s20 = sphi 0, %s18
    %s21 = sphi 0, %s19
    %s33 = sphi 0, %s35
    %s36 = sphi 0, %s33
    %s37 = sphi 0, %s36
    %s53 = sphi 0, %s37
    %s57 = sphi 0, %s57
    %s59 = sphi 0, %s57
    %s60 = sphi 0, %s59
    %s74 = sphi 0, %s60
    %s78 = sphi 0, %s78
    %s80 = sphi 0, %s78
    %s81 = sphi 0, %s80
    %s95 = sphi 0, %s81
    %s103 = sphi 0, %s105
    %s106 = sphi 0, %s103
    %s107 = sphi 0, %s106
    %s123 = sphi 0, %s107
  $region4: #{cat_dog_cnn_forward.4} parent=0 // loop_header_branch
    %12 = sbr.rel (%p10) target = $region8
  $region5: #{cat_dog_cnn_forward.4} parent=0 // loop_body
    %s14 = ssub.s32 %s9, 1
    %s15 = ssub.s32 %s9, 2
    %s22 = sadd.s32 1, %s17
    %p23 = scmp.ge.s32.totalorder %s22, 1
    %s24 = scalar_select %p23, 0, %s22
    %s25 = sadd.s32 1, %s16
    %s26 = scalar_select %p23, %s25, %s16
    %p27 = scmp.ge.s32.totalorder %s26, 2
    %s28 = scalar_select %p27, 0, %s26
    %s29 = ssub.s32 %s16, %s28
    %s30 = ssub.s32 %s17, %s24
    %s31 = sor.u32 %s29, %s30
    %p32 = scmp.eq.s32.totalorder %s31, 0
    %s34 = sadd.s32 %s33, 1
    %s35 = scalar_select %p32, %s33, %s34
    %p38 = pneg %p32
    %p39 = scmp.eq.s32.totalorder %s9, 1
    %p40 = por %p38, %p39
    %p41 = scmp.ne.s32.totalorder %s33, %s36
    %p42 = scmp.eq.s32.totalorder %s9, 0
    %p43 = por %p41, %p42
    %p44 = scmp.ne.s32.totalorder %s33, %s36
    %p45 = scmp.eq.s32.totalorder %s14, 1
    %p46 = por %p44, %p45
    %p47 = scmp.ne.s32.totalorder %s36, %s37
    %p48 = scmp.eq.s32.totalorder %s14, 0
    %p49 = por %p47, %p48
    %p50 = scmp.ne.s32.totalorder %s36, %s37
    %p51 = scmp.eq.s32.totalorder %s15, 1
    %p52 = por %p50, %p51
    %p54 = scmp.ne.s32.totalorder %s37, %s53
    %p55 = scmp.eq.s32.totalorder %s15, 0
    %p56 = por %p54, %p55
    %s58 = sadd.s32 %s57, 1
    %p61 = scmp.eq.s32.totalorder %s9, 1
    %p62 = scmp.ne.s32.totalorder %s57, %s59
    %p63 = scmp.eq.s32.totalorder %s9, 0
    %p64 = por %p62, %p63
    %p65 = scmp.ne.s32.totalorder %s57, %s59
    %p66 = scmp.eq.s32.totalorder %s14, 1
    %p67 = por %p65, %p66
    %p68 = scmp.ne.s32.totalorder %s59, %s60
    %p69 = scmp.eq.s32.totalorder %s14, 0
    %p70 = por %p68, %p69
    %p71 = scmp.ne.s32.totalorder %s59, %s60
    %p72 = scmp.eq.s32.totalorder %s15, 1
    %p73 = por %p71, %p72
    %p75 = scmp.ne.s32.totalorder %s60, %s74
    %p76 = scmp.eq.s32.totalorder %s15, 0
    %p77 = por %p75, %p76
    %s79 = sadd.s32 %s78, 1
    %p82 = scmp.eq.s32.totalorder %s9, 1
    %p83 = scmp.ne.s32.totalorder %s78, %s80
    %p84 = scmp.eq.s32.totalorder %s9, 0
    %p85 = por %p83, %p84
    %p86 = scmp.ne.s32.totalorder %s78, %s80
    %p87 = scmp.eq.s32.totalorder %s14, 1
    %p88 = por %p86, %p87
    %p89 = scmp.ne.s32.totalorder %s80, %s81
    %p90 = scmp.eq.s32.totalorder %s14, 0
    %p91 = por %p89, %p90
    %p92 = scmp.ne.s32.totalorder %s80, %s81
    %p93 = scmp.eq.s32.totalorder %s15, 1
    %p94 = por %p92, %p93
    %p96 = scmp.ne.s32.totalorder %s81, %s95
    %p97 = scmp.eq.s32.totalorder %s15, 0
    %p98 = por %p96, %p97
    %s99 = ssub.s32 %s16, %s28
    %s100 = ssub.s32 %s17, %s24
    %s101 = sor.u32 %s99, %s100
    %p102 = scmp.eq.s32.totalorder %s101, 0
    %s104 = sadd.s32 %s103, 1
    %s105 = scalar_select %p102, %s103, %s104
    %p108 = pneg %p102
    %p109 = scmp.eq.s32.totalorder %s9, 1
    %p110 = por %p108, %p109
    %p111 = scmp.ne.s32.totalorder %s103, %s106
    %p112 = scmp.eq.s32.totalorder %s9, 0
    %p113 = por %p111, %p112
    %p114 = scmp.ne.s32.totalorder %s103, %s106
    %p115 = scmp.eq.s32.totalorder %s14, 1
    %p116 = por %p114, %p115
    %p117 = scmp.ne.s32.totalorder %s106, %s107
    %p118 = scmp.eq.s32.totalorder %s14, 0
    %p119 = por %p117, %p118
    %p120 = scmp.ne.s32.totalorder %s106, %s107
    %p121 = scmp.eq.s32.totalorder %s15, 1
    %p122 = por %p120, %p121
    %p124 = scmp.ne.s32.totalorder %s107, %s123
    %p125 = scmp.eq.s32.totalorder %s15, 0
    %p126 = por %p124, %p125
    %p127 = scmp.le.s32.totalorder 1, %s9
    %p128 = scmp.lt.s32.totalorder %s9, 3
    %p129 = pnand %p127, %p128
    %p130 = pneg %p129
    // Predicated region
    $region9: #{cat_dog_cnn_forward.4} parent=5 // pred_check
      _
    $region10: #{cat_dog_cnn_forward.4} parent=5 // pred_check_branch
      %132 = sbr.rel (%p129) target = $region12
    $region11: #{cat_dog_cnn_forward.4} parent=5 // pred_region
      %s133 = ssub.s32 %s9, 1
      // Predicated region
      $region13: #{cat_dog_cnn_forward.4} parent=11 // pred_check
        %p134 = pneg %p70
      $region14: #{cat_dog_cnn_forward.4} parent=11 // pred_check_branch
        %136 = sbr.rel (%p134) target = $region16
      $region15: #{cat_dog_cnn_forward.4} parent=11 // pred_region
        _
      $region16: #{cat_dog_cnn_forward.4} parent=11 // pred_fallthru
        _
      // Predicated region
      $region17: #{cat_dog_cnn_forward.4} parent=11 // pred_check
        %p137 = pneg %p91
      $region18: #{cat_dog_cnn_forward.4} parent=11 // pred_check_branch
        %139 = sbr.rel (%p137) target = $region20
      $region19: #{cat_dog_cnn_forward.4} parent=11 // pred_region
        _
      $region20: #{cat_dog_cnn_forward.4} parent=11 // pred_fallthru
        _
    $region12: #{cat_dog_cnn_forward.4} parent=5 // pred_fallthru
      _
    %p140 = scmp.lt.s32.totalorder %s9, 2
    // Predicated region
    $region21: #{cat_dog_cnn_forward.4} parent=5 // pred_check
      %p141 = pneg %p140
    $region22: #{cat_dog_cnn_forward.4} parent=5 // pred_check_branch
      %143 = sbr.rel (%p141) target = $region24
    $region23: #{cat_dog_cnn_forward.4} parent=5 // pred_region
      // Predicated region
      $region25: #{cat_dog_cnn_forward.4} parent=23 // pred_check
        %p144 = pneg %p43
      $region26: #{cat_dog_cnn_forward.4} parent=23 // pred_check_branch
        %146 = sbr.rel (%p144) target = $region28
      $region27: #{cat_dog_cnn_forward.4} parent=23 // pred_region
        %p147 = scmp.lt.s32.totalorder %s16, 1
        %s148 = scalar_select %p147, %s16, 1
        %p149 = scmp.lt.s32.totalorder %s17, 0
        %s150 = scalar_select %p149, %s17, 0
        %s151 = smul.addr %s150, 64
        %s152 = smul.addr %s148, 64
        %s153 = sadd.s32 %s151, %s152
        %s154 = smul.addr %s153, 4
        %s155 = scalar_lea.vmem %s0, %s154
      $region28: #{cat_dog_cnn_forward.4} parent=23 // pred_fallthru
        _
    $region24: #{cat_dog_cnn_forward.4} parent=5 // pred_fallthru
      _
    %p156 = scmp.le.s32.totalorder 1, %s9
    %p157 = scmp.lt.s32.totalorder %s9, 3
    %p158 = pnand %p156, %p157
    %p159 = pneg %p158
    // Predicated region
    $region29: #{cat_dog_cnn_forward.4} parent=5 // pred_check
      _
    $region30: #{cat_dog_cnn_forward.4} parent=5 // pred_check_branch
      %161 = sbr.rel (%p158) target = $region32
    $region31: #{cat_dog_cnn_forward.4} parent=5 // pred_region
      %s162 = ssub.s32 %s9, 1
      %p163 = scmp.lt.s32.totalorder %s18, 1
      %s164 = scalar_select %p163, %s18, 1
      %p165 = scmp.lt.s32.totalorder %s19, 0
      %s166 = scalar_select %p165, %s19, 0
      %s167 = smul.addr %s166, 64
      %s168 = smul.addr %s164, 64
      %s169 = sadd.s32 %s167, %s168
      %s170 = smul.addr %s169, 4
      %s171 = scalar_lea.vmem %s0, %s170
      %p172 = pneg %p49
      %p173 = pneg %p46
      %p174 = pneg %p70
      %p175 = pneg %p67
      %p176 = pneg %p91
      %p177 = pneg %p88
      %p178 = pneg %p119
      %p179 = pneg %p116
      %p180 = scmp.lt.s32.totalorder %s18, 1
      %s181 = scalar_select %p180, %s18, 1
      %p182 = scmp.lt.s32.totalorder %s19, 0
      %s183 = scalar_select %p182, %s19, 0
      %s184 = smul.addr %s183, 8
      %s185 = smul.addr %s181, 8
      %s186 = sadd.s32 %s184, %s185
      %s187 = smul.addr %s186, 4
      %s188 = scalar_lea.vmem %s3, %s187
      %p189 = scmp.lt.s32.totalorder %s18, 1
      %s190 = scalar_select %p189, %s18, 1
      %p191 = scmp.lt.s32.totalorder %s19, 0
      %s192 = scalar_select %p191, %s19, 0
      %s193 = smul.addr %s192, 64
      %s194 = smul.addr %s190, 64
      %s195 = sadd.s32 %s193, %s194
      %s196 = smul.addr %s195, 4
      %s197 = scalar_lea.vmem %s0, %s196
      %p198 = scmp.lt.s32.totalorder %s18, 1
      %s199 = scalar_select %p198, %s18, 1
      %p200 = scmp.lt.s32.totalorder %s19, 0
      %s201 = scalar_select %p200, %s19, 0
      %s202 = smul.addr %s201, 8
      %s203 = smul.addr %s199, 8
      %s204 = sadd.s32 %s202, %s203
      %s205 = smul.addr %s204, 4
      %s206 = scalar_lea.vmem %s3, %s205
      %v208 = vld [vmem:[%s197] sm:$0xff]
      %v209 = vld [vmem:[%s197 + $0x8] sm:$0xff]
      %v210 = vld [vmem:[%s197 + $0x10] sm:$0xff]
      %v211 = vld [vmem:[%s197 + $0x18] sm:$0xff]
      %v212 = vld [vmem:[%s197 + $0x20] sm:$0xff]
      %v213 = vld [vmem:[%s197 + $0x28] sm:$0xff]
      %v214 = vld [vmem:[%s197 + $0x30] sm:$0xff]
      %v215 = vld [vmem:[%s197 + $0x38] sm:$0xff]
      %v216 = vld [vmem:[%s197 + $0x40] sm:$0xff]
      %v217 = vld [vmem:[%s197 + $0x48] sm:$0xff]
      %v218 = vld [vmem:[%s197 + $0x50] sm:$0xff]
      %v219 = vld [vmem:[%s197 + $0x58] sm:$0xff]
      %v220 = vld [vmem:[%s197 + $0x60] sm:$0xff]
      %v221 = vld [vmem:[%s197 + $0x68] sm:$0xff]
      %v222 = vld [vmem:[%s197 + $0x70] sm:$0xff]
      %v223 = vld [vmem:[%s197 + $0x78] sm:$0xff]
      %v224 = vld [vmem:[%s197 + $0x80] sm:$0xff]
      %v225 = vld [vmem:[%s197 + $0x88] sm:$0xff]
      %v226 = vld [vmem:[%s197 + $0x90] sm:$0xff]
      %v227 = vld [vmem:[%s197 + $0x98] sm:$0xff]
      %v228 = vld [vmem:[%s197 + $0xa0] sm:$0xff]
      %v229 = vld [vmem:[%s197 + $0xa8] sm:$0xff]
      %v230 = vld [vmem:[%s197 + $0xb0] sm:$0xff]
      %v231 = vld [vmem:[%s197 + $0xb8] sm:$0xff]
      %v232 = vld [vmem:[%s197 + $0xc0] sm:$0xff]
      %v233 = vld [vmem:[%s197 + $0xc8] sm:$0xff]
      %v234 = vld [vmem:[%s197 + $0xd0] sm:$0xff]
      %v235 = vld [vmem:[%s197 + $0xd8] sm:$0xff]
      %v236 = vld [vmem:[%s197 + $0xe0] sm:$0xff]
      %v237 = vld [vmem:[%s197 + $0xe8] sm:$0xff]
      %v238 = vld [vmem:[%s197 + $0xf0] sm:$0xff]
      %v239 = vld [vmem:[%s197 + $0xf8] sm:$0xff]
      %v240 = vld [vmem:[%s1] sm:$0xf]
      %v241 = vld [vmem:[%s1 + $0x4] sm:$0xf]
      %v242 = vld [vmem:[%s1 + $0x8] sm:$0xf]
      %v243 = vld [vmem:[%s1 + $0xc] sm:$0xf]
      %v244 = vld [vmem:[%s1 + $0x10] sm:$0xf]
      %v245 = vld [vmem:[%s1 + $0x14] sm:$0xf]
      %v246 = vld [vmem:[%s1 + $0x18] sm:$0xf]
      %v247 = vld [vmem:[%s1 + $0x1c] sm:$0xf]
      %v248 = vld [vmem:[%s1 + $0x20] sm:$0xf]
      %v249 = vld [vmem:[%s1 + $0x24] sm:$0xf]
      %v250 = vld [vmem:[%s1 + $0x28] sm:$0xf]
      %v251 = vld [vmem:[%s1 + $0x2c] sm:$0xf]
      %v252 = vld [vmem:[%s1 + $0x30] sm:$0xf]
      %v253 = vld [vmem:[%s1 + $0x34] sm:$0xf]
      %v254 = vld [vmem:[%s1 + $0x38] sm:$0xf]
      %v255 = vld [vmem:[%s1 + $0x3c] sm:$0xf]
      %v256 = vld [vmem:[%s1 + $0x40] sm:$0xf]
      %v257 = vld [vmem:[%s1 + $0x44] sm:$0xf]
      %v258 = vld [vmem:[%s2] sm:$0x1]
      %v260 = vperm.slane %v258, 0
      %v294 = vunpack.c.l.b16 %v208
      %v295 = vunpack.c.h.b16 %v208
      %v296 = vunpack.c.l.b16 %v209
      %v297 = vunpack.c.h.b16 %v209
      %v298 = vunpack.c.l.b16 %v210
      %v299 = vunpack.c.h.b16 %v210
      %v300 = vunpack.c.l.b16 %v211
      %v301 = vunpack.c.h.b16 %v211
      %v302 = vunpack.c.l.b16 %v212
      %v303 = vunpack.c.h.b16 %v212
      %v304 = vunpack.c.l.b16 %v213
      %v305 = vunpack.c.h.b16 %v213
      %v306 = vunpack.c.l.b16 %v214
      %v307 = vunpack.c.h.b16 %v214
      %v308 = vunpack.c.l.b16 %v215
      %v309 = vunpack.c.h.b16 %v215
      %v310 = vunpack.c.l.b16 %v216
      %v311 = vunpack.c.h.b16 %v216
      %v312 = vunpack.c.l.b16 %v217
      %v313 = vunpack.c.h.b16 %v217
      %v314 = vunpack.c.l.b16 %v218
      %v315 = vunpack.c.h.b16 %v218
      %v316 = vunpack.c.l.b16 %v219
      %v317 = vunpack.c.h.b16 %v219
      %v318 = vunpack.c.l.b16 %v220
      %v319 = vunpack.c.h.b16 %v220
      %v320 = vunpack.c.l.b16 %v221
      %v321 = vunpack.c.h.b16 %v221
      %v322 = vunpack.c.l.b16 %v222
      %v323 = vunpack.c.h.b16 %v222
      %v324 = vunpack.c.l.b16 %v223
      %v325 = vunpack.c.h.b16 %v223
      %v326 = vunpack.c.l.b16 %v224
      %v327 = vunpack.c.h.b16 %v224
      %v328 = vunpack.c.l.b16 %v225
      %v329 = vunpack.c.h.b16 %v225
      %v330 = vunpack.c.l.b16 %v226
      %v331 = vunpack.c.h.b16 %v226
      %v332 = vunpack.c.l.b16 %v227
      %v333 = vunpack.c.h.b16 %v227
      %v334 = vunpack.c.l.b16 %v228
      %v335 = vunpack.c.h.b16 %v228
      %v336 = vunpack.c.l.b16 %v229
      %v337 = vunpack.c.h.b16 %v229
      %v338 = vunpack.c.l.b16 %v230
      %v339 = vunpack.c.h.b16 %v230
      %v340 = vunpack.c.l.b16 %v231
      %v341 = vunpack.c.h.b16 %v231
      %v342 = vunpack.c.l.b16 %v232
      %v343 = vunpack.c.h.b16 %v232
      %v344 = vunpack.c.l.b16 %v233
      %v345 = vunpack.c.h.b16 %v233
      %v346 = vunpack.c.l.b16 %v234
      %v347 = vunpack.c.h.b16 %v234
      %v348 = vunpack.c.l.b16 %v235
      %v349 = vunpack.c.h.b16 %v235
      %v350 = vunpack.c.l.b16 %v236
      %v351 = vunpack.c.h.b16 %v236
      %v352 = vunpack.c.l.b16 %v237
      %v353 = vunpack.c.h.b16 %v237
      %v354 = vunpack.c.l.b16 %v238
      %v355 = vunpack.c.h.b16 %v238
      %v356 = vunpack.c.l.b16 %v239
      %v357 = vunpack.c.h.b16 %v239
      %v358 = vpack.c.b16 %v296, %v294
      %v359 = vpack.c.b16 %v297, %v295
      %v360 = vpack.c.b16 %v300, %v298
      %v361 = vpack.c.b16 %v301, %v299
      %v362 = vpack.c.b16 %v304, %v302
      %v363 = vpack.c.b16 %v305, %v303
      %v364 = vpack.c.b16 %v308, %v306
      %v365 = vpack.c.b16 %v309, %v307
      %v366 = vpack.c.b16 %v312, %v310
      %v367 = vpack.c.b16 %v313, %v311
      %v368 = vpack.c.b16 %v316, %v314
      %v369 = vpack.c.b16 %v317, %v315
      %v370 = vpack.c.b16 %v320, %v318
      %v371 = vpack.c.b16 %v321, %v319
      %v372 = vpack.c.b16 %v324, %v322
      %v373 = vpack.c.b16 %v325, %v323
      %v374 = vpack.c.b16 %v328, %v326
      %v375 = vpack.c.b16 %v329, %v327
      %v376 = vpack.c.b16 %v332, %v330
      %v377 = vpack.c.b16 %v333, %v331
      %v378 = vpack.c.b16 %v336, %v334
      %v379 = vpack.c.b16 %v337, %v335
      %v380 = vpack.c.b16 %v340, %v338
      %v381 = vpack.c.b16 %v341, %v339
      %v382 = vpack.c.b16 %v344, %v342
      %v383 = vpack.c.b16 %v345, %v343
      %v384 = vpack.c.b16 %v348, %v346
      %v385 = vpack.c.b16 %v349, %v347
      %v386 = vpack.c.b16 %v352, %v350
      %v387 = vpack.c.b16 %v353, %v351
      %v388 = vpack.c.b16 %v356, %v354
      %v389 = vpack.c.b16 %v357, %v355
      %v424 = vunpack.c.l.b16 %v240
      %v425 = vunpack.c.l.b16 %v241
      %v426 = vunpack.c.l.b16 %v242
      %v427 = vunpack.c.l.b16 %v243
      %v428 = vunpack.c.l.b16 %v244
      %v429 = vunpack.c.l.b16 %v245
      %v430 = vunpack.c.l.b16 %v246
      %v431 = vunpack.c.l.b16 %v247
      %v432 = vunpack.c.l.b16 %v248
      %v433 = vunpack.c.l.b16 %v249
      %v434 = vunpack.c.l.b16 %v250
      %v435 = vunpack.c.l.b16 %v251
      %v436 = vunpack.c.l.b16 %v252
      %v437 = vunpack.c.l.b16 %v253
      %v438 = vunpack.c.l.b16 %v254
      %v439 = vunpack.c.l.b16 %v255
      %v440 = vunpack.c.l.b16 %v256
      %v441 = vunpack.c.l.b16 %v257
      %v442 = vpack.c.b16 %v425, %v424
      %v443 = vpack.c.b16 %v427, %v426
      %v444 = vpack.c.b16 %v429, %v428
      %v445 = vpack.c.b16 %v431, %v430
      %v446 = vpack.c.b16 %v433, %v432
      %v447 = vpack.c.b16 %v435, %v434
      %v448 = vpack.c.b16 %v437, %v436
      %v449 = vpack.c.b16 %v439, %v438
      %v450 = vpack.c.b16 %v441, %v440
      %vm460 = vcmask 130048
      %v462 = vsel %vm460, %v359, 0
      %v465 = vsel %vm460, %v361, 0
      %v468 = vsel %vm460, %v363, 0
      %v471 = vsel %vm460, %v365, 0
      %v474 = vsel %vm460, %v367, 0
      %v477 = vsel %vm460, %v369, 0
      %v480 = vsel %vm460, %v371, 0
      %v483 = vsel %vm460, %v373, 0
      %v486 = vsel %vm460, %v375, 0
      %v489 = vsel %vm460, %v377, 0
      %v492 = vsel %vm460, %v379, 0
      %v495 = vsel %vm460, %v381, 0
      %v498 = vsel %vm460, %v383, 0
      %v501 = vsel %vm460, %v385, 0
      %v504 = vsel %vm460, %v387, 0
      %v507 = vsel %vm460, %v389, 0
      %509 = vmatpush.bf16.msra.mxu0 %v449
      %510 = vmatpush.bf16.msra.mxu0 %v448
      %511 = vmatpush.bf16.msra.mxu0 %v447
      %512 = vmatpush.bf16.msra.mxu0 %v446
      %513 = vmatpush.bf16.msra.mxu0 %v445
      %514 = vmatpush.bf16.msra.mxu0 %v444
      %515 = vmatpush.bf16.msra.mxu0 %v443
      %516 = vmatpush.bf16.msra.mxu0 %v442
      %517 = vmatmul.bf16.gmra.mxu0 %v358
      %v518 = vpop.f32.mrf.mxu0
      %v519 = vadd.f32 %v260, %v518
      %v520 = vpop.f32.mrf.mxu0
      %v521 = vadd.f32 %v260, %v520
      %522 = vmatmul.bf16.gmra.mxu0 %v360
      %v523 = vpop.f32.mrf.mxu0
      %v524 = vadd.f32 %v260, %v523
      %v525 = vpop.f32.mrf.mxu0
      %v526 = vadd.f32 %v260, %v525
      %527 = vmatmul.bf16.gmra.mxu0 %v362
      %v528 = vpop.f32.mrf.mxu0
      %v529 = vadd.f32 %v260, %v528
      %v530 = vpop.f32.mrf.mxu0
      %v531 = vadd.f32 %v260, %v530
      %532 = vmatmul.bf16.gmra.mxu0 %v364
      %v533 = vpop.f32.mrf.mxu0
      %v534 = vadd.f32 %v260, %v533
      %v535 = vpop.f32.mrf.mxu0
      %v536 = vadd.f32 %v260, %v535
      %537 = vmatmul.bf16.gmra.mxu0 %v366
      %v538 = vpop.f32.mrf.mxu0
      %v539 = vadd.f32 %v260, %v538
      %v540 = vpop.f32.mrf.mxu0
      %v541 = vadd.f32 %v260, %v540
      %542 = vmatmul.bf16.gmra.mxu0 %v368
      %v543 = vpop.f32.mrf.mxu0
      %v544 = vadd.f32 %v260, %v543
      %v545 = vpop.f32.mrf.mxu0
      %v546 = vadd.f32 %v260, %v545
      %547 = vmatmul.bf16.gmra.mxu0 %v370
      %v548 = vpop.f32.mrf.mxu0
      %v549 = vadd.f32 %v260, %v548
      %v550 = vpop.f32.mrf.mxu0
      %v551 = vadd.f32 %v260, %v550
      %552 = vmatmul.bf16.gmra.mxu0 %v372
      %v553 = vpop.f32.mrf.mxu0
      %v554 = vadd.f32 %v260, %v553
      %v555 = vpop.f32.mrf.mxu0
      %v556 = vadd.f32 %v260, %v555
      %557 = vmatmul.bf16.gmra.mxu0 %v374
      %v558 = vpop.f32.mrf.mxu0
      %v559 = vadd.f32 %v260, %v558
      %v560 = vpop.f32.mrf.mxu0
      %v561 = vadd.f32 %v260, %v560
      %562 = vmatmul.bf16.gmra.mxu0 %v376
      %v563 = vpop.f32.mrf.mxu0
      %v564 = vadd.f32 %v260, %v563
      %v565 = vpop.f32.mrf.mxu0
      %v566 = vadd.f32 %v260, %v565
      %567 = vmatmul.bf16.gmra.mxu0 %v378
      %v568 = vpop.f32.mrf.mxu0
      %v569 = vadd.f32 %v260, %v568
      %v570 = vpop.f32.mrf.mxu0
      %v571 = vadd.f32 %v260, %v570
      %572 = vmatmul.bf16.gmra.mxu0 %v380
      %v573 = vpop.f32.mrf.mxu0
      %v574 = vadd.f32 %v260, %v573
      %v575 = vpop.f32.mrf.mxu0
      %v576 = vadd.f32 %v260, %v575
      %577 = vmatmul.bf16.gmra.mxu0 %v382
      %v578 = vpop.f32.mrf.mxu0
      %v579 = vadd.f32 %v260, %v578
      %v580 = vpop.f32.mrf.mxu0
      %v581 = vadd.f32 %v260, %v580
      %582 = vmatmul.bf16.gmra.mxu0 %v384
      %v583 = vpop.f32.mrf.mxu0
      %v584 = vadd.f32 %v260, %v583
      %v585 = vpop.f32.mrf.mxu0
      %v586 = vadd.f32 %v260, %v585
      %587 = vmatmul.bf16.gmra.mxu0 %v386
      %v588 = vpop.f32.mrf.mxu0
      %v589 = vadd.f32 %v260, %v588
      %v590 = vpop.f32.mrf.mxu0
      %v591 = vadd.f32 %v260, %v590
      %592 = vmatmul.bf16.gmra.mxu0 %v388
      %v593 = vpop.f32.mrf.mxu0
      %v594 = vadd.f32 %v260, %v593
      %v595 = vpop.f32.mrf.mxu0
      %v596 = vadd.f32 %v260, %v595
      %597 = vdwg.mxu0
      %598 = vmatpush.bf16.msra.mxu0 0
      %599 = vmatpush.bf16.msra.mxu0 0
      %600 = vmatpush.bf16.msra.mxu0 0
      %601 = vmatpush.bf16.msra.mxu0 0
      %602 = vmatpush.bf16.msra.mxu0 0
      %603 = vmatpush.bf16.msra.mxu0 0
      %604 = vmatpush.bf16.msra.mxu0 0
      %605 = vmatpush.bf16.msra.mxu0 %v450
      %606 = vmatmul.bf16.gmra.mxu0 %v462
      %v607 = vpop.f32.mrf.mxu0
      %v608 = vadd.f32 %v519, %v607
      %v609 = vpop.f32.mrf.mxu0
      %v610 = vadd.f32 %v521, %v609
      %611 = vmatmul.bf16.gmra.mxu0 %v465
      %v612 = vpop.f32.mrf.mxu0
      %v613 = vadd.f32 %v524, %v612
      %v614 = vpop.f32.mrf.mxu0
      %v615 = vadd.f32 %v526, %v614
      %616 = vmatmul.bf16.gmra.mxu0 %v468
      %v617 = vpop.f32.mrf.mxu0
      %v618 = vadd.f32 %v529, %v617
      %v619 = vpop.f32.mrf.mxu0
      %v620 = vadd.f32 %v531, %v619
      %621 = vmatmul.bf16.gmra.mxu0 %v471
      %v622 = vpop.f32.mrf.mxu0
      %v623 = vadd.f32 %v534, %v622
      %v624 = vpop.f32.mrf.mxu0
      %v625 = vadd.f32 %v536, %v624
      %626 = vmatmul.bf16.gmra.mxu0 %v474
      %v627 = vpop.f32.mrf.mxu0
      %v628 = vadd.f32 %v539, %v627
      %v629 = vpop.f32.mrf.mxu0
      %v630 = vadd.f32 %v541, %v629
      %631 = vmatmul.bf16.gmra.mxu0 %v477
      %v632 = vpop.f32.mrf.mxu0
      %v633 = vadd.f32 %v544, %v632
      %v634 = vpop.f32.mrf.mxu0
      %v635 = vadd.f32 %v546, %v634
      %636 = vmatmul.bf16.gmra.mxu0 %v480
      %v637 = vpop.f32.mrf.mxu0
      %v638 = vadd.f32 %v549, %v637
      %v639 = vpop.f32.mrf.mxu0
      %v640 = vadd.f32 %v551, %v639
      %641 = vmatmul.bf16.gmra.mxu0 %v483
      %v642 = vpop.f32.mrf.mxu0
      %v643 = vadd.f32 %v554, %v642
      %v644 = vpop.f32.mrf.mxu0
      %v645 = vadd.f32 %v556, %v644
      %646 = vmatmul.bf16.gmra.mxu0 %v486
      %v647 = vpop.f32.mrf.mxu0
      %v648 = vadd.f32 %v559, %v647
      %v649 = vpop.f32.mrf.mxu0
      %v650 = vadd.f32 %v561, %v649
      %651 = vmatmul.bf16.gmra.mxu0 %v489
      %v652 = vpop.f32.mrf.mxu0
      %v653 = vadd.f32 %v564, %v652
      %v654 = vpop.f32.mrf.mxu0
      %v655 = vadd.f32 %v566, %v654
      %656 = vmatmul.bf16.gmra.mxu0 %v492
      %v657 = vpop.f32.mrf.mxu0
      %v658 = vadd.f32 %v569, %v657
      %v659 = vpop.f32.mrf.mxu0
      %v660 = vadd.f32 %v571, %v659
      %661 = vmatmul.bf16.gmra.mxu0 %v495
      %v662 = vpop.f32.mrf.mxu0
      %v663 = vadd.f32 %v574, %v662
      %v664 = vpop.f32.mrf.mxu0
      %v665 = vadd.f32 %v576, %v664
      %666 = vmatmul.bf16.gmra.mxu0 %v498
      %v667 = vpop.f32.mrf.mxu0
      %v668 = vadd.f32 %v579, %v667
      %v669 = vpop.f32.mrf.mxu0
      %v670 = vadd.f32 %v581, %v669
      %671 = vmatmul.bf16.gmra.mxu0 %v501
      %v672 = vpop.f32.mrf.mxu0
      %v673 = vadd.f32 %v584, %v672
      %v674 = vpop.f32.mrf.mxu0
      %v675 = vadd.f32 %v586, %v674
      %676 = vmatmul.bf16.gmra.mxu0 %v504
      %v677 = vpop.f32.mrf.mxu0
      %v678 = vadd.f32 %v589, %v677
      %v679 = vpop.f32.mrf.mxu0
      %v680 = vadd.f32 %v591, %v679
      %681 = vmatmul.bf16.gmra.mxu0 %v507
      %v682 = vpop.f32.mrf.mxu0
      %v683 = vadd.f32 %v594, %v682
      %v684 = vpop.f32.mrf.mxu0
      %v685 = vadd.f32 %v596, %v684
      %686 = vdwg.mxu0
      %v687 = vmax.f32 %v608, 0.0
      %v688 = vmax.f32 %v610, 0.0
      %v689 = vmax.f32 %v613, 0.0
      %v690 = vmax.f32 %v615, 0.0
      %v691 = vmax.f32 %v618, 0.0
      %v692 = vmax.f32 %v620, 0.0
      %v693 = vmax.f32 %v623, 0.0
      %v694 = vmax.f32 %v625, 0.0
      %v695 = vmax.f32 %v628, 0.0
      %v696 = vmax.f32 %v630, 0.0
      %v697 = vmax.f32 %v633, 0.0
      %v698 = vmax.f32 %v635, 0.0
      %v699 = vmax.f32 %v638, 0.0
      %v700 = vmax.f32 %v640, 0.0
      %v701 = vmax.f32 %v643, 0.0
      %v702 = vmax.f32 %v645, 0.0
      %v703 = vmax.f32 %v648, 0.0
      %v704 = vmax.f32 %v650, 0.0
      %v705 = vmax.f32 %v653, 0.0
      %v706 = vmax.f32 %v655, 0.0
      %v707 = vmax.f32 %v658, 0.0
      %v708 = vmax.f32 %v660, 0.0
      %v709 = vmax.f32 %v663, 0.0
      %v710 = vmax.f32 %v665, 0.0
      %v711 = vmax.f32 %v668, 0.0
      %v712 = vmax.f32 %v670, 0.0
      %v713 = vmax.f32 %v673, 0.0
      %v714 = vmax.f32 %v675, 0.0
      %v715 = vmax.f32 %v678, 0.0
      %v716 = vmax.f32 %v680, 0.0
      %v717 = vmax.f32 %v683, 0.0
      %v718 = vmax.f32 %v685, 0.0
      %v719 = vmax.f32 %v687, %v695
      %v720 = vmax.f32 %v688, %v696
      %v721 = vmax.f32 %v689, %v697
      %v722 = vmax.f32 %v690, %v698
      %v723 = vmax.f32 %v691, %v699
      %v724 = vmax.f32 %v692, %v700
      %v725 = vmax.f32 %v693, %v701
      %v726 = vmax.f32 %v694, %v702
      %v727 = vmax.f32 %v703, %v711
      %v728 = vmax.f32 %v704, %v712
      %v729 = vmax.f32 %v705, %v713
      %v730 = vmax.f32 %v706, %v714
      %v731 = vmax.f32 %v707, %v715
      %v732 = vmax.f32 %v708, %v716
      %v733 = vmax.f32 %v709, %v717
      %v734 = vmax.f32 %v710, %v718
      %v735 = vmax.f32 %v719, %v727
      %v736 = vmax.f32 %v720, %v728
      %v737 = vmax.f32 %v721, %v729
      %v738 = vmax.f32 %v722, %v730
      %v739 = vmax.f32 %v723, %v731
      %v740 = vmax.f32 %v724, %v732
      %v741 = vmax.f32 %v725, %v733
      %v742 = vmax.f32 %v726, %v734
      %v743 = vpack.c.bf16 %v735, %v735
      %v744 = vpack.c.bf16 %v736, %v736
      %v745 = vpack.c.bf16 %v737, %v737
      %v746 = vpack.c.bf16 %v738, %v738
      %v747 = vpack.c.bf16 %v739, %v739
      %v748 = vpack.c.bf16 %v740, %v740
      %v749 = vpack.c.bf16 %v741, %v741
      %v750 = vpack.c.bf16 %v742, %v742
      %vm751 = vcmask 257024
      %752 = vst.msk [vmem:[%s206] sm:$0xf] %vm751, %v743
      %753 = vst.msk [vmem:[%s206 + $0x4] sm:$0xf] %vm751, %v744
      %754 = vst.msk [vmem:[%s206 + $0x8] sm:$0xf] %vm751, %v745
      %755 = vst.msk [vmem:[%s206 + $0xc] sm:$0xf] %vm751, %v746
      %756 = vst.msk [vmem:[%s206 + $0x10] sm:$0xf] %vm751, %v747
      %757 = vst.msk [vmem:[%s206 + $0x14] sm:$0xf] %vm751, %v748
      %758 = vst.msk [vmem:[%s206 + $0x18] sm:$0xf] %vm751, %v749
      %759 = vst.msk [vmem:[%s206 + $0x1c] sm:$0xf] %vm751, %v750
      %p760 = scmp.lt.s32.totalorder %s18, 1
      %s761 = scalar_select %p760, %s18, 1
      %p762 = scmp.lt.s32.totalorder %s19, 0
      %s763 = scalar_select %p762, %s19, 0
      %s764 = smul.addr %s763, 8
      %s765 = smul.addr %s761, 8
      %s766 = sadd.s32 %s764, %s765
      %s767 = smul.addr %s766, 4
      %s768 = scalar_lea.vmem %s3, %s767
      // Predicated region
      $region33: #{cat_dog_cnn_forward.4} parent=31 // pred_check
        %p769 = pneg %p116
      $region34: #{cat_dog_cnn_forward.4} parent=31 // pred_check_branch
        %771 = sbr.rel (%p769) target = $region36
      $region35: #{cat_dog_cnn_forward.4} parent=31 // pred_region
        _
      $region36: #{cat_dog_cnn_forward.4} parent=31 // pred_fallthru
        _
    $region32: #{cat_dog_cnn_forward.4} parent=5 // pred_fallthru
      _
    %p772 = scmp.le.s32.totalorder 2, %s9
    // Predicated region
    $region37: #{cat_dog_cnn_forward.4} parent=5 // pred_check
      %p773 = pneg %p772
    $region38: #{cat_dog_cnn_forward.4} parent=5 // pred_check_branch
      %775 = sbr.rel (%p773) target = $region40
    $region39: #{cat_dog_cnn_forward.4} parent=5 // pred_region
      %s776 = ssub.s32 %s9, 2
      // Predicated region
      $region41: #{cat_dog_cnn_forward.4} parent=39 // pred_check
        %p777 = pneg %p122
      $region42: #{cat_dog_cnn_forward.4} parent=39 // pred_check_branch
        %779 = sbr.rel (%p777) target = $region44
      $region43: #{cat_dog_cnn_forward.4} parent=39 // pred_region
        %p780 = scmp.lt.s32.totalorder %s20, 1
        %s781 = scalar_select %p780, %s20, 1
        %p782 = scmp.lt.s32.totalorder %s21, 0
        %s783 = scalar_select %p782, %s21, 0
        %s784 = smul.addr %s783, 8
        %s785 = smul.addr %s781, 8
        %s786 = sadd.s32 %s784, %s785
        %s787 = smul.addr %s786, 4
        %s788 = scalar_lea.vmem %s3, %s787
      $region44: #{cat_dog_cnn_forward.4} parent=39 // pred_fallthru
        _
    $region40: #{cat_dog_cnn_forward.4} parent=5 // pred_fallthru
      _
  $region6: #{cat_dog_cnn_forward.4} parent=0 // loop_footer
    %s13 = sadd.s32 1, %s9
  $region7: #{cat_dog_cnn_forward.4} parent=0 // loop_footer_branch
    %8 = sbr.rel target = $region3
  $region8: #{cat_dog_cnn_forward.4} parent=0 // loop_exit
    _

// kernel: cat_dog_cnn_forward.5
$region0: #{cat_dog_cnn_forward.5}
  #allocation0 [shape = 'u32[]', space=smem, size = 0x4, offset = 0x4, fixed_abs, tag = 'smem constant byte address 0x4 - core index']
  #allocation1 [shape = 'u32[72,128]{1,0:T(1,128)}', space=vmem, size = 0x9000, scoped, tag = 'internal scratch']
  #allocation2 [shape = 'f32[2,128]{1,0:T(2,128)}', space=vmem, size = 0x400, scoped, tag = 'scratch operand']
  %s0 = inlined_call_operand.vmem [shape: bf16[2,2048], index: 0, kind: input, shape index: {}]
  %s1 = inlined_call_operand.vmem [shape: bf16[2048,128], index: 1, kind: input, shape index: {}]
  %s2 = inlined_call_operand.vmem [shape: f32[1,128], index: 2, kind: input, shape index: {}]
  %s3 = inlined_call_operand.vmem [shape: bf16[128,2], index: 3, kind: input, shape index: {}]
  %s4 = inlined_call_operand.vmem [shape: f32[1,2], index: 4, kind: input, shape index: {}]
  %s5 = inlined_call_operand.hbm [shape: f32[2,2], index: 5, kind: output, shape index: {}]
  %s6 = sld [smem:[#allocation0]]
  $region38: #{cat_dog_cnn_forward.5} parent=0
    _
  %s8 = ssub.s32 1, %s6
  %s9 = scalar_select 0, %s8, %s6
  $region1: #{cat_dog_cnn_forward.5} parent=0
    #allocation3 [shape = 'u8[1024]{0}', space=vmem, size = 0x400, scoped, tag = 'output window, operand 0, single buffered']
    #allocation4 [shape = 's32[1]{0}', space=sflag, size = 0x4, scoped, tag = 'scoped memory for cat_dog_cnn_forward.5']
    %10 = vsyncpa [#allocation4], 0
    // Predicated region
    $region2: #{cat_dog_cnn_forward.5} parent=1 // pred_check
      _
    $region3: #{cat_dog_cnn_forward.5} parent=1 // pred_check_branch
      %12 = sbr.rel (0) target = $region5
    $region4: #{cat_dog_cnn_forward.5} parent=1 // pred_region
      _
    $region5: #{cat_dog_cnn_forward.5} parent=1 // pred_fallthru
      _
    // Predicated region
    $region6: #{cat_dog_cnn_forward.5} parent=1 // pred_check
      _
    $region7: #{cat_dog_cnn_forward.5} parent=1 // pred_check_branch
      %14 = sbr.rel (0) target = $region9
    $region8: #{cat_dog_cnn_forward.5} parent=1 // pred_region
      _
    $region9: #{cat_dog_cnn_forward.5} parent=1 // pred_fallthru
      _
    // Predicated region
    $region10: #{cat_dog_cnn_forward.5} parent=1 // pred_check
      _
    $region11: #{cat_dog_cnn_forward.5} parent=1 // pred_check_branch
      %16 = sbr.rel (0) target = $region13
    $region12: #{cat_dog_cnn_forward.5} parent=1 // pred_region
      _
    $region13: #{cat_dog_cnn_forward.5} parent=1 // pred_fallthru
      _
    // Predicated region
    $region14: #{cat_dog_cnn_forward.5} parent=1 // pred_check
      _
    $region15: #{cat_dog_cnn_forward.5} parent=1 // pred_check_branch
      %18 = sbr.rel (0) target = $region17
    $region16: #{cat_dog_cnn_forward.5} parent=1 // pred_region
      _
    $region17: #{cat_dog_cnn_forward.5} parent=1 // pred_fallthru
      _
    // Predicated region
    $region18: #{cat_dog_cnn_forward.5} parent=1 // pred_check
      _
    $region19: #{cat_dog_cnn_forward.5} parent=1 // pred_check_branch
      %20 = sbr.rel (0) target = $region21
    $region20: #{cat_dog_cnn_forward.5} parent=1 // pred_region
      _
    $region21: #{cat_dog_cnn_forward.5} parent=1 // pred_fallthru
      _
    %p21 = scmp.eq.s32.totalorder 0, 0
    // Predicated region
    $region22: #{cat_dog_cnn_forward.5} parent=1 // pred_check
      %p22 = pneg %p21
    $region23: #{cat_dog_cnn_forward.5} parent=1 // pred_check_branch
      %24 = sbr.rel (%p22) target = $region25
    $region24: #{cat_dog_cnn_forward.5} parent=1 // pred_region
      %25 = vst [vmem:[#allocation2] sm:$0x3] 0.0
    $region25: #{cat_dog_cnn_forward.5} parent=1 // pred_fallthru
      _
    %v26 = vld [vmem:[#allocation2] sm:$0x3]
    %v27 = vld [vmem:[%s0] sm:$0xff]
    %v28 = vld [vmem:[%s0 + $0x8] sm:$0xff]
    %v29 = vld [vmem:[%s1] sm:$0xf]
    %v30 = vld [vmem:[%s1 + $0x4] sm:$0xf]
    %v31 = vld [vmem:[%s1 + $0x8] sm:$0xf]
    %v32 = vld [vmem:[%s1 + $0xc] sm:$0xf]
    %v33 = vld [vmem:[%s1 + $0x10] sm:$0xf]
    %v34 = vld [vmem:[%s1 + $0x14] sm:$0xf]
    %v35 = vld [vmem:[%s1 + $0x18] sm:$0xf]
    %v36 = vld [vmem:[%s1 + $0x1c] sm:$0xf]
    %v37 = vld [vmem:[%s1 + $0x20] sm:$0xf]
    %v38 = vld [vmem:[%s1 + $0x24] sm:$0xf]
    %v39 = vld [vmem:[%s1 + $0x28] sm:$0xf]
    %v40 = vld [vmem:[%s1 + $0x2c] sm:$0xf]
    %v41 = vld [vmem:[%s1 + $0x30] sm:$0xf]
    %v42 = vld [vmem:[%s1 + $0x34] sm:$0xf]
    %v43 = vld [vmem:[%s1 + $0x38] sm:$0xf]
    %v44 = vld [vmem:[%s1 + $0x3c] sm:$0xf]
    %v45 = vld [vmem:[%s1 + $0x40] sm:$0xf]
    %v46 = vld [vmem:[%s1 + $0x44] sm:$0xf]
    %v47 = vld [vmem:[%s1 + $0x48] sm:$0xf]
    %v48 = vld [vmem:[%s1 + $0x4c] sm:$0xf]
    %v49 = vld [vmem:[%s1 + $0x50] sm:$0xf]
    %v50 = vld [vmem:[%s1 + $0x54] sm:$0xf]
    %v51 = vld [vmem:[%s1 + $0x58] sm:$0xf]
    %v52 = vld [vmem:[%s1 + $0x5c] sm:$0xf]
    %v53 = vld [vmem:[%s1 + $0x60] sm:$0xf]
    %v54 = vld [vmem:[%s1 + $0x64] sm:$0xf]
    %v55 = vld [vmem:[%s1 + $0x68] sm:$0xf]
    %v56 = vld [vmem:[%s1 + $0x6c] sm:$0xf]
    %v57 = vld [vmem:[%s1 + $0x70] sm:$0xf]
    %v58 = vld [vmem:[%s1 + $0x74] sm:$0xf]
    %v59 = vld [vmem:[%s1 + $0x78] sm:$0xf]
    %v60 = vld [vmem:[%s1 + $0x7c] sm:$0xf]
    %v61 = vld [vmem:[%s1 + $0x80] sm:$0xf]
    %v62 = vld [vmem:[%s1 + $0x84] sm:$0xf]
    %v63 = vld [vmem:[%s1 + $0x88] sm:$0xf]
    %v64 = vld [vmem:[%s1 + $0x8c] sm:$0xf]
    %v65 = vld [vmem:[%s1 + $0x90] sm:$0xf]
    %v66 = vld [vmem:[%s1 + $0x94] sm:$0xf]
    %v67 = vld [vmem:[%s1 + $0x98] sm:$0xf]
    %v68 = vld [vmem:[%s1 + $0x9c] sm:$0xf]
    %v69 = vld [vmem:[%s1 + $0xa0] sm:$0xf]
    %v70 = vld [vmem:[%s1 + $0xa4] sm:$0xf]
    %v71 = vld [vmem:[%s1 + $0xa8] sm:$0xf]
    %v72 = vld [vmem:[%s1 + $0xac] sm:$0xf]
    %v73 = vld [vmem:[%s1 + $0xb0] sm:$0xf]
    %v74 = vld [vmem:[%s1 + $0xb4] sm:$0xf]
    %v75 = vld [vmem:[%s1 + $0xb8] sm:$0xf]
    %v76 = vld [vmem:[%s1 + $0xbc] sm:$0xf]
    %v77 = vld [vmem:[%s1 + $0xc0] sm:$0xf]
    %v78 = vld [vmem:[%s1 + $0xc4] sm:$0xf]
    %v79 = vld [vmem:[%s1 + $0xc8] sm:$0xf]
    %v80 = vld [vmem:[%s1 + $0xcc] sm:$0xf]
    %v81 = vld [vmem:[%s1 + $0xd0] sm:$0xf]
    %v82 = vld [vmem:[%s1 + $0xd4] sm:$0xf]
    %v83 = vld [vmem:[%s1 + $0xd8] sm:$0xf]
    %v84 = vld [vmem:[%s1 + $0xdc] sm:$0xf]
    %v85 = vld [vmem:[%s1 + $0xe0] sm:$0xf]
    %v86 = vld [vmem:[%s1 + $0xe4] sm:$0xf]
    %v87 = vld [vmem:[%s1 + $0xe8] sm:$0xf]
    %v88 = vld [vmem:[%s1 + $0xec] sm:$0xf]
    %v89 = vld [vmem:[%s1 + $0xf0] sm:$0xf]
    %v90 = vld [vmem:[%s1 + $0xf4] sm:$0xf]
    %v91 = vld [vmem:[%s1 + $0xf8] sm:$0xf]
    %v92 = vld [vmem:[%s1 + $0xfc] sm:$0xf]
    %v93 = vld [vmem:[%s1 + $0x100] sm:$0xf]
    %v94 = vld [vmem:[%s1 + $0x104] sm:$0xf]
    %v95 = vld [vmem:[%s1 + $0x108] sm:$0xf]
    %v96 = vld [vmem:[%s1 + $0x10c] sm:$0xf]
    %v97 = vld [vmem:[%s1 + $0x110] sm:$0xf]
    %v98 = vld [vmem:[%s1 + $0x114] sm:$0xf]
    %v99 = vld [vmem:[%s1 + $0x118] sm:$0xf]
    %v100 = vld [vmem:[%s1 + $0x11c] sm:$0xf]
    %v101 = vld [vmem:[%s1 + $0x120] sm:$0xf]
    %v102 = vld [vmem:[%s1 + $0x124] sm:$0xf]
    %v103 = vld [vmem:[%s1 + $0x128] sm:$0xf]
    %v104 = vld [vmem:[%s1 + $0x12c] sm:$0xf]
    %v105 = vld [vmem:[%s1 + $0x130] sm:$0xf]
    %v106 = vld [vmem:[%s1 + $0x134] sm:$0xf]
    %v107 = vld [vmem:[%s1 + $0x138] sm:$0xf]
    %v108 = vld [vmem:[%s1 + $0x13c] sm:$0xf]
    %v109 = vld [vmem:[%s1 + $0x140] sm:$0xf]
    %v110 = vld [vmem:[%s1 + $0x144] sm:$0xf]
    %v111 = vld [vmem:[%s1 + $0x148] sm:$0xf]
    %v112 = vld [vmem:[%s1 + $0x14c] sm:$0xf]
    %v113 = vld [vmem:[%s1 + $0x150] sm:$0xf]
    %v114 = vld [vmem:[%s1 + $0x154] sm:$0xf]
    %v115 = vld [vmem:[%s1 + $0x158] sm:$0xf]
    %v116 = vld [vmem:[%s1 + $0x15c] sm:$0xf]
    %v117 = vld [vmem:[%s1 + $0x160] sm:$0xf]
    %v118 = vld [vmem:[%s1 + $0x164] sm:$0xf]
    %v119 = vld [vmem:[%s1 + $0x168] sm:$0xf]
    %v120 = vld [vmem:[%s1 + $0x16c] sm:$0xf]
    %v121 = vld [vmem:[%s1 + $0x170] sm:$0xf]
    %v122 = vld [vmem:[%s1 + $0x174] sm:$0xf]
    %v123 = vld [vmem:[%s1 + $0x178] sm:$0xf]
    %v124 = vld [vmem:[%s1 + $0x17c] sm:$0xf]
    %v125 = vld [vmem:[%s1 + $0x180] sm:$0xf]
    %v126 = vld [vmem:[%s1 + $0x184] sm:$0xf]
    %v127 = vld [vmem:[%s1 + $0x188] sm:$0xf]
    %v128 = vld [vmem:[%s1 + $0x18c] sm:$0xf]
    %v129 = vld [vmem:[%s1 + $0x190] sm:$0xf]
    %v130 = vld [vmem:[%s1 + $0x194] sm:$0xf]
    %v131 = vld [vmem:[%s1 + $0x198] sm:$0xf]
    %v132 = vld [vmem:[%s1 + $0x19c] sm:$0xf]
    %v133 = vld [vmem:[%s1 + $0x1a0] sm:$0xf]
    %v134 = vld [vmem:[%s1 + $0x1a4] sm:$0xf]
    %v135 = vld [vmem:[%s1 + $0x1a8] sm:$0xf]
    %v136 = vld [vmem:[%s1 + $0x1ac] sm:$0xf]
    %v137 = vld [vmem:[%s1 + $0x1b0] sm:$0xf]
    %v138 = vld [vmem:[%s1 + $0x1b4] sm:$0xf]
    %v139 = vld [vmem:[%s1 + $0x1b8] sm:$0xf]
    %v140 = vld [vmem:[%s1 + $0x1bc] sm:$0xf]
    %v141 = vld [vmem:[%s1 + $0x1c0] sm:$0xf]
    %v142 = vld [vmem:[%s1 + $0x1c4] sm:$0xf]
    %v143 = vld [vmem:[%s1 + $0x1c8] sm:$0xf]
    %v144 = vld [vmem:[%s1 + $0x1cc] sm:$0xf]
    %v145 = vld [vmem:[%s1 + $0x1d0] sm:$0xf]
    %v146 = vld [vmem:[%s1 + $0x1d4] sm:$0xf]
    %v147 = vld [vmem:[%s1 + $0x1d8] sm:$0xf]
    %v148 = vld [vmem:[%s1 + $0x1dc] sm:$0xf]
    %v149 = vld [vmem:[%s1 + $0x1e0] sm:$0xf]
    %v150 = vld [vmem:[%s1 + $0x1e4] sm:$0xf]
    %v151 = vld [vmem:[%s1 + $0x1e8] sm:$0xf]
    %v152 = vld [vmem:[%s1 + $0x1ec] sm:$0xf]
    %v153 = vld [vmem:[%s1 + $0x1f0] sm:$0xf]
    %v154 = vld [vmem:[%s1 + $0x1f4] sm:$0xf]
    %v155 = vld [vmem:[%s1 + $0x1f8] sm:$0xf]
    %v156 = vld [vmem:[%s1 + $0x1fc] sm:$0xf]
    %v157 = vld [vmem:[%s1 + $0x200] sm:$0xf]
    %v158 = vld [vmem:[%s1 + $0x204] sm:$0xf]
    %v159 = vld [vmem:[%s1 + $0x208] sm:$0xf]
    %v160 = vld [vmem:[%s1 + $0x20c] sm:$0xf]
    %v161 = vld [vmem:[%s1 + $0x210] sm:$0xf]
    %v162 = vld [vmem:[%s1 + $0x214] sm:$0xf]
    %v163 = vld [vmem:[%s1 + $0x218] sm:$0xf]
    %v164 = vld [vmem:[%s1 + $0x21c] sm:$0xf]
    %v165 = vld [vmem:[%s1 + $0x220] sm:$0xf]
    %v166 = vld [vmem:[%s1 + $0x224] sm:$0xf]
    %v167 = vld [vmem:[%s1 + $0x228] sm:$0xf]
    %v168 = vld [vmem:[%s1 + $0x22c] sm:$0xf]
    %v169 = vld [vmem:[%s1 + $0x230] sm:$0xf]
    %v170 = vld [vmem:[%s1 + $0x234] sm:$0xf]
    %v171 = vld [vmem:[%s1 + $0x238] sm:$0xf]
    %v172 = vld [vmem:[%s1 + $0x23c] sm:$0xf]
    %v173 = vld [vmem:[%s1 + $0x240] sm:$0xf]
    %v174 = vld [vmem:[%s1 + $0x244] sm:$0xf]
    %v175 = vld [vmem:[%s1 + $0x248] sm:$0xf]
    %v176 = vld [vmem:[%s1 + $0x24c] sm:$0xf]
    %v177 = vld [vmem:[%s1 + $0x250] sm:$0xf]
    %v178 = vld [vmem:[%s1 + $0x254] sm:$0xf]
    %v179 = vld [vmem:[%s1 + $0x258] sm:$0xf]
    %v180 = vld [vmem:[%s1 + $0x25c] sm:$0xf]
    %v181 = vld [vmem:[%s1 + $0x260] sm:$0xf]
    %v182 = vld [vmem:[%s1 + $0x264] sm:$0xf]
    %v183 = vld [vmem:[%s1 + $0x268] sm:$0xf]
    %v184 = vld [vmem:[%s1 + $0x26c] sm:$0xf]
    %v185 = vld [vmem:[%s1 + $0x270] sm:$0xf]
    %v186 = vld [vmem:[%s1 + $0x274] sm:$0xf]
    %v187 = vld [vmem:[%s1 + $0x278] sm:$0xf]
    %v188 = vld [vmem:[%s1 + $0x27c] sm:$0xf]
    %v189 = vld [vmem:[%s1 + $0x280] sm:$0xf]
    %v190 = vld [vmem:[%s1 + $0x284] sm:$0xf]
    %v191 = vld [vmem:[%s1 + $0x288] sm:$0xf]
    %v192 = vld [vmem:[%s1 + $0x28c] sm:$0xf]
    %v193 = vld [vmem:[%s1 + $0x290] sm:$0xf]
    %v194 = vld [vmem:[%s1 + $0x294] sm:$0xf]
    %v195 = vld [vmem:[%s1 + $0x298] sm:$0xf]
    %v196 = vld [vmem:[%s1 + $0x29c] sm:$0xf]
    %v197 = vld [vmem:[%s1 + $0x2a0] sm:$0xf]
    %v198 = vld [vmem:[%s1 + $0x2a4] sm:$0xf]
    %v199 = vld [vmem:[%s1 + $0x2a8] sm:$0xf]
    %v200 = vld [vmem:[%s1 + $0x2ac] sm:$0xf]
    %v201 = vld [vmem:[%s1 + $0x2b0] sm:$0xf]
    %v202 = vld [vmem:[%s1 + $0x2b4] sm:$0xf]
    %v203 = vld [vmem:[%s1 + $0x2b8] sm:$0xf]
    %v204 = vld [vmem:[%s1 + $0x2bc] sm:$0xf]
    %v205 = vld [vmem:[%s1 + $0x2c0] sm:$0xf]
    %v206 = vld [vmem:[%s1 + $0x2c4] sm:$0xf]
    %v207 = vld [vmem:[%s1 + $0x2c8] sm:$0xf]
    %v208 = vld [vmem:[%s1 + $0x2cc] sm:$0xf]
    %v209 = vld [vmem:[%s1 + $0x2d0] sm:$0xf]
    %v210 = vld [vmem:[%s1 + $0x2d4] sm:$0xf]
    %v211 = vld [vmem:[%s1 + $0x2d8] sm:$0xf]
    %v212 = vld [vmem:[%s1 + $0x2dc] sm:$0xf]
    %v213 = vld [vmem:[%s1 + $0x2e0] sm:$0xf]
    %v214 = vld [vmem:[%s1 + $0x2e4] sm:$0xf]
    %v215 = vld [vmem:[%s1 + $0x2e8] sm:$0xf]
    %v216 = vld [vmem:[%s1 + $0x2ec] sm:$0xf]
    %v217 = vld [vmem:[%s1 + $0x2f0] sm:$0xf]
    %v218 = vld [vmem:[%s1 + $0x2f4] sm:$0xf]
    %v219 = vld [vmem:[%s1 + $0x2f8] sm:$0xf]
    %v220 = vld [vmem:[%s1 + $0x2fc] sm:$0xf]
    %v221 = vld [vmem:[%s1 + $0x300] sm:$0xf]
    %v222 = vld [vmem:[%s1 + $0x304] sm:$0xf]
    %v223 = vld [vmem:[%s1 + $0x308] sm:$0xf]
    %v224 = vld [vmem:[%s1 + $0x30c] sm:$0xf]
    %v225 = vld [vmem:[%s1 + $0x310] sm:$0xf]
    %v226 = vld [vmem:[%s1 + $0x314] sm:$0xf]
    %v227 = vld [vmem:[%s1 + $0x318] sm:$0xf]
    %v228 = vld [vmem:[%s1 + $0x31c] sm:$0xf]
    %v229 = vld [vmem:[%s1 + $0x320] sm:$0xf]
    %v230 = vld [vmem:[%s1 + $0x324] sm:$0xf]
    %v231 = vld [vmem:[%s1 + $0x328] sm:$0xf]
    %v232 = vld [vmem:[%s1 + $0x32c] sm:$0xf]
    %v233 = vld [vmem:[%s1 + $0x330] sm:$0xf]
    %v234 = vld [vmem:[%s1 + $0x334] sm:$0xf]
    %v235 = vld [vmem:[%s1 + $0x338] sm:$0xf]
    %v236 = vld [vmem:[%s1 + $0x33c] sm:$0xf]
    %v237 = vld [vmem:[%s1 + $0x340] sm:$0xf]
    %v238 = vld [vmem:[%s1 + $0x344] sm:$0xf]
    %v239 = vld [vmem:[%s1 + $0x348] sm:$0xf]
    %v240 = vld [vmem:[%s1 + $0x34c] sm:$0xf]
    %v241 = vld [vmem:[%s1 + $0x350] sm:$0xf]
    %v242 = vld [vmem:[%s1 + $0x354] sm:$0xf]
    %v243 = vld [vmem:[%s1 + $0x358] sm:$0xf]
    %v244 = vld [vmem:[%s1 + $0x35c] sm:$0xf]
    %v245 = vld [vmem:[%s1 + $0x360] sm:$0xf]
    %v246 = vld [vmem:[%s1 + $0x364] sm:$0xf]
    %v247 = vld [vmem:[%s1 + $0x368] sm:$0xf]
    %v248 = vld [vmem:[%s1 + $0x36c] sm:$0xf]
    %v249 = vld [vmem:[%s1 + $0x370] sm:$0xf]
    %v250 = vld [vmem:[%s1 + $0x374] sm:$0xf]
    %v251 = vld [vmem:[%s1 + $0x378] sm:$0xf]
    %v252 = vld [vmem:[%s1 + $0x37c] sm:$0xf]
    %v253 = vld [vmem:[%s1 + $0x380] sm:$0xf]
    %v254 = vld [vmem:[%s1 + $0x384] sm:$0xf]
    %v255 = vld [vmem:[%s1 + $0x388] sm:$0xf]
    %v256 = vld [vmem:[%s1 + $0x38c] sm:$0xf]
    %v257 = vld [vmem:[%s1 + $0x390] sm:$0xf]
    %v258 = vld [vmem:[%s1 + $0x394] sm:$0xf]
    %v259 = vld [vmem:[%s1 + $0x398] sm:$0xf]
    %v260 = vld [vmem:[%s1 + $0x39c] sm:$0xf]
    %v261 = vld [vmem:[%s1 + $0x3a0] sm:$0xf]
    %v262 = vld [vmem:[%s1 + $0x3a4] sm:$0xf]
    %v263 = vld [vmem:[%s1 + $0x3a8] sm:$0xf]
    %v264 = vld [vmem:[%s1 + $0x3ac] sm:$0xf]
    %v265 = vld [vmem:[%s1 + $0x3b0] sm:$0xf]
    %v266 = vld [vmem:[%s1 + $0x3b4] sm:$0xf]
    %v267 = vld [vmem:[%s1 + $0x3b8] sm:$0xf]
    %v268 = vld [vmem:[%s1 + $0x3bc] sm:$0xf]
    %v269 = vld [vmem:[%s1 + $0x3c0] sm:$0xf]
    %v270 = vld [vmem:[%s1 + $0x3c4] sm:$0xf]
    %v271 = vld [vmem:[%s1 + $0x3c8] sm:$0xf]
    %v272 = vld [vmem:[%s1 + $0x3cc] sm:$0xf]
    %v273 = vld [vmem:[%s1 + $0x3d0] sm:$0xf]
    %v274 = vld [vmem:[%s1 + $0x3d4] sm:$0xf]
    %v275 = vld [vmem:[%s1 + $0x3d8] sm:$0xf]
    %v276 = vld [vmem:[%s1 + $0x3dc] sm:$0xf]
    %v277 = vld [vmem:[%s1 + $0x3e0] sm:$0xf]
    %v278 = vld [vmem:[%s1 + $0x3e4] sm:$0xf]
    %v279 = vld [vmem:[%s1 + $0x3e8] sm:$0xf]
    %v280 = vld [vmem:[%s1 + $0x3ec] sm:$0xf]
    %v281 = vld [vmem:[%s1 + $0x3f0] sm:$0xf]
    %v282 = vld [vmem:[%s1 + $0x3f4] sm:$0xf]
    %v283 = vld [vmem:[%s1 + $0x3f8] sm:$0xf]
    %v284 = vld [vmem:[%s1 + $0x3fc] sm:$0xf]
    %286 = vst [vmem:[#allocation1] ss:$9 sm:$0xff] %v27
    %v287 = vld [vmem:[#allocation1] sm:$0xff]
    %v288 = vld [vmem:[#allocation1 + $0x9] sm:$0xff]
    %v289 = vld [vmem:[#allocation1 + $0x12] sm:$0xff]
    %v290 = vld [vmem:[#allocation1 + $0x1b] sm:$0xff]
    %v291 = vld [vmem:[#allocation1 + $0x24] sm:$0xff]
    %v292 = vld [vmem:[#allocation1 + $0x2d] sm:$0xff]
    %v293 = vld [vmem:[#allocation1 + $0x36] sm:$0xff]
    %v294 = vld [vmem:[#allocation1 + $0x3f] sm:$0xff]
    %296 = vst [vmem:[#allocation1] ss:$9 sm:$0xff] %v28
    %v297 = vld [vmem:[#allocation1] sm:$0xff]
    %v298 = vld [vmem:[#allocation1 + $0x9] sm:$0xff]
    %v299 = vld [vmem:[#allocation1 + $0x12] sm:$0xff]
    %v300 = vld [vmem:[#allocation1 + $0x1b] sm:$0xff]
    %v301 = vld [vmem:[#allocation1 + $0x24] sm:$0xff]
    %v302 = vld [vmem:[#allocation1 + $0x2d] sm:$0xff]
    %v303 = vld [vmem:[#allocation1 + $0x36] sm:$0xff]
    %v304 = vld [vmem:[#allocation1 + $0x3f] sm:$0xff]
    %v577 = vunpack.c.l.b16 %v29
    %v578 = vunpack.c.l.b16 %v30
    %v579 = vunpack.c.l.b16 %v31
    %v580 = vunpack.c.l.b16 %v32
    %v581 = vunpack.c.l.b16 %v33
    %v582 = vunpack.c.l.b16 %v34
    %v583 = vunpack.c.l.b16 %v35
    %v584 = vunpack.c.l.b16 %v36
    %v585 = vunpack.c.l.b16 %v37
    %v586 = vunpack.c.l.b16 %v38
    %v587 = vunpack.c.l.b16 %v39
    %v588 = vunpack.c.l.b16 %v40
    %v589 = vunpack.c.l.b16 %v41
    %v590 = vunpack.c.l.b16 %v42
    %v591 = vunpack.c.l.b16 %v43
    %v592 = vunpack.c.l.b16 %v44
    %v593 = vunpack.c.l.b16 %v45
    %v594 = vunpack.c.l.b16 %v46
    %v595 = vunpack.c.l.b16 %v47
    %v596 = vunpack.c.l.b16 %v48
    %v597 = vunpack.c.l.b16 %v49
    %v598 = vunpack.c.l.b16 %v50
    %v599 = vunpack.c.l.b16 %v51
    %v600 = vunpack.c.l.b16 %v52
    %v601 = vunpack.c.l.b16 %v53
    %v602 = vunpack.c.l.b16 %v54
    %v603 = vunpack.c.l.b16 %v55
    %v604 = vunpack.c.l.b16 %v56
    %v605 = vunpack.c.l.b16 %v57
    %v606 = vunpack.c.l.b16 %v58
    %v607 = vunpack.c.l.b16 %v59
    %v608 = vunpack.c.l.b16 %v60
    %v609 = vunpack.c.l.b16 %v61
    %v610 = vunpack.c.l.b16 %v62
    %v611 = vunpack.c.l.b16 %v63
    %v612 = vunpack.c.l.b16 %v64
    %v613 = vunpack.c.l.b16 %v65
    %v614 = vunpack.c.l.b16 %v66
    %v615 = vunpack.c.l.b16 %v67
    %v616 = vunpack.c.l.b16 %v68
    %v617 = vunpack.c.l.b16 %v69
    %v618 = vunpack.c.l.b16 %v70
    %v619 = vunpack.c.l.b16 %v71
    %v620 = vunpack.c.l.b16 %v72
    %v621 = vunpack.c.l.b16 %v73
    %v622 = vunpack.c.l.b16 %v74
    %v623 = vunpack.c.l.b16 %v75
    %v624 = vunpack.c.l.b16 %v76
    %v625 = vunpack.c.l.b16 %v77
    %v626 = vunpack.c.l.b16 %v78
    %v627 = vunpack.c.l.b16 %v79
    %v628 = vunpack.c.l.b16 %v80
    %v629 = vunpack.c.l.b16 %v81
    %v630 = vunpack.c.l.b16 %v82
    %v631 = vunpack.c.l.b16 %v83
    %v632 = vunpack.c.l.b16 %v84
    %v633 = vunpack.c.l.b16 %v85
    %v634 = vunpack.c.l.b16 %v86
    %v635 = vunpack.c.l.b16 %v87
    %v636 = vunpack.c.l.b16 %v88
    %v637 = vunpack.c.l.b16 %v89
    %v638 = vunpack.c.l.b16 %v90
    %v639 = vunpack.c.l.b16 %v91
    %v640 = vunpack.c.l.b16 %v92
    %v641 = vunpack.c.l.b16 %v93
    %v642 = vunpack.c.l.b16 %v94
    %v643 = vunpack.c.l.b16 %v95
    %v644 = vunpack.c.l.b16 %v96
    %v645 = vunpack.c.l.b16 %v97
    %v646 = vunpack.c.l.b16 %v98
    %v647 = vunpack.c.l.b16 %v99
    %v648 = vunpack.c.l.b16 %v100
    %v649 = vunpack.c.l.b16 %v101
    %v650 = vunpack.c.l.b16 %v102
    %v651 = vunpack.c.l.b16 %v103
    %v652 = vunpack.c.l.b16 %v104
    %v653 = vunpack.c.l.b16 %v105
    %v654 = vunpack.c.l.b16 %v106
    %v655 = vunpack.c.l.b16 %v107
    %v656 = vunpack.c.l.b16 %v108
    %v657 = vunpack.c.l.b16 %v109
    %v658 = vunpack.c.l.b16 %v110
    %v659 = vunpack.c.l.b16 %v111
    %v660 = vunpack.c.l.b16 %v112
    %v661 = vunpack.c.l.b16 %v113
    %v662 = vunpack.c.l.b16 %v114
    %v663 = vunpack.c.l.b16 %v115
    %v664 = vunpack.c.l.b16 %v116
    %v665 = vunpack.c.l.b16 %v117
    %v666 = vunpack.c.l.b16 %v118
    %v667 = vunpack.c.l.b16 %v119
    %v668 = vunpack.c.l.b16 %v120
    %v669 = vunpack.c.l.b16 %v121
    %v670 = vunpack.c.l.b16 %v122
    %v671 = vunpack.c.l.b16 %v123
    %v672 = vunpack.c.l.b16 %v124
    %v673 = vunpack.c.l.b16 %v125
    %v674 = vunpack.c.l.b16 %v126
    %v675 = vunpack.c.l.b16 %v127
    %v676 = vunpack.c.l.b16 %v128
    %v677 = vunpack.c.l.b16 %v129
    %v678 = vunpack.c.l.b16 %v130
    %v679 = vunpack.c.l.b16 %v131
    %v680 = vunpack.c.l.b16 %v132
    %v681 = vunpack.c.l.b16 %v133
    %v682 = vunpack.c.l.b16 %v134
    %v683 = vunpack.c.l.b16 %v135
    %v684 = vunpack.c.l.b16 %v136
    %v685 = vunpack.c.l.b16 %v137
    %v686 = vunpack.c.l.b16 %v138
    %v687 = vunpack.c.l.b16 %v139
    %v688 = vunpack.c.l.b16 %v140
    %v689 = vunpack.c.l.b16 %v141
    %v690 = vunpack.c.l.b16 %v142
    %v691 = vunpack.c.l.b16 %v143
    %v692 = vunpack.c.l.b16 %v144
    %v693 = vunpack.c.l.b16 %v145
    %v694 = vunpack.c.l.b16 %v146
    %v695 = vunpack.c.l.b16 %v147
    %v696 = vunpack.c.l.b16 %v148
    %v697 = vunpack.c.l.b16 %v149
    %v698 = vunpack.c.l.b16 %v150
    %v699 = vunpack.c.l.b16 %v151
    %v700 = vunpack.c.l.b16 %v152
    %v701 = vunpack.c.l.b16 %v153
    %v702 = vunpack.c.l.b16 %v154
    %v703 = vunpack.c.l.b16 %v155
    %v704 = vunpack.c.l.b16 %v156
    %v705 = vunpack.c.l.b16 %v157
    %v706 = vunpack.c.l.b16 %v158
    %v707 = vunpack.c.l.b16 %v159
    %v708 = vunpack.c.l.b16 %v160
    %v709 = vunpack.c.l.b16 %v161
    %v710 = vunpack.c.l.b16 %v162
    %v711 = vunpack.c.l.b16 %v163
    %v712 = vunpack.c.l.b16 %v164
    %v713 = vunpack.c.l.b16 %v165
    %v714 = vunpack.c.l.b16 %v166
    %v715 = vunpack.c.l.b16 %v167
    %v716 = vunpack.c.l.b16 %v168
    %v717 = vunpack.c.l.b16 %v169
    %v718 = vunpack.c.l.b16 %v170
    %v719 = vunpack.c.l.b16 %v171
    %v720 = vunpack.c.l.b16 %v172
    %v721 = vunpack.c.l.b16 %v173
    %v722 = vunpack.c.l.b16 %v174
    %v723 = vunpack.c.l.b16 %v175
    %v724 = vunpack.c.l.b16 %v176
    %v725 = vunpack.c.l.b16 %v177
    %v726 = vunpack.c.l.b16 %v178
    %v727 = vunpack.c.l.b16 %v179
    %v728 = vunpack.c.l.b16 %v180
    %v729 = vunpack.c.l.b16 %v181
    %v730 = vunpack.c.l.b16 %v182
    %v731 = vunpack.c.l.b16 %v183
    %v732 = vunpack.c.l.b16 %v184
    %v733 = vunpack.c.l.b16 %v185
    %v734 = vunpack.c.l.b16 %v186
    %v735 = vunpack.c.l.b16 %v187
    %v736 = vunpack.c.l.b16 %v188
    %v737 = vunpack.c.l.b16 %v189
    %v738 = vunpack.c.l.b16 %v190
    %v739 = vunpack.c.l.b16 %v191
    %v740 = vunpack.c.l.b16 %v192
    %v741 = vunpack.c.l.b16 %v193
    %v742 = vunpack.c.l.b16 %v194
    %v743 = vunpack.c.l.b16 %v195
    %v744 = vunpack.c.l.b16 %v196
    %v745 = vunpack.c.l.b16 %v197
    %v746 = vunpack.c.l.b16 %v198
    %v747 = vunpack.c.l.b16 %v199
    %v748 = vunpack.c.l.b16 %v200
    %v749 = vunpack.c.l.b16 %v201
    %v750 = vunpack.c.l.b16 %v202
    %v751 = vunpack.c.l.b16 %v203
    %v752 = vunpack.c.l.b16 %v204
    %v753 = vunpack.c.l.b16 %v205
    %v754 = vunpack.c.l.b16 %v206
    %v755 = vunpack.c.l.b16 %v207
    %v756 = vunpack.c.l.b16 %v208
    %v757 = vunpack.c.l.b16 %v209
    %v758 = vunpack.c.l.b16 %v210
    %v759 = vunpack.c.l.b16 %v211
    %v760 = vunpack.c.l.b16 %v212
    %v761 = vunpack.c.l.b16 %v213
    %v762 = vunpack.c.l.b16 %v214
    %v763 = vunpack.c.l.b16 %v215
    %v764 = vunpack.c.l.b16 %v216
    %v765 = vunpack.c.l.b16 %v217
    %v766 = vunpack.c.l.b16 %v218
    %v767 = vunpack.c.l.b16 %v219
    %v768 = vunpack.c.l.b16 %v220
    %v769 = vunpack.c.l.b16 %v221
    %v770 = vunpack.c.l.b16 %v222
    %v771 = vunpack.c.l.b16 %v223
    %v772 = vunpack.c.l.b16 %v224
    %v773 = vunpack.c.l.b16 %v225
    %v774 = vunpack.c.l.b16 %v226
    %v775 = vunpack.c.l.b16 %v227
    %v776 = vunpack.c.l.b16 %v228
    %v777 = vunpack.c.l.b16 %v229
    %v778 = vunpack.c.l.b16 %v230
    %v779 = vunpack.c.l.b16 %v231
    %v780 = vunpack.c.l.b16 %v232
    %v781 = vunpack.c.l.b16 %v233
    %v782 = vunpack.c.l.b16 %v234
    %v783 = vunpack.c.l.b16 %v235
    %v784 = vunpack.c.l.b16 %v236
    %v785 = vunpack.c.l.b16 %v237
    %v786 = vunpack.c.l.b16 %v238
    %v787 = vunpack.c.l.b16 %v239
    %v788 = vunpack.c.l.b16 %v240
    %v789 = vunpack.c.l.b16 %v241
    %v790 = vunpack.c.l.b16 %v242
    %v791 = vunpack.c.l.b16 %v243
    %v792 = vunpack.c.l.b16 %v244
    %v793 = vunpack.c.l.b16 %v245
    %v794 = vunpack.c.l.b16 %v246
    %v795 = vunpack.c.l.b16 %v247
    %v796 = vunpack.c.l.b16 %v248
    %v797 = vunpack.c.l.b16 %v249
    %v798 = vunpack.c.l.b16 %v250
    %v799 = vunpack.c.l.b16 %v251
    %v800 = vunpack.c.l.b16 %v252
    %v801 = vunpack.c.l.b16 %v253
    %v802 = vunpack.c.l.b16 %v254
    %v803 = vunpack.c.l.b16 %v255
    %v804 = vunpack.c.l.b16 %v256
    %v805 = vunpack.c.l.b16 %v257
    %v806 = vunpack.c.l.b16 %v258
    %v807 = vunpack.c.l.b16 %v259
    %v808 = vunpack.c.l.b16 %v260
    %v809 = vunpack.c.l.b16 %v261
    %v810 = vunpack.c.l.b16 %v262
    %v811 = vunpack.c.l.b16 %v263
    %v812 = vunpack.c.l.b16 %v264
    %v813 = vunpack.c.l.b16 %v265
    %v814 = vunpack.c.l.b16 %v266
    %v815 = vunpack.c.l.b16 %v267
    %v816 = vunpack.c.l.b16 %v268
    %v817 = vunpack.c.l.b16 %v269
    %v818 = vunpack.c.l.b16 %v270
    %v819 = vunpack.c.l.b16 %v271
    %v820 = vunpack.c.l.b16 %v272
    %v821 = vunpack.c.l.b16 %v273
    %v822 = vunpack.c.l.b16 %v274
    %v823 = vunpack.c.l.b16 %v275
    %v824 = vunpack.c.l.b16 %v276
    %v825 = vunpack.c.l.b16 %v277
    %v826 = vunpack.c.l.b16 %v278
    %v827 = vunpack.c.l.b16 %v279
    %v828 = vunpack.c.l.b16 %v280
    %v829 = vunpack.c.l.b16 %v281
    %v830 = vunpack.c.l.b16 %v282
    %v831 = vunpack.c.l.b16 %v283
    %v832 = vunpack.c.l.b16 %v284
    %v833 = vpack.c.b16 %v578, %v577
    %v834 = vpack.c.b16 %v580, %v579
    %v835 = vpack.c.b16 %v582, %v581
    %v836 = vpack.c.b16 %v584, %v583
    %v837 = vpack.c.b16 %v586, %v585
    %v838 = vpack.c.b16 %v588, %v587
    %v839 = vpack.c.b16 %v590, %v589
    %v840 = vpack.c.b16 %v592, %v591
    %v841 = vpack.c.b16 %v594, %v593
    %v842 = vpack.c.b16 %v596, %v595
    %v843 = vpack.c.b16 %v598, %v597
    %v844 = vpack.c.b16 %v600, %v599
    %v845 = vpack.c.b16 %v602, %v601
    %v846 = vpack.c.b16 %v604, %v603
    %v847 = vpack.c.b16 %v606, %v605
    %v848 = vpack.c.b16 %v608, %v607
    %v849 = vpack.c.b16 %v610, %v609
    %v850 = vpack.c.b16 %v612, %v611
    %v851 = vpack.c.b16 %v614, %v613
    %v852 = vpack.c.b16 %v616, %v615
    %v853 = vpack.c.b16 %v618, %v617
    %v854 = vpack.c.b16 %v620, %v619
    %v855 = vpack.c.b16 %v622, %v621
    %v856 = vpack.c.b16 %v624, %v623
    %v857 = vpack.c.b16 %v626, %v625
    %v858 = vpack.c.b16 %v628, %v627
    %v859 = vpack.c.b16 %v630, %v629
    %v860 = vpack.c.b16 %v632, %v631
    %v861 = vpack.c.b16 %v634, %v633
    %v862 = vpack.c.b16 %v636, %v635
    %v863 = vpack.c.b16 %v638, %v637
    %v864 = vpack.c.b16 %v640, %v639
    %v865 = vpack.c.b16 %v642, %v641
    %v866 = vpack.c.b16 %v644, %v643
    %v867 = vpack.c.b16 %v646, %v645
    %v868 = vpack.c.b16 %v648, %v647
    %v869 = vpack.c.b16 %v650, %v649
    %v870 = vpack.c.b16 %v652, %v651
    %v871 = vpack.c.b16 %v654, %v653
    %v872 = vpack.c.b16 %v656, %v655
    %v873 = vpack.c.b16 %v658, %v657
    %v874 = vpack.c.b16 %v660, %v659
    %v875 = vpack.c.b16 %v662, %v661
    %v876 = vpack.c.b16 %v664, %v663
    %v877 = vpack.c.b16 %v666, %v665
    %v878 = vpack.c.b16 %v668, %v667
    %v879 = vpack.c.b16 %v670, %v669
    %v880 = vpack.c.b16 %v672, %v671
    %v881 = vpack.c.b16 %v674, %v673
    %v882 = vpack.c.b16 %v676, %v675
    %v883 = vpack.c.b16 %v678, %v677
    %v884 = vpack.c.b16 %v680, %v679
    %v885 = vpack.c.b16 %v682, %v681
    %v886 = vpack.c.b16 %v684, %v683
    %v887 = vpack.c.b16 %v686, %v685
    %v888 = vpack.c.b16 %v688, %v687
    %v889 = vpack.c.b16 %v690, %v689
    %v890 = vpack.c.b16 %v692, %v691
    %v891 = vpack.c.b16 %v694, %v693
    %v892 = vpack.c.b16 %v696, %v695
    %v893 = vpack.c.b16 %v698, %v697
    %v894 = vpack.c.b16 %v700, %v699
    %v895 = vpack.c.b16 %v702, %v701
    %v896 = vpack.c.b16 %v704, %v703
    %v897 = vpack.c.b16 %v706, %v705
    %v898 = vpack.c.b16 %v708, %v707
    %v899 = vpack.c.b16 %v710, %v709
    %v900 = vpack.c.b16 %v712, %v711
    %v901 = vpack.c.b16 %v714, %v713
    %v902 = vpack.c.b16 %v716, %v715
    %v903 = vpack.c.b16 %v718, %v717
    %v904 = vpack.c.b16 %v720, %v719
    %v905 = vpack.c.b16 %v722, %v721
    %v906 = vpack.c.b16 %v724, %v723
    %v907 = vpack.c.b16 %v726, %v725
    %v908 = vpack.c.b16 %v728, %v727
    %v909 = vpack.c.b16 %v730, %v729
    %v910 = vpack.c.b16 %v732, %v731
    %v911 = vpack.c.b16 %v734, %v733
    %v912 = vpack.c.b16 %v736, %v735
    %v913 = vpack.c.b16 %v738, %v737
    %v914 = vpack.c.b16 %v740, %v739
    %v915 = vpack.c.b16 %v742, %v741
    %v916 = vpack.c.b16 %v744, %v743
    %v917 = vpack.c.b16 %v746, %v745
    %v918 = vpack.c.b16 %v748, %v747
    %v919 = vpack.c.b16 %v750, %v749
    %v920 = vpack.c.b16 %v752, %v751
    %v921 = vpack.c.b16 %v754, %v753
    %v922 = vpack.c.b16 %v756, %v755
    %v923 = vpack.c.b16 %v758, %v757
    %v924 = vpack.c.b16 %v760, %v759
    %v925 = vpack.c.b16 %v762, %v761
    %v926 = vpack.c.b16 %v764, %v763
    %v927 = vpack.c.b16 %v766, %v765
    %v928 = vpack.c.b16 %v768, %v767
    %v929 = vpack.c.b16 %v770, %v769
    %v930 = vpack.c.b16 %v772, %v771
    %v931 = vpack.c.b16 %v774, %v773
    %v932 = vpack.c.b16 %v776, %v775
    %v933 = vpack.c.b16 %v778, %v777
    %v934 = vpack.c.b16 %v780, %v779
    %v935 = vpack.c.b16 %v782, %v781
    %v936 = vpack.c.b16 %v784, %v783
    %v937 = vpack.c.b16 %v786, %v785
    %v938 = vpack.c.b16 %v788, %v787
    %v939 = vpack.c.b16 %v790, %v789
    %v940 = vpack.c.b16 %v792, %v791
    %v941 = vpack.c.b16 %v794, %v793
    %v942 = vpack.c.b16 %v796, %v795
    %v943 = vpack.c.b16 %v798, %v797
    %v944 = vpack.c.b16 %v800, %v799
    %v945 = vpack.c.b16 %v802, %v801
    %v946 = vpack.c.b16 %v804, %v803
    %v947 = vpack.c.b16 %v806, %v805
    %v948 = vpack.c.b16 %v808, %v807
    %v949 = vpack.c.b16 %v810, %v809
    %v950 = vpack.c.b16 %v812, %v811
    %v951 = vpack.c.b16 %v814, %v813
    %v952 = vpack.c.b16 %v816, %v815
    %v953 = vpack.c.b16 %v818, %v817
    %v954 = vpack.c.b16 %v820, %v819
    %v955 = vpack.c.b16 %v822, %v821
    %v956 = vpack.c.b16 %v824, %v823
    %v957 = vpack.c.b16 %v826, %v825
    %v958 = vpack.c.b16 %v828, %v827
    %v959 = vpack.c.b16 %v830, %v829
    %v960 = vpack.c.b16 %v832, %v831
    %1089 = vmatpush.bf16.msra.mxu0 %v840
    %1090 = vmatpush.bf16.msra.mxu0 %v839
    %1091 = vmatpush.bf16.msra.mxu0 %v838
    %1092 = vmatpush.bf16.msra.mxu0 %v837
    %1093 = vmatpush.bf16.msra.mxu0 %v836
    %1094 = vmatpush.bf16.msra.mxu0 %v835
    %1095 = vmatpush.bf16.msra.mxu0 %v834
    %1096 = vmatpush.bf16.msra.mxu0 %v833
    %1097 = vmatmul.bf16.gmra.mxu0 %v287
    %v1098 = vpop.f32.mrf.mxu0
    %v1099 = vadd.f32 0.0, %v1098
    %v1100 = vpop.f32.mrf.mxu0
    %1101 = vdwg.mxu0
    %1102 = vmatpush.bf16.msra.mxu0 %v848
    %1103 = vmatpush.bf16.msra.mxu0 %v847
    %1104 = vmatpush.bf16.msra.mxu0 %v846
    %1105 = vmatpush.bf16.msra.mxu0 %v845
    %1106 = vmatpush.bf16.msra.mxu0 %v844
    %1107 = vmatpush.bf16.msra.mxu0 %v843
    %1108 = vmatpush.bf16.msra.mxu0 %v842
    %1109 = vmatpush.bf16.msra.mxu0 %v841
    %1110 = vmatmul.bf16.gmra.mxu0 %v288
    %v1111 = vpop.f32.mrf.mxu0
    %v1112 = vadd.f32 %v1099, %v1111
    %v1113 = vpop.f32.mrf.mxu0
    %1114 = vdwg.mxu0
    %1115 = vmatpush.bf16.msra.mxu0 %v856
    %1116 = vmatpush.bf16.msra.mxu0 %v855
    %1117 = vmatpush.bf16.msra.mxu0 %v854
    %1118 = vmatpush.bf16.msra.mxu0 %v853
    %1119 = vmatpush.bf16.msra.mxu0 %v852
    %1120 = vmatpush.bf16.msra.mxu0 %v851
    %1121 = vmatpush.bf16.msra.mxu0 %v850
    %1122 = vmatpush.bf16.msra.mxu0 %v849
    %1123 = vmatmul.bf16.gmra.mxu0 %v289
    %v1124 = vpop.f32.mrf.mxu0
    %v1125 = vadd.f32 %v1112, %v1124
    %v1126 = vpop.f32.mrf.mxu0
    %1127 = vdwg.mxu0
    %1128 = vmatpush.bf16.msra.mxu0 %v864
    %1129 = vmatpush.bf16.msra.mxu0 %v863
    %1130 = vmatpush.bf16.msra.mxu0 %v862
    %1131 = vmatpush.bf16.msra.mxu0 %v861
    %1132 = vmatpush.bf16.msra.mxu0 %v860
    %1133 = vmatpush.bf16.msra.mxu0 %v859
    %1134 = vmatpush.bf16.msra.mxu0 %v858
    %1135 = vmatpush.bf16.msra.mxu0 %v857
    %1136 = vmatmul.bf16.gmra.mxu0 %v290
    %v1137 = vpop.f32.mrf.mxu0
    %v1138 = vadd.f32 %v1125, %v1137
    %v1139 = vpop.f32.mrf.mxu0
    %1140 = vdwg.mxu0
    %1141 = vmatpush.bf16.msra.mxu0 %v872
    %1142 = vmatpush.bf16.msra.mxu0 %v871
    %1143 = vmatpush.bf16.msra.mxu0 %v870
    %1144 = vmatpush.bf16.msra.mxu0 %v869
    %1145 = vmatpush.bf16.msra.mxu0 %v868
    %1146 = vmatpush.bf16.msra.mxu0 %v867
    %1147 = vmatpush.bf16.msra.mxu0 %v866
    %1148 = vmatpush.bf16.msra.mxu0 %v865
    %1149 = vmatmul.bf16.gmra.mxu0 %v291
    %v1150 = vpop.f32.mrf.mxu0
    %v1151 = vadd.f32 %v1138, %v1150
    %v1152 = vpop.f32.mrf.mxu0
    %1153 = vdwg.mxu0
    %1154 = vmatpush.bf16.msra.mxu0 %v880
    %1155 = vmatpush.bf16.msra.mxu0 %v879
    %1156 = vmatpush.bf16.msra.mxu0 %v878
    %1157 = vmatpush.bf16.msra.mxu0 %v877
    %1158 = vmatpush.bf16.msra.mxu0 %v876
    %1159 = vmatpush.bf16.msra.mxu0 %v875
    %1160 = vmatpush.bf16.msra.mxu0 %v874
    %1161 = vmatpush.bf16.msra.mxu0 %v873
    %1162 = vmatmul.bf16.gmra.mxu0 %v292
    %v1163 = vpop.f32.mrf.mxu0
    %v1164 = vadd.f32 %v1151, %v1163
    %v1165 = vpop.f32.mrf.mxu0
    %1166 = vdwg.mxu0
    %1167 = vmatpush.bf16.msra.mxu0 %v888
    %1168 = vmatpush.bf16.msra.mxu0 %v887
    %1169 = vmatpush.bf16.msra.mxu0 %v886
    %1170 = vmatpush.bf16.msra.mxu0 %v885
    %1171 = vmatpush.bf16.msra.mxu0 %v884
    %1172 = vmatpush.bf16.msra.mxu0 %v883
    %1173 = vmatpush.bf16.msra.mxu0 %v882
    %1174 = vmatpush.bf16.msra.mxu0 %v881
    %1175 = vmatmul.bf16.gmra.mxu0 %v293
    %v1176 = vpop.f32.mrf.mxu0
    %v1177 = vadd.f32 %v1164, %v1176
    %v1178 = vpop.f32.mrf.mxu0
    %1179 = vdwg.mxu0
    %1180 = vmatpush.bf16.msra.mxu0 %v896
    %1181 = vmatpush.bf16.msra.mxu0 %v895
    %1182 = vmatpush.bf16.msra.mxu0 %v894
    %1183 = vmatpush.bf16.msra.mxu0 %v893
    %1184 = vmatpush.bf16.msra.mxu0 %v892
    %1185 = vmatpush.bf16.msra.mxu0 %v891
    %1186 = vmatpush.bf16.msra.mxu0 %v890
    %1187 = vmatpush.bf16.msra.mxu0 %v889
    %1188 = vmatmul.bf16.gmra.mxu0 %v294
    %v1189 = vpop.f32.mrf.mxu0
    %v1190 = vadd.f32 %v1177, %v1189
    %v1191 = vpop.f32.mrf.mxu0
    %1192 = vdwg.mxu0
    %1193 = vmatpush.bf16.msra.mxu0 %v904
    %1194 = vmatpush.bf16.msra.mxu0 %v903
    %1195 = vmatpush.bf16.msra.mxu0 %v902
    %1196 = vmatpush.bf16.msra.mxu0 %v901
    %1197 = vmatpush.bf16.msra.mxu0 %v900
    %1198 = vmatpush.bf16.msra.mxu0 %v899
    %1199 = vmatpush.bf16.msra.mxu0 %v898
    %1200 = vmatpush.bf16.msra.mxu0 %v897
    %1201 = vmatmul.bf16.gmra.mxu0 %v297
    %v1202 = vpop.f32.mrf.mxu0
    %v1203 = vadd.f32 %v1190, %v1202
    %v1204 = vpop.f32.mrf.mxu0
    %1205 = vdwg.mxu0
    %1206 = vmatpush.bf16.msra.mxu0 %v912
    %1207 = vmatpush.bf16.msra.mxu0 %v911
    %1208 = vmatpush.bf16.msra.mxu0 %v910
    %1209 = vmatpush.bf16.msra.mxu0 %v909
    %1210 = vmatpush.bf16.msra.mxu0 %v908
    %1211 = vmatpush.bf16.msra.mxu0 %v907
    %1212 = vmatpush.bf16.msra.mxu0 %v906
    %1213 = vmatpush.bf16.msra.mxu0 %v905
    %1214 = vmatmul.bf16.gmra.mxu0 %v298
    %v1215 = vpop.f32.mrf.mxu0
    %v1216 = vadd.f32 %v1203, %v1215
    %v1217 = vpop.f32.mrf.mxu0
    %1218 = vdwg.mxu0
    %1219 = vmatpush.bf16.msra.mxu0 %v920
    %1220 = vmatpush.bf16.msra.mxu0 %v919
    %1221 = vmatpush.bf16.msra.mxu0 %v918
    %1222 = vmatpush.bf16.msra.mxu0 %v917
    %1223 = vmatpush.bf16.msra.mxu0 %v916
    %1224 = vmatpush.bf16.msra.mxu0 %v915
    %1225 = vmatpush.bf16.msra.mxu0 %v914
    %1226 = vmatpush.bf16.msra.mxu0 %v913
    %1227 = vmatmul.bf16.gmra.mxu0 %v299
    %v1228 = vpop.f32.mrf.mxu0
    %v1229 = vadd.f32 %v1216, %v1228
    %v1230 = vpop.f32.mrf.mxu0
    %1231 = vdwg.mxu0
    %1232 = vmatpush.bf16.msra.mxu0 %v928
    %1233 = vmatpush.bf16.msra.mxu0 %v927
    %1234 = vmatpush.bf16.msra.mxu0 %v926
    %1235 = vmatpush.bf16.msra.mxu0 %v925
    %1236 = vmatpush.bf16.msra.mxu0 %v924
    %1237 = vmatpush.bf16.msra.mxu0 %v923
    %1238 = vmatpush.bf16.msra.mxu0 %v922
    %1239 = vmatpush.bf16.msra.mxu0 %v921
    %1240 = vmatmul.bf16.gmra.mxu0 %v300
    %v1241 = vpop.f32.mrf.mxu0
    %v1242 = vadd.f32 %v1229, %v1241
    %v1243 = vpop.f32.mrf.mxu0
    %1244 = vdwg.mxu0
    %1245 = vmatpush.bf16.msra.mxu0 %v936
    %1246 = vmatpush.bf16.msra.mxu0 %v935
    %1247 = vmatpush.bf16.msra.mxu0 %v934
    %1248 = vmatpush.bf16.msra.mxu0 %v933
    %1249 = vmatpush.bf16.msra.mxu0 %v932
    %1250 = vmatpush.bf16.msra.mxu0 %v931
    %1251 = vmatpush.bf16.msra.mxu0 %v930
    %1252 = vmatpush.bf16.msra.mxu0 %v929
    %1253 = vmatmul.bf16.gmra.mxu0 %v301
    %v1254 = vpop.f32.mrf.mxu0
    %v1255 = vadd.f32 %v1242, %v1254
    %v1256 = vpop.f32.mrf.mxu0
    %1257 = vdwg.mxu0
    %1258 = vmatpush.bf16.msra.mxu0 %v944
    %1259 = vmatpush.bf16.msra.mxu0 %v943
    %1260 = vmatpush.bf16.msra.mxu0 %v942
    %1261 = vmatpush.bf16.msra.mxu0 %v941
    %1262 = vmatpush.bf16.msra.mxu0 %v940
    %1263 = vmatpush.bf16.msra.mxu0 %v939
    %1264 = vmatpush.bf16.msra.mxu0 %v938
    %1265 = vmatpush.bf16.msra.mxu0 %v937
    %1266 = vmatmul.bf16.gmra.mxu0 %v302
    %v1267 = vpop.f32.mrf.mxu0
    %v1268 = vadd.f32 %v1255, %v1267
    %v1269 = vpop.f32.mrf.mxu0
    %1270 = vdwg.mxu0
    %1271 = vmatpush.bf16.msra.mxu0 %v952
    %1272 = vmatpush.bf16.msra.mxu0 %v951
    %1273 = vmatpush.bf16.msra.mxu0 %v950
    %1274 = vmatpush.bf16.msra.mxu0 %v949
    %1275 = vmatpush.bf16.msra.mxu0 %v948
    %1276 = vmatpush.bf16.msra.mxu0 %v947
    %1277 = vmatpush.bf16.msra.mxu0 %v946
    %1278 = vmatpush.bf16.msra.mxu0 %v945
    %1279 = vmatmul.bf16.gmra.mxu0 %v303
    %v1280 = vpop.f32.mrf.mxu0
    %v1281 = vadd.f32 %v1268, %v1280
    %v1282 = vpop.f32.mrf.mxu0
    %1283 = vdwg.mxu0
    %1284 = vmatpush.bf16.msra.mxu0 %v960
    %1285 = vmatpush.bf16.msra.mxu0 %v959
    %1286 = vmatpush.bf16.msra.mxu0 %v958
    %1287 = vmatpush.bf16.msra.mxu0 %v957
    %1288 = vmatpush.bf16.msra.mxu0 %v956
    %1289 = vmatpush.bf16.msra.mxu0 %v955
    %1290 = vmatpush.bf16.msra.mxu0 %v954
    %1291 = vmatpush.bf16.msra.mxu0 %v953
    %1292 = vmatmul.bf16.gmra.mxu0 %v304
    %v1293 = vpop.f32.mrf.mxu0
    %v1294 = vadd.f32 %v1281, %v1293
    %v1295 = vpop.f32.mrf.mxu0
    %1296 = vdwg.mxu0
    %v1297 = vadd.f32 %v26, %v1294
    %1298 = vst [vmem:[#allocation2] sm:$0x3] %v1297
    // Predicated region
    $region26: #{cat_dog_cnn_forward.5} parent=1 // pred_check
      %p1299 = pneg %p21
    $region27: #{cat_dog_cnn_forward.5} parent=1 // pred_check_branch
      %1301 = sbr.rel (%p1299) target = $region29
    $region28: #{cat_dog_cnn_forward.5} parent=1 // pred_region
      %v1302 = vld [vmem:[#allocation2] sm:$0x3]
      %v1303 = vld [vmem:[%s2] sm:$0x1]
      %v1305 = vperm.slane %v1303, 0
      %v1307 = vadd.f32 %v1302, %v1305
      %v1308 = vmax.f32 %v1307, 0.0
      %v1309 = vpack.c.bf16 %v1308, %v1308
      %v1310 = vld [vmem:[%s3] sm:$0xf]
      %v1311 = vld [vmem:[%s3 + $0x4] sm:$0xf]
      %v1312 = vld [vmem:[%s3 + $0x8] sm:$0xf]
      %v1313 = vld [vmem:[%s3 + $0xc] sm:$0xf]
      %v1314 = vld [vmem:[%s3 + $0x10] sm:$0xf]
      %v1315 = vld [vmem:[%s3 + $0x14] sm:$0xf]
      %v1316 = vld [vmem:[%s3 + $0x18] sm:$0xf]
      %v1317 = vld [vmem:[%s3 + $0x1c] sm:$0xf]
      %v1318 = vld [vmem:[%s3 + $0x20] sm:$0xf]
      %v1319 = vld [vmem:[%s3 + $0x24] sm:$0xf]
      %v1320 = vld [vmem:[%s3 + $0x28] sm:$0xf]
      %v1321 = vld [vmem:[%s3 + $0x2c] sm:$0xf]
      %v1322 = vld [vmem:[%s3 + $0x30] sm:$0xf]
      %v1323 = vld [vmem:[%s3 + $0x34] sm:$0xf]
      %v1324 = vld [vmem:[%s3 + $0x38] sm:$0xf]
      %v1325 = vld [vmem:[%s3 + $0x3c] sm:$0xf]
      %v1326 = vld [vmem:[%s4] sm:$0x1]
      %v1328 = vperm.slane %v1326, 0
      %v1346 = vunpack.c.l.b16 %v1310
      %v1347 = vunpack.c.l.b16 %v1311
      %v1348 = vunpack.c.l.b16 %v1312
      %v1349 = vunpack.c.l.b16 %v1313
      %v1350 = vunpack.c.l.b16 %v1314
      %v1351 = vunpack.c.l.b16 %v1315
      %v1352 = vunpack.c.l.b16 %v1316
      %v1353 = vunpack.c.l.b16 %v1317
      %v1354 = vunpack.c.l.b16 %v1318
      %v1355 = vunpack.c.l.b16 %v1319
      %v1356 = vunpack.c.l.b16 %v1320
      %v1357 = vunpack.c.l.b16 %v1321
      %v1358 = vunpack.c.l.b16 %v1322
      %v1359 = vunpack.c.l.b16 %v1323
      %v1360 = vunpack.c.l.b16 %v1324
      %v1361 = vunpack.c.l.b16 %v1325
      %v1362 = vpack.c.b16 %v1347, %v1346
      %v1363 = vpack.c.b16 %v1349, %v1348
      %v1364 = vpack.c.b16 %v1351, %v1350
      %v1365 = vpack.c.b16 %v1353, %v1352
      %v1366 = vpack.c.b16 %v1355, %v1354
      %v1367 = vpack.c.b16 %v1357, %v1356
      %v1368 = vpack.c.b16 %v1359, %v1358
      %v1369 = vpack.c.b16 %v1361, %v1360
      %1378 = vmatpush.bf16.msra.mxu0 %v1369
      %1379 = vmatpush.bf16.msra.mxu0 %v1368
      %1380 = vmatpush.bf16.msra.mxu0 %v1367
      %1381 = vmatpush.bf16.msra.mxu0 %v1366
      %1382 = vmatpush.bf16.msra.mxu0 %v1365
      %1383 = vmatpush.bf16.msra.mxu0 %v1364
      %1384 = vmatpush.bf16.msra.mxu0 %v1363
      %1385 = vmatpush.bf16.msra.mxu0 %v1362
      %1386 = vmatmul.bf16.gmra.mxu0 %v1309
      %v1387 = vpop.f32.mrf.mxu0
      %v1388 = vadd.f32 %v1328, %v1387
      %v1389 = vpop.f32.mrf.mxu0
      %1390 = vdwg.mxu0
      %vm1391 = vcmask 9216
      %1392 = vst.msk [vmem:[#allocation3] sm:$0x3] %vm1391, %v1388
    $region29: #{cat_dog_cnn_forward.5} parent=1 // pred_fallthru
      _
    // Predicated region
    $region30: #{cat_dog_cnn_forward.5} parent=1 // pred_check
      _
    $region31: #{cat_dog_cnn_forward.5} parent=1 // pred_check_branch
      %1394 = sbr.rel (0) target = $region33
    $region32: #{cat_dog_cnn_forward.5} parent=1 // pred_region
      %1396 = vsyncadd [#allocation4], 0
      %s1398 = sshll.u32 [#allocation3], 4
      %s1399 = int_to_ptr.vmem [resolvable:$true] %s1398
      %s1400 = sshll.u32 %s5, 4
      %s1401 = int_to_ptr.hbm [resolvable:$true] %s1400
      %1403 = dma.vmem_to_hbm [thread:$0]  %s1399, 32, %s1401, [#allocation4]
    $region33: #{cat_dog_cnn_forward.5} parent=1 // pred_fallthru
      _
    // Predicated region
    $region34: #{cat_dog_cnn_forward.5} parent=1 // pred_check
      _
    $region35: #{cat_dog_cnn_forward.5} parent=1 // pred_check_branch
      %1405 = sbr.rel (0) target = $region37
    $region36: #{cat_dog_cnn_forward.5} parent=1 // pred_region
      %1407 = dma.done [#allocation4], 32
    $region37: #{cat_dog_cnn_forward.5} parent=1 // pred_fallthru
      _
    %1408 = vsyncpa [#allocation4], 1

</llo_original>
